<compile_context>
chip_gen: v5e
topology: v5e:2x2
jax: 0.10.0
libtpu: 0.0.40
codegen_flags: <defaults>
</compile_context>

<pallas_src>
import jax
import jax.numpy as jnp
from jax.experimental import pallas as pl
from jax.experimental.pallas import tpu as pltpu

HIDDEN = 32         # hidden_dim (scaled down from 150 for the small demo)
GATE_HIDDEN = 200   # gate_nn inner width (as in the module)
NUM_LAYERS = 5      # num_layers

HP = 128            # lane-padded hidden width
GHP = 256           # lane-padded gate hidden width
GP = 128            # lane-padded graph count used for the segment softmax mask
GOUT = 8            # sublane-padded number of graph rows actually written back


# ----------------------------- Pallas kernel ------------------------------- #

def _ggnn_fused_kernel(x0_ref, adjt_ref, wg_ref, bg_ref, batch_ref,
                       gw1_ref, gb1_ref, gw2_ref, gb2_ref,
                       out_ref, att_ref,
                       x_scr):
    """All GGNN layers (aggregate -> fused GRU gates) + attention readout."""
    N = x0_ref.shape[0]

    # x stays resident in VMEM scratch (f32) for all layers.
    x_scr[...] = x0_ref[...]
    adjt = adjt_ref[...]                                   # [N, N] bf16

    def layer_step(l, carry):
        x = x_scr[...]                                     # [N, HP] f32
        xb = x.astype(jnp.bfloat16)

        # Aggregate neighbours first; per-layer linear W_l is folded into the
        # GRU input weights offline (one fewer matmul per layer).
        agg = jnp.dot(adjt, xb, preferred_element_type=jnp.float32)   # [N, HP]

        # Single K=256 gate matmul: [agg | x] @ [[W·Wi_r, W·Wi_z, W·Wi_n, 0],
        #                                        [ Wh_r ,  Wh_z ,   0  , Wh_n]]
        # -> column blocks: [ (gi_r+gh_r) | (gi_z+gh_z) | gi_n | gh_n ]
        inp = jnp.concatenate([agg.astype(jnp.bfloat16), xb], axis=1)  # [N, 2*HP]
        g = jnp.dot(inp, wg_ref[l],
                    preferred_element_type=jnp.float32) + bg_ref[l]    # [N, 4*HP]

        # gate slices are 128-lane aligned; elementwise math kept in f32 (v5e-safe)
        r = jax.nn.sigmoid(g[:, 0:HP])
        z = jax.nn.sigmoid(g[:, HP:2 * HP])
        n = jnp.tanh(g[:, 2 * HP:3 * HP] + r * g[:, 3 * HP:4 * HP])
        x_scr[...] = (1.0 - z) * n + z * x
        return carry

    jax.lax.fori_loop(0, NUM_LAYERS, layer_step, 0, unroll=True)

    # ---- GlobalAttention readout ----
    x = x_scr[...]                                         # [N, HP] f32
    h = jnp.tanh(jnp.dot(x.astype(jnp.bfloat16), gw1_ref[...],
                         preferred_element_type=jnp.float32) + gb1_ref[...])

    # 200->1 projection as VPU multiply + lane (XLU) reduction, not a 1-col MXU op
    gate = jnp.sum(h * gw2_ref[...], axis=-1, keepdims=True) + gb2_ref[0, 0]  # [N,1]

    # one-hot graph mask built in-kernel from the int32 batch vector
    seg_ids = jax.lax.broadcasted_iota(jnp.int32, (N, GP), 1)
    B = (batch_ref[...] == seg_ids).astype(jnp.float32)    # [N, GP]

    # segment softmax over the nodes of each graph (torch_geometric softmax)
    BIG_NEG = jnp.float32(-1e30)                           # finite: empty cols stay NaN-free
    masked = jnp.where(B > 0.0, gate, BIG_NEG)             # [N, GP]
    seg_max = jnp.max(masked, axis=0, keepdims=True)       # [1, GP]
    node_max = jnp.sum(B * seg_max, axis=1, keepdims=True) # [N, 1]
    e = jnp.exp(gate - node_max)                           # [N, 1]
    seg_sum = jnp.sum(B * e, axis=0, keepdims=True)        # [1, GP]
    node_sum = jnp.sum(B * seg_sum, axis=1, keepdims=True) # [N, 1]
    alpha = e / (node_sum + jnp.float32(1e-16))            # exact divide (torch parity)

    # single narrow write of the attention column
    att_ref[...] = alpha

    # scatter_add(alpha * x, batch) == B^T @ (alpha * x); bf16 operands (one-hot
    # exact), f32 accumulation; only the first GOUT rows are written back.
    ax = (alpha * x).astype(jnp.bfloat16)
    full = jax.lax.dot_general(
        B.astype(jnp.bfloat16), ax, (((0,), (0,)), ((), ())),
        preferred_element_type=jnp.float32)                # [GP, HP]
    out_ref[...] = full[:GOUT, :]


# ------------------------------ JAX wrapper -------------------------------- #

_VMEM = pl.BlockSpec(memory_space=pltpu.MemorySpace.VMEM)
_SMEM = pl.BlockSpec(memory_space=pltpu.MemorySpace.SMEM)


def _pad2(a, shape):
    out = jnp.zeros(shape, jnp.float32)
    return out.at[:a.shape[0], :a.shape[1]].set(a.astype(jnp.float32))


def pack_params(params):
    """Fold W into the GRU input weights (f32), build the merged K=256 gate
    weight / bias per layer, pad to lane-aligned shapes, stack, cast bf16."""
    wg_s, bg_s = [], []
    zeros = jnp.zeros((HP, HP), jnp.float32)
    for lp in params["layers"]:
        w = _pad2(lp["w"], (HP, HP))
        wir, wiz, win = (_pad2(lp[k], (HP, HP)) for k in ("wir", "wiz", "win"))
        whr, whz, whn = (_pad2(lp[k], (HP, HP)) for k in ("whr", "whz", "whn"))
        # f32 product before bf16 cast (per review)
        top = jnp.concatenate([w @ wir, w @ wiz, w @ win, zeros], axis=1)  # agg path
        bot = jnp.concatenate([whr, whz, zeros, whn], axis=1)              # x path
        wg_s.append(jnp.concatenate([top, bot], axis=0))                   # [2HP, 4HP]

        bir, biz, bin_, bhr, bhz, bhn = (
            _pad2(lp[k], (1, HP)) for k in ("bir", "biz", "bin", "bhr", "bhz", "bhn"))
        bg_s.append(jnp.concatenate([bir + bhr, biz + bhz, bin_, bhn], axis=1))  # [1, 4HP]

    return {
        "wg": jnp.stack(wg_s).astype(jnp.bfloat16),        # [L, 2*HP, 4*HP]
        "bg": jnp.stack(bg_s).astype(jnp.float32),         # [L, 1, 4*HP]
        "gw1": _pad2(params["gate_w1"], (HP, GHP)).astype(jnp.bfloat16),
        "gb1": _pad2(params["gate_b1"], (1, GHP)).astype(jnp.float32),
        "gw2": _pad2(params["gate_w2"].T, (1, GHP)).astype(jnp.float32),
        "gb2": params["gate_b2"].astype(jnp.float32).reshape(1, 1),   # SMEM scalar
    }


def ggnn_forward(x_in, adj_t, batch, params, num_graphs):
    N, in_ch = x_in.shape
    assert in_ch <= HIDDEN and num_graphs <= GOUT

    # GatedGraphConv zero-pads input features up to out_channels; we pad all
    # the way to the lane-aligned width (extra channels stay exactly zero).
    x0 = jnp.zeros((N, HP), jnp.float32).at[:, :in_ch].set(x_in.astype(jnp.float32))
    adjt_bf = adj_t.astype(jnp.bfloat16)                   # small multiplicities: exact in bf16
    batch_col = batch.astype(jnp.int32).reshape(N, 1)      # one-hot built in-kernel

    p = pack_params(params)

    # TODO(synk): for large N, batch >=128 (v5e) / >=256 (v6e/v7x) nodes per call
    # and tile only the adjacency source (K) dim per layer — x must stay fully
    # VMEM-resident across layers, so node rows cannot be independent grid
    # iterations; mark any added tile axis "parallel" and re-derive tile sizes
    # for v7x's 64 MiB VMEM (set vmem_limit_bytes). At N=16 one block suffices.
    out_p, att = pl.pallas_call(
        _ggnn_fused_kernel,
        out_shape=(jax.ShapeDtypeStruct((GOUT, HP), jnp.float32),
                   jax.ShapeDtypeStruct((N, 1), jnp.float32)),
        in_specs=[_VMEM] * 8 + [_SMEM],
        out_specs=(_VMEM, _VMEM),
        scratch_shapes=[pltpu.VMEM((N, HP), jnp.float32)],
    )(x0, adjt_bf, p["wg"], p["bg"], batch_col,
      p["gw1"], p["gb1"], p["gw2"], p["gb2"])

    return out_p[:num_graphs, :HIDDEN], att


def init_params(key, hidden=HIDDEN, gate_hidden=GATE_HIDDEN, num_layers=NUM_LAYERS):
    """Deterministic synthetic parameter init (matches module shapes)."""
    def uni(k, shape, scale):
        return jax.random.uniform(k, shape, jnp.float32, -scale, scale)

    gru_scale = 1.0 / jnp.sqrt(jnp.float32(hidden))
    layers = []
    keys = jax.random.split(key, num_layers * 13 + 4)
    ki = 0
    for _ in range(num_layers):
        lp = {}
        lp["w"] = uni(keys[ki], (hidden, hidden), gru_scale); ki += 1
        for name in ("wir", "wiz", "win", "whr", "whz", "whn"):
            lp[name] = uni(keys[ki], (hidden, hidden), gru_scale); ki += 1
        for name in ("bir", "biz", "bin", "bhr", "bhz", "bhn"):
            lp[name] = uni(keys[ki], (1, hidden), gru_scale); ki += 1
        layers.append(lp)

    g1 = 1.0 / jnp.sqrt(jnp.float32(hidden))
    g2 = 1.0 / jnp.sqrt(jnp.float32(gate_hidden))
    return {
        "layers": layers,
        "gate_w1": uni(keys[ki + 0], (hidden, gate_hidden), g1),
        "gate_b1": uni(keys[ki + 1], (1, gate_hidden), g1),
        "gate_w2": uni(keys[ki + 2], (gate_hidden, 1), g2),
        "gate_b2": uni(keys[ki + 3], (1, 1), g2),
    }


# --------------------------------- demo ------------------------------------ #

if __name__ == "__main__":
    key = jax.random.PRNGKey(0)
    k_x, k_p = jax.random.split(key)

    N, G, IN_CH = 16, 2, 16          # 16 nodes, 2 graphs, 16 input channels

    # node features
    x_in = jax.random.normal(k_x, (N, IN_CH), jnp.float32)

    # deterministic edge_index: a directed ring inside each graph + reverse edges
    src_list, dst_list = [], []
    for g in range(G):
        base = g * (N // G)
        for i in range(N // G):
            s = base + i
            d = base + (i + 1) % (N // G)
            src_list += [s, d]
            dst_list += [d, s]
    src = jnp.array(src_list, jnp.int32)
    dst = jnp.array(dst_list, jnp.int32)

    # dense transposed adjacency: adj_t[dst, src] = multiplicity of edge src->dst
    adj_t = jnp.zeros((N, N), jnp.float32).at[dst, src].add(1.0)

    # graph membership vector
    batch = jnp.array([0] * (N // G) + [1] * (N // G), jnp.int32)

    params = init_params(k_p)

    out, att = ggnn_forward(x_in, adj_t, batch, params, num_graphs=G)
    jax.block_until_ready((out, att))

    assert out.shape == (G, HIDDEN)
    assert att.shape == (N, 1)
    assert bool(jnp.all(jnp.isfinite(out))) and bool(jnp.all(jnp.isfinite(att)))
    print("KERNEL_OK")
</pallas_src>

<mosaic_0001>
module attributes {stable_mosaic.version = 11 : i64} {
  func.func @_ggnn_fused_kernel(%arg0: memref<16x128xf32, #tpu.memory_space<vmem>>, %arg1: memref<16x16xbf16, #tpu.memory_space<vmem>>, %arg2: memref<5x256x512xbf16, #tpu.memory_space<vmem>>, %arg3: memref<5x1x512xf32, #tpu.memory_space<vmem>>, %arg4: memref<16x1xi32, #tpu.memory_space<vmem>>, %arg5: memref<128x256xbf16, #tpu.memory_space<vmem>>, %arg6: memref<1x256xf32, #tpu.memory_space<vmem>>, %arg7: memref<1x256xf32, #tpu.memory_space<vmem>>, %arg8: memref<1x1xf32, #tpu.memory_space<smem>>, %arg9: memref<8x128xf32, #tpu.memory_space<vmem>>, %arg10: memref<16x1xf32, #tpu.memory_space<vmem>>, %arg11: memref<16x128xf32, #tpu.memory_space<vmem>>) attributes {dimension_semantics = [], scalar_prefetch = 0 : i64, scratch_operands = 1 : i64, tpu.core_type = #tpu.core_type<tc>} {
    %c0 = arith.constant 0 : index
    %c0_0 = arith.constant 0 : index
    %0 = vector.load %arg0[%c0, %c0_0] : memref<16x128xf32, #tpu.memory_space<vmem>>, vector<16x128xf32>
    %c0_1 = arith.constant 0 : index
    %c0_2 = arith.constant 0 : index
    %1 = vector.load %arg11[%c0_1, %c0_2] : memref<16x128xf32, #tpu.memory_space<vmem>>, vector<16x128xf32>
    tpu.vector_store %arg11[%c0_1, %c0_2], %0 {strides = array<i32>} : memref<16x128xf32, #tpu.memory_space<vmem>>, vector<16x128xf32>,
    %c0_3 = arith.constant 0 : index
    %c0_4 = arith.constant 0 : index
    %2 = vector.load %arg1[%c0_3, %c0_4] : memref<16x16xbf16, #tpu.memory_space<vmem>>, vector<16x16xbf16>
    %c0_i32 = arith.constant 0 : i32
    %c0_5 = arith.constant 0 : index
    %c0_6 = arith.constant 0 : index
    %3 = vector.load %arg11[%c0_5, %c0_6] : memref<16x128xf32, #tpu.memory_space<vmem>>, vector<16x128xf32>
    %4 = arith.truncf %3 : vector<16x128xf32> to vector<16x128xbf16>
    %cst = arith.constant dense<0.000000e+00> : vector<16x128xf32>
    %5 = tpu.matmul %2, %4, %cst {dimension_numbers = #tpu.dot_dimension_numbers<[1], [0], [0], [1], [0, 0, 1, 1], [], []>} : vector<16x16xbf16>, vector<16x128xbf16>, vector<16x128xf32> -> vector<16x128xf32>
    %6 = arith.truncf %5 : vector<16x128xf32> to vector<16x128xbf16>
    %7 = tpu.concatenate %6, %4 in 1 : vector<16x128xbf16>, vector<16x128xbf16> -> vector<16x256xbf16>
    %8 = arith.index_cast %c0_i32 : i32 to index
    %c0_7 = arith.constant 0 : index
    %c0_8 = arith.constant 0 : index
    %9 = vector.load %arg2[%8, %c0_7, %c0_8] : memref<5x256x512xbf16, #tpu.memory_space<vmem>>, vector<1x256x512xbf16>
    %10 = vector.shape_cast %9 : vector<1x256x512xbf16> to vector<256x512xbf16>
    %cst_9 = arith.constant dense<0.000000e+00> : vector<16x512xf32>
    %11 = tpu.matmul %7, %10, %cst_9 {dimension_numbers = #tpu.dot_dimension_numbers<[1], [0], [0], [1], [0, 0, 1, 1], [], []>} : vector<16x256xbf16>, vector<256x512xbf16>, vector<16x512xf32> -> vector<16x512xf32>
    %12 = arith.index_cast %c0_i32 : i32 to index
    %c0_10 = arith.constant 0 : index
    %c0_11 = arith.constant 0 : index
    %13 = vector.load %arg3[%12, %c0_10, %c0_11] : memref<5x1x512xf32, #tpu.memory_space<vmem>>, vector<1x1x512xf32>
    %14 = vector.shape_cast %13 : vector<1x1x512xf32> to vector<1x512xf32>
    %15 = vector.broadcast %14 : vector<1x512xf32> to vector<16x512xf32>
    %16 = arith.addf %11, %15 : vector<16x512xf32>
    %17 = vector.extract_strided_slice %16 {offsets = [0, 0], sizes = [16, 128], strides = [1, 1]} : vector<16x512xf32> to vector<16x128xf32>
    %18 = arith.negf %17 : vector<16x128xf32>
    %19 = math.exp %18 : vector<16x128xf32>
    %cst_12 = arith.constant 1.000000e+00 : f32
    %20 = vector.broadcast %cst_12 : f32 to vector<16x128xf32>
    %21 = arith.addf %20, %19 : vector<16x128xf32>
    %22 = arith.divf %20, %21 : vector<16x128xf32>
    %23 = vector.extract_strided_slice %16 {offsets = [0, 128], sizes = [16, 128], strides = [1, 1]} : vector<16x512xf32> to vector<16x128xf32>
    %24 = arith.negf %23 : vector<16x128xf32>
    %25 = math.exp %24 : vector<16x128xf32>
    %cst_13 = arith.constant 1.000000e+00 : f32
    %26 = vector.broadcast %cst_13 : f32 to vector<16x128xf32>
    %27 = arith.addf %26, %25 : vector<16x128xf32>
    %28 = arith.divf %26, %27 : vector<16x128xf32>
    %29 = vector.extract_strided_slice %16 {offsets = [0, 256], sizes = [16, 128], strides = [1, 1]} : vector<16x512xf32> to vector<16x128xf32>
    %30 = vector.extract_strided_slice %16 {offsets = [0, 384], sizes = [16, 128], strides = [1, 1]} : vector<16x512xf32> to vector<16x128xf32>
    %31 = arith.mulf %22, %30 : vector<16x128xf32>
    %32 = arith.addf %29, %31 : vector<16x128xf32>
    %33 = math.tanh %32 : vector<16x128xf32>
    %cst_14 = arith.constant 1.000000e+00 : f32
    %34 = vector.broadcast %cst_14 : f32 to vector<16x128xf32>
    %35 = arith.subf %34, %28 : vector<16x128xf32>
    %36 = arith.mulf %35, %33 : vector<16x128xf32>
    %37 = arith.mulf %28, %3 : vector<16x128xf32>
    %38 = arith.addf %36, %37 : vector<16x128xf32>
    %c0_15 = arith.constant 0 : index
    %c0_16 = arith.constant 0 : index
    %39 = vector.load %arg11[%c0_15, %c0_16] : memref<16x128xf32, #tpu.memory_space<vmem>>, vector<16x128xf32>
    tpu.vector_store %arg11[%c0_15, %c0_16], %38 {strides = array<i32>} : memref<16x128xf32, #tpu.memory_space<vmem>>, vector<16x128xf32>,
    %c1_i32 = arith.constant 1 : i32
    %c0_17 = arith.constant 0 : index
    %c0_18 = arith.constant 0 : index
    %40 = vector.load %arg11[%c0_17, %c0_18] : memref<16x128xf32, #tpu.memory_space<vmem>>, vector<16x128xf32>
    %41 = arith.truncf %40 : vector<16x128xf32> to vector<16x128xbf16>
    %cst_19 = arith.constant dense<0.000000e+00> : vector<16x128xf32>
    %42 = tpu.matmul %2, %41, %cst_19 {dimension_numbers = #tpu.dot_dimension_numbers<[1], [0], [0], [1], [0, 0, 1, 1], [], []>} : vector<16x16xbf16>, vector<16x128xbf16>, vector<16x128xf32> -> vector<16x128xf32>
    %43 = arith.truncf %42 : vector<16x128xf32> to vector<16x128xbf16>
    %44 = tpu.concatenate %43, %41 in 1 : vector<16x128xbf16>, vector<16x128xbf16> -> vector<16x256xbf16>
    %45 = arith.index_cast %c1_i32 : i32 to index
    %c0_20 = arith.constant 0 : index
    %c0_21 = arith.constant 0 : index
    %46 = vector.load %arg2[%45, %c0_20, %c0_21] : memref<5x256x512xbf16, #tpu.memory_space<vmem>>, vector<1x256x512xbf16>
    %47 = vector.shape_cast %46 : vector<1x256x512xbf16> to vector<256x512xbf16>
    %cst_22 = arith.constant dense<0.000000e+00> : vector<16x512xf32>
    %48 = tpu.matmul %44, %47, %cst_22 {dimension_numbers = #tpu.dot_dimension_numbers<[1], [0], [0], [1], [0, 0, 1, 1], [], []>} : vector<16x256xbf16>, vector<256x512xbf16>, vector<16x512xf32> -> vector<16x512xf32>
    %49 = arith.index_cast %c1_i32 : i32 to index
    %c0_23 = arith.constant 0 : index
    %c0_24 = arith.constant 0 : index
    %50 = vector.load %arg3[%49, %c0_23, %c0_24] : memref<5x1x512xf32, #tpu.memory_space<vmem>>, vector<1x1x512xf32>
    %51 = vector.shape_cast %50 : vector<1x1x512xf32> to vector<1x512xf32>
    %52 = vector.broadcast %51 : vector<1x512xf32> to vector<16x512xf32>
    %53 = arith.addf %48, %52 : vector<16x512xf32>
    %54 = vector.extract_strided_slice %53 {offsets = [0, 0], sizes = [16, 128], strides = [1, 1]} : vector<16x512xf32> to vector<16x128xf32>
    %55 = arith.negf %54 : vector<16x128xf32>
    %56 = math.exp %55 : vector<16x128xf32>
    %cst_25 = arith.constant 1.000000e+00 : f32
    %57 = vector.broadcast %cst_25 : f32 to vector<16x128xf32>
    %58 = arith.addf %57, %56 : vector<16x128xf32>
    %59 = arith.divf %57, %58 : vector<16x128xf32>
    %60 = vector.extract_strided_slice %53 {offsets = [0, 128], sizes = [16, 128], strides = [1, 1]} : vector<16x512xf32> to vector<16x128xf32>
    %61 = arith.negf %60 : vector<16x128xf32>
    %62 = math.exp %61 : vector<16x128xf32>
    %cst_26 = arith.constant 1.000000e+00 : f32
    %63 = vector.broadcast %cst_26 : f32 to vector<16x128xf32>
    %64 = arith.addf %63, %62 : vector<16x128xf32>
    %65 = arith.divf %63, %64 : vector<16x128xf32>
    %66 = vector.extract_strided_slice %53 {offsets = [0, 256], sizes = [16, 128], strides = [1, 1]} : vector<16x512xf32> to vector<16x128xf32>
    %67 = vector.extract_strided_slice %53 {offsets = [0, 384], sizes = [16, 128], strides = [1, 1]} : vector<16x512xf32> to vector<16x128xf32>
    %68 = arith.mulf %59, %67 : vector<16x128xf32>
    %69 = arith.addf %66, %68 : vector<16x128xf32>
    %70 = math.tanh %69 : vector<16x128xf32>
    %cst_27 = arith.constant 1.000000e+00 : f32
    %71 = vector.broadcast %cst_27 : f32 to vector<16x128xf32>
    %72 = arith.subf %71, %65 : vector<16x128xf32>
    %73 = arith.mulf %72, %70 : vector<16x128xf32>
    %74 = arith.mulf %65, %40 : vector<16x128xf32>
    %75 = arith.addf %73, %74 : vector<16x128xf32>
    %c0_28 = arith.constant 0 : index
    %c0_29 = arith.constant 0 : index
    %76 = vector.load %arg11[%c0_28, %c0_29] : memref<16x128xf32, #tpu.memory_space<vmem>>, vector<16x128xf32>
    tpu.vector_store %arg11[%c0_28, %c0_29], %75 {strides = array<i32>} : memref<16x128xf32, #tpu.memory_space<vmem>>, vector<16x128xf32>,
    %c2_i32 = arith.constant 2 : i32
    %c0_30 = arith.constant 0 : index
    %c0_31 = arith.constant 0 : index
    %77 = vector.load %arg11[%c0_30, %c0_31] : memref<16x128xf32, #tpu.memory_space<vmem>>, vector<16x128xf32>
    %78 = arith.truncf %77 : vector<16x128xf32> to vector<16x128xbf16>
    %cst_32 = arith.constant dense<0.000000e+00> : vector<16x128xf32>
    %79 = tpu.matmul %2, %78, %cst_32 {dimension_numbers = #tpu.dot_dimension_numbers<[1], [0], [0], [1], [0, 0, 1, 1], [], []>} : vector<16x16xbf16>, vector<16x128xbf16>, vector<16x128xf32> -> vector<16x128xf32>
    %80 = arith.truncf %79 : vector<16x128xf32> to vector<16x128xbf16>
    %81 = tpu.concatenate %80, %78 in 1 : vector<16x128xbf16>, vector<16x128xbf16> -> vector<16x256xbf16>
    %82 = arith.index_cast %c2_i32 : i32 to index
    %c0_33 = arith.constant 0 : index
    %c0_34 = arith.constant 0 : index
    %83 = vector.load %arg2[%82, %c0_33, %c0_34] : memref<5x256x512xbf16, #tpu.memory_space<vmem>>, vector<1x256x512xbf16>
    %84 = vector.shape_cast %83 : vector<1x256x512xbf16> to vector<256x512xbf16>
    %cst_35 = arith.constant dense<0.000000e+00> : vector<16x512xf32>
    %85 = tpu.matmul %81, %84, %cst_35 {dimension_numbers = #tpu.dot_dimension_numbers<[1], [0], [0], [1], [0, 0, 1, 1], [], []>} : vector<16x256xbf16>, vector<256x512xbf16>, vector<16x512xf32> -> vector<16x512xf32>
    %86 = arith.index_cast %c2_i32 : i32 to index
    %c0_36 = arith.constant 0 : index
    %c0_37 = arith.constant 0 : index
    %87 = vector.load %arg3[%86, %c0_36, %c0_37] : memref<5x1x512xf32, #tpu.memory_space<vmem>>, vector<1x1x512xf32>
    %88 = vector.shape_cast %87 : vector<1x1x512xf32> to vector<1x512xf32>
    %89 = vector.broadcast %88 : vector<1x512xf32> to vector<16x512xf32>
    %90 = arith.addf %85, %89 : vector<16x512xf32>
    %91 = vector.extract_strided_slice %90 {offsets = [0, 0], sizes = [16, 128], strides = [1, 1]} : vector<16x512xf32> to vector<16x128xf32>
    %92 = arith.negf %91 : vector<16x128xf32>
    %93 = math.exp %92 : vector<16x128xf32>
    %cst_38 = arith.constant 1.000000e+00 : f32
    %94 = vector.broadcast %cst_38 : f32 to vector<16x128xf32>
    %95 = arith.addf %94, %93 : vector<16x128xf32>
    %96 = arith.divf %94, %95 : vector<16x128xf32>
    %97 = vector.extract_strided_slice %90 {offsets = [0, 128], sizes = [16, 128], strides = [1, 1]} : vector<16x512xf32> to vector<16x128xf32>
    %98 = arith.negf %97 : vector<16x128xf32>
    %99 = math.exp %98 : vector<16x128xf32>
    %cst_39 = arith.constant 1.000000e+00 : f32
    %100 = vector.broadcast %cst_39 : f32 to vector<16x128xf32>
    %101 = arith.addf %100, %99 : vector<16x128xf32>
    %102 = arith.divf %100, %101 : vector<16x128xf32>
    %103 = vector.extract_strided_slice %90 {offsets = [0, 256], sizes = [16, 128], strides = [1, 1]} : vector<16x512xf32> to vector<16x128xf32>
    %104 = vector.extract_strided_slice %90 {offsets = [0, 384], sizes = [16, 128], strides = [1, 1]} : vector<16x512xf32> to vector<16x128xf32>
    %105 = arith.mulf %96, %104 : vector<16x128xf32>
    %106 = arith.addf %103, %105 : vector<16x128xf32>
    %107 = math.tanh %106 : vector<16x128xf32>
    %cst_40 = arith.constant 1.000000e+00 : f32
    %108 = vector.broadcast %cst_40 : f32 to vector<16x128xf32>
    %109 = arith.subf %108, %102 : vector<16x128xf32>
    %110 = arith.mulf %109, %107 : vector<16x128xf32>
    %111 = arith.mulf %102, %77 : vector<16x128xf32>
    %112 = arith.addf %110, %111 : vector<16x128xf32>
    %c0_41 = arith.constant 0 : index
    %c0_42 = arith.constant 0 : index
    %113 = vector.load %arg11[%c0_41, %c0_42] : memref<16x128xf32, #tpu.memory_space<vmem>>, vector<16x128xf32>
    tpu.vector_store %arg11[%c0_41, %c0_42], %112 {strides = array<i32>} : memref<16x128xf32, #tpu.memory_space<vmem>>, vector<16x128xf32>,
    %c3_i32 = arith.constant 3 : i32
    %c0_43 = arith.constant 0 : index
    %c0_44 = arith.constant 0 : index
    %114 = vector.load %arg11[%c0_43, %c0_44] : memref<16x128xf32, #tpu.memory_space<vmem>>, vector<16x128xf32>
    %115 = arith.truncf %114 : vector<16x128xf32> to vector<16x128xbf16>
    %cst_45 = arith.constant dense<0.000000e+00> : vector<16x128xf32>
    %116 = tpu.matmul %2, %115, %cst_45 {dimension_numbers = #tpu.dot_dimension_numbers<[1], [0], [0], [1], [0, 0, 1, 1], [], []>} : vector<16x16xbf16>, vector<16x128xbf16>, vector<16x128xf32> -> vector<16x128xf32>
    %117 = arith.truncf %116 : vector<16x128xf32> to vector<16x128xbf16>
    %118 = tpu.concatenate %117, %115 in 1 : vector<16x128xbf16>, vector<16x128xbf16> -> vector<16x256xbf16>
    %119 = arith.index_cast %c3_i32 : i32 to index
    %c0_46 = arith.constant 0 : index
    %c0_47 = arith.constant 0 : index
    %120 = vector.load %arg2[%119, %c0_46, %c0_47] : memref<5x256x512xbf16, #tpu.memory_space<vmem>>, vector<1x256x512xbf16>
    %121 = vector.shape_cast %120 : vector<1x256x512xbf16> to vector<256x512xbf16>
    %cst_48 = arith.constant dense<0.000000e+00> : vector<16x512xf32>
    %122 = tpu.matmul %118, %121, %cst_48 {dimension_numbers = #tpu.dot_dimension_numbers<[1], [0], [0], [1], [0, 0, 1, 1], [], []>} : vector<16x256xbf16>, vector<256x512xbf16>, vector<16x512xf32> -> vector<16x512xf32>
    %123 = arith.index_cast %c3_i32 : i32 to index
    %c0_49 = arith.constant 0 : index
    %c0_50 = arith.constant 0 : index
    %124 = vector.load %arg3[%123, %c0_49, %c0_50] : memref<5x1x512xf32, #tpu.memory_space<vmem>>, vector<1x1x512xf32>
    %125 = vector.shape_cast %124 : vector<1x1x512xf32> to vector<1x512xf32>
    %126 = vector.broadcast %125 : vector<1x512xf32> to vector<16x512xf32>
    %127 = arith.addf %122, %126 : vector<16x512xf32>
    %128 = vector.extract_strided_slice %127 {offsets = [0, 0], sizes = [16, 128], strides = [1, 1]} : vector<16x512xf32> to vector<16x128xf32>
    %129 = arith.negf %128 : vector<16x128xf32>
    %130 = math.exp %129 : vector<16x128xf32>
    %cst_51 = arith.constant 1.000000e+00 : f32
    %131 = vector.broadcast %cst_51 : f32 to vector<16x128xf32>
    %132 = arith.addf %131, %130 : vector<16x128xf32>
    %133 = arith.divf %131, %132 : vector<16x128xf32>
    %134 = vector.extract_strided_slice %127 {offsets = [0, 128], sizes = [16, 128], strides = [1, 1]} : vector<16x512xf32> to vector<16x128xf32>
    %135 = arith.negf %134 : vector<16x128xf32>
    %136 = math.exp %135 : vector<16x128xf32>
    %cst_52 = arith.constant 1.000000e+00 : f32
    %137 = vector.broadcast %cst_52 : f32 to vector<16x128xf32>
    %138 = arith.addf %137, %136 : vector<16x128xf32>
    %139 = arith.divf %137, %138 : vector<16x128xf32>
    %140 = vector.extract_strided_slice %127 {offsets = [0, 256], sizes = [16, 128], strides = [1, 1]} : vector<16x512xf32> to vector<16x128xf32>
    %141 = vector.extract_strided_slice %127 {offsets = [0, 384], sizes = [16, 128], strides = [1, 1]} : vector<16x512xf32> to vector<16x128xf32>
    %142 = arith.mulf %133, %141 : vector<16x128xf32>
    %143 = arith.addf %140, %142 : vector<16x128xf32>
    %144 = math.tanh %143 : vector<16x128xf32>
    %cst_53 = arith.constant 1.000000e+00 : f32
    %145 = vector.broadcast %cst_53 : f32 to vector<16x128xf32>
    %146 = arith.subf %145, %139 : vector<16x128xf32>
    %147 = arith.mulf %146, %144 : vector<16x128xf32>
    %148 = arith.mulf %139, %114 : vector<16x128xf32>
    %149 = arith.addf %147, %148 : vector<16x128xf32>
    %c0_54 = arith.constant 0 : index
    %c0_55 = arith.constant 0 : index
    %150 = vector.load %arg11[%c0_54, %c0_55] : memref<16x128xf32, #tpu.memory_space<vmem>>, vector<16x128xf32>
    tpu.vector_store %arg11[%c0_54, %c0_55], %149 {strides = array<i32>} : memref<16x128xf32, #tpu.memory_space<vmem>>, vector<16x128xf32>,
    %c4_i32 = arith.constant 4 : i32
    %c0_56 = arith.constant 0 : index
    %c0_57 = arith.constant 0 : index
    %151 = vector.load %arg11[%c0_56, %c0_57] : memref<16x128xf32, #tpu.memory_space<vmem>>, vector<16x128xf32>
    %152 = arith.truncf %151 : vector<16x128xf32> to vector<16x128xbf16>
    %cst_58 = arith.constant dense<0.000000e+00> : vector<16x128xf32>
    %153 = tpu.matmul %2, %152, %cst_58 {dimension_numbers = #tpu.dot_dimension_numbers<[1], [0], [0], [1], [0, 0, 1, 1], [], []>} : vector<16x16xbf16>, vector<16x128xbf16>, vector<16x128xf32> -> vector<16x128xf32>
    %154 = arith.truncf %153 : vector<16x128xf32> to vector<16x128xbf16>
    %155 = tpu.concatenate %154, %152 in 1 : vector<16x128xbf16>, vector<16x128xbf16> -> vector<16x256xbf16>
    %156 = arith.index_cast %c4_i32 : i32 to index
    %c0_59 = arith.constant 0 : index
    %c0_60 = arith.constant 0 : index
    %157 = vector.load %arg2[%156, %c0_59, %c0_60] : memref<5x256x512xbf16, #tpu.memory_space<vmem>>, vector<1x256x512xbf16>
    %158 = vector.shape_cast %157 : vector<1x256x512xbf16> to vector<256x512xbf16>
    %cst_61 = arith.constant dense<0.000000e+00> : vector<16x512xf32>
    %159 = tpu.matmul %155, %158, %cst_61 {dimension_numbers = #tpu.dot_dimension_numbers<[1], [0], [0], [1], [0, 0, 1, 1], [], []>} : vector<16x256xbf16>, vector<256x512xbf16>, vector<16x512xf32> -> vector<16x512xf32>
    %160 = arith.index_cast %c4_i32 : i32 to index
    %c0_62 = arith.constant 0 : index
    %c0_63 = arith.constant 0 : index
    %161 = vector.load %arg3[%160, %c0_62, %c0_63] : memref<5x1x512xf32, #tpu.memory_space<vmem>>, vector<1x1x512xf32>
    %162 = vector.shape_cast %161 : vector<1x1x512xf32> to vector<1x512xf32>
    %163 = vector.broadcast %162 : vector<1x512xf32> to vector<16x512xf32>
    %164 = arith.addf %159, %163 : vector<16x512xf32>
    %165 = vector.extract_strided_slice %164 {offsets = [0, 0], sizes = [16, 128], strides = [1, 1]} : vector<16x512xf32> to vector<16x128xf32>
    %166 = arith.negf %165 : vector<16x128xf32>
    %167 = math.exp %166 : vector<16x128xf32>
    %cst_64 = arith.constant 1.000000e+00 : f32
    %168 = vector.broadcast %cst_64 : f32 to vector<16x128xf32>
    %169 = arith.addf %168, %167 : vector<16x128xf32>
    %170 = arith.divf %168, %169 : vector<16x128xf32>
    %171 = vector.extract_strided_slice %164 {offsets = [0, 128], sizes = [16, 128], strides = [1, 1]} : vector<16x512xf32> to vector<16x128xf32>
    %172 = arith.negf %171 : vector<16x128xf32>
    %173 = math.exp %172 : vector<16x128xf32>
    %cst_65 = arith.constant 1.000000e+00 : f32
    %174 = vector.broadcast %cst_65 : f32 to vector<16x128xf32>
    %175 = arith.addf %174, %173 : vector<16x128xf32>
    %176 = arith.divf %174, %175 : vector<16x128xf32>
    %177 = vector.extract_strided_slice %164 {offsets = [0, 256], sizes = [16, 128], strides = [1, 1]} : vector<16x512xf32> to vector<16x128xf32>
    %178 = vector.extract_strided_slice %164 {offsets = [0, 384], sizes = [16, 128], strides = [1, 1]} : vector<16x512xf32> to vector<16x128xf32>
    %179 = arith.mulf %170, %178 : vector<16x128xf32>
    %180 = arith.addf %177, %179 : vector<16x128xf32>
    %181 = math.tanh %180 : vector<16x128xf32>
    %cst_66 = arith.constant 1.000000e+00 : f32
    %182 = vector.broadcast %cst_66 : f32 to vector<16x128xf32>
    %183 = arith.subf %182, %176 : vector<16x128xf32>
    %184 = arith.mulf %183, %181 : vector<16x128xf32>
    %185 = arith.mulf %176, %151 : vector<16x128xf32>
    %186 = arith.addf %184, %185 : vector<16x128xf32>
    %c0_67 = arith.constant 0 : index
    %c0_68 = arith.constant 0 : index
    %187 = vector.load %arg11[%c0_67, %c0_68] : memref<16x128xf32, #tpu.memory_space<vmem>>, vector<16x128xf32>
    tpu.vector_store %arg11[%c0_67, %c0_68], %186 {strides = array<i32>} : memref<16x128xf32, #tpu.memory_space<vmem>>, vector<16x128xf32>,
    %c5_i32 = arith.constant 5 : i32
    %c0_69 = arith.constant 0 : index
    %c0_70 = arith.constant 0 : index
    %188 = vector.load %arg11[%c0_69, %c0_70] : memref<16x128xf32, #tpu.memory_space<vmem>>, vector<16x128xf32>
    %189 = arith.truncf %188 : vector<16x128xf32> to vector<16x128xbf16>
    %c0_71 = arith.constant 0 : index
    %c0_72 = arith.constant 0 : index
    %190 = vector.load %arg5[%c0_71, %c0_72] : memref<128x256xbf16, #tpu.memory_space<vmem>>, vector<128x256xbf16>
    %cst_73 = arith.constant dense<0.000000e+00> : vector<16x256xf32>
    %191 = tpu.matmul %189, %190, %cst_73 {dimension_numbers = #tpu.dot_dimension_numbers<[1], [0], [0], [1], [0, 0, 1, 1], [], []>} : vector<16x128xbf16>, vector<128x256xbf16>, vector<16x256xf32> -> vector<16x256xf32>
    %c0_74 = arith.constant 0 : index
    %c0_75 = arith.constant 0 : index
    %192 = vector.load %arg6[%c0_74, %c0_75] : memref<1x256xf32, #tpu.memory_space<vmem>>, vector<1x256xf32>
    %193 = vector.broadcast %192 : vector<1x256xf32> to vector<16x256xf32>
    %194 = arith.addf %191, %193 : vector<16x256xf32>
    %195 = math.tanh %194 : vector<16x256xf32>
    %c0_76 = arith.constant 0 : index
    %c0_77 = arith.constant 0 : index
    %196 = vector.load %arg7[%c0_76, %c0_77] : memref<1x256xf32, #tpu.memory_space<vmem>>, vector<1x256xf32>
    %197 = vector.broadcast %196 : vector<1x256xf32> to vector<16x256xf32>
    %198 = arith.mulf %195, %197 : vector<16x256xf32>
    %cst_78 = arith.constant dense<0.000000e+00> : vector<16xf32>
    %199 = vector.multi_reduction <add>, %198, %cst_78 [1] : vector<16x256xf32> to vector<16xf32>
    %200 = vector.shape_cast %199 : vector<16xf32> to vector<16x1xf32>
    %c0_79 = arith.constant 0 : index
    %c0_80 = arith.constant 0 : index
    %201 = memref.load %arg8[%c0_79, %c0_80] : memref<1x1xf32, #tpu.memory_space<smem>>
    %202 = vector.broadcast %201 : f32 to vector<16x1xf32>
    %203 = arith.addf %200, %202 : vector<16x1xf32>
    %204 = tpu.iota {dimensions = array<i32: 1>} : vector<16x128xi32>
    %c0_81 = arith.constant 0 : index
    %c0_82 = arith.constant 0 : index
    %205 = vector.load %arg4[%c0_81, %c0_82] : memref<16x1xi32, #tpu.memory_space<vmem>>, vector<16x1xi32>
    %206 = vector.broadcast %205 : vector<16x1xi32> to vector<16x128xi32>
    %207 = arith.cmpi eq, %206, %204 : vector<16x128xi32>
    %208 = arith.extui %207 : vector<16x128xi1> to vector<16x128xi32>
    %209 = arith.sitofp %208 : vector<16x128xi32> to vector<16x128xf32>
    %cst_83 = arith.constant 0.000000e+00 : f32
    %210 = vector.broadcast %cst_83 : f32 to vector<16x128xf32>
    %211 = arith.cmpf ogt, %209, %210 : vector<16x128xf32>
    %cst_84 = arith.constant -1.000000e+30 : f32
    %212 = vector.shape_cast %203 : vector<16x1xf32> to vector<16x1xf32>
    %213 = vector.broadcast %212 : vector<16x1xf32> to vector<16x128xf32>
    %214 = vector.broadcast %cst_84 : f32 to vector<16x128xf32>
    %215 = arith.select %211, %213, %214 : vector<16x128xi1>, vector<16x128xf32>
    %cst_85 = arith.constant dense<0xFF800000> : vector<128xf32>
    %216 = vector.multi_reduction <maximumf>, %215, %cst_85 [0] : vector<16x128xf32> to vector<128xf32>
    %217 = vector.shape_cast %216 : vector<128xf32> to vector<1x128xf32>
    %218 = vector.broadcast %217 : vector<1x128xf32> to vector<16x128xf32>
    %219 = arith.mulf %209, %218 : vector<16x128xf32>
    %cst_86 = arith.constant dense<0.000000e+00> : vector<16xf32>
    %220 = vector.multi_reduction <add>, %219, %cst_86 [1] : vector<16x128xf32> to vector<16xf32>
    %221 = vector.shape_cast %220 : vector<16xf32> to vector<16x1xf32>
    %222 = arith.subf %203, %221 : vector<16x1xf32>
    %223 = math.exp %222 : vector<16x1xf32>
    %224 = vector.broadcast %223 : vector<16x1xf32> to vector<16x128xf32>
    %225 = arith.mulf %209, %224 : vector<16x128xf32>
    %cst_87 = arith.constant dense<0.000000e+00> : vector<128xf32>
    %226 = vector.multi_reduction <add>, %225, %cst_87 [0] : vector<16x128xf32> to vector<128xf32>
    %227 = vector.shape_cast %226 : vector<128xf32> to vector<1x128xf32>
    %228 = vector.broadcast %227 : vector<1x128xf32> to vector<16x128xf32>
    %229 = arith.mulf %209, %228 : vector<16x128xf32>
    %cst_88 = arith.constant dense<0.000000e+00> : vector<16xf32>
    %230 = vector.multi_reduction <add>, %229, %cst_88 [1] : vector<16x128xf32> to vector<16xf32>
    %231 = vector.shape_cast %230 : vector<16xf32> to vector<16x1xf32>
    %cst_89 = arith.constant 1.000000e-16 : f32
    %232 = vector.broadcast %cst_89 : f32 to vector<16x1xf32>
    %233 = arith.addf %231, %232 : vector<16x1xf32>
    %234 = arith.divf %223, %233 : vector<16x1xf32>
    %c0_90 = arith.constant 0 : index
    %c0_91 = arith.constant 0 : index
    %235 = vector.load %arg10[%c0_90, %c0_91] : memref<16x1xf32, #tpu.memory_space<vmem>>, vector<16x1xf32>
    tpu.vector_store %arg10[%c0_90, %c0_91], %234 {strides = array<i32>} : memref<16x1xf32, #tpu.memory_space<vmem>>, vector<16x1xf32>,
    %236 = vector.broadcast %234 : vector<16x1xf32> to vector<16x128xf32>
    %237 = arith.mulf %236, %188 : vector<16x128xf32>
    %238 = arith.truncf %237 : vector<16x128xf32> to vector<16x128xbf16>
    %239 = arith.truncf %209 : vector<16x128xf32> to vector<16x128xbf16>
    %cst_92 = arith.constant dense<0.000000e+00> : vector<128x128xf32>
    %240 = tpu.matmul %239, %238, %cst_92 {dimension_numbers = #tpu.dot_dimension_numbers<[0], [0], [1], [1], [0, 1, 1, 1], [], []>} : vector<16x128xbf16>, vector<16x128xbf16>, vector<128x128xf32> -> vector<128x128xf32>
    %241 = vector.extract_strided_slice %240 {offsets = [0, 0], sizes = [8, 128], strides = [1, 1]} : vector<128x128xf32> to vector<8x128xf32>
    %c0_93 = arith.constant 0 : index
    %c0_94 = arith.constant 0 : index
    %242 = vector.load %arg9[%c0_93, %c0_94] : memref<8x128xf32, #tpu.memory_space<vmem>>, vector<8x128xf32>
    tpu.vector_store %arg9[%c0_93, %c0_94], %241 {strides = array<i32>} : memref<8x128xf32, #tpu.memory_space<vmem>>, vector<8x128xf32>,
    return
  }
}

</mosaic_0001>

<llo_original>
// kernel: tpu_custom_call.1
$region0: #{tpu_custom_call.1}
  #allocation0 [shape = 'u32[]', space=smem, size = 0x4, offset = 0x4, fixed_abs, tag = 'smem constant byte address 0x4 - core index']
  #allocation1 [shape = 'u32[72,128]{1,0:T(1,128)}', space=vmem, size = 0x9000, scoped, tag = 'internal scratch']
  #allocation2 [shape = 'f32[16,128]{1,0:T(8,128)}', space=vmem, size = 0x2000, scoped, tag = 'scratch operand']
  #allocation3 [shape = 'f32[1,1]{1,0:T(1,128)S(6)}', space=smem, size = 0x200, scoped, tag = 'scoped memory for tpu_custom_call.1']
  %s0 = inlined_call_operand.hbm [shape: f32[16,128], index: 0, kind: input, shape index: {}]
  %s1 = inlined_call_operand.hbm [shape: bf16[16,16], index: 1, kind: input, shape index: {}]
  %s2 = inlined_call_operand.hbm [shape: bf16[5,256,512], index: 2, kind: input, shape index: {}]
  %s3 = inlined_call_operand.hbm [shape: f32[5,1,512], index: 3, kind: input, shape index: {}]
  %s4 = inlined_call_operand.vmem [shape: s32[16,1], index: 4, kind: input, shape index: {}]
  %s5 = inlined_call_operand.hbm [shape: bf16[128,256], index: 5, kind: input, shape index: {}]
  %s6 = inlined_call_operand.hbm [shape: f32[1,256], index: 6, kind: input, shape index: {}]
  %s7 = inlined_call_operand.hbm [shape: f32[1,256], index: 7, kind: input, shape index: {}]
  %s8 = inlined_call_operand.<no memory space> [shape: f32[1,1], index: 8, kind: input, shape index: {}]
  %s9 = inlined_call_operand.hbm [shape: f32[8,128], index: 9, kind: output, shape index: {0}]
  %s10 = inlined_call_operand.vmem [shape: f32[16,1], index: 10, kind: output, shape index: {1}]
  %11 = xla_tuple %s9, %s10
  %s12 = sld [smem:[#allocation0]]
  $region82: #{tpu_custom_call.1} parent=0
    _
  %s14 = ssub.s32 1, %s12
  %s15 = scalar_select 0, %s14, %s12
  %16 = sst [smem:[#allocation3]] %s8
  $region1: #{tpu_custom_call.1} parent=0
    #allocation4 [shape = 'u8[8192]{0}', space=vmem, size = 0x2000, scoped, tag = 'input window, operand 0, single buffered']
    #allocation5 [shape = 's32[1]{0}', space=sflag, size = 0x4, scoped, tag = 'scoped memory for tpu_custom_call.1']
    #allocation6 [shape = 's32[1]{0}', space=sflag, size = 0x4, scoped, tag = 'scoped memory for tpu_custom_call.1']
    #allocation7 [shape = 'u8[4096]{0}', space=vmem, size = 0x1000, scoped, tag = 'input window, operand 1, single buffered']
    #allocation8 [shape = 's32[1]{0}', space=sflag, size = 0x4, scoped, tag = 'scoped memory for tpu_custom_call.1']
    #allocation9 [shape = 'u8[1310720]{0}', space=vmem, size = 0x140000, scoped, tag = 'input window, operand 2, single buffered']
    #allocation10 [shape = 'u8[10240]{0}', space=vmem, size = 0x2800, scoped, tag = 'input window, operand 3, single buffered']
    #allocation11 [shape = 's32[1]{0}', space=sflag, size = 0x4, scoped, tag = 'scoped memory for tpu_custom_call.1']
    #allocation12 [shape = 'u8[65536]{0}', space=vmem, size = 0x10000, scoped, tag = 'input window, operand 5, single buffered']
    #allocation13 [shape = 'u8[1024]{0}', space=vmem, size = 0x400, scoped, tag = 'input window, operand 6, single buffered']
    #allocation14 [shape = 's32[1]{0}', space=sflag, size = 0x4, scoped, tag = 'scoped memory for tpu_custom_call.1']
    #allocation15 [shape = 'u8[1024]{0}', space=vmem, size = 0x400, scoped, tag = 'input window, operand 7, single buffered']
    #allocation16 [shape = 'u8[4096]{0}', space=vmem, size = 0x1000, scoped, tag = 'output window, operand 0, single buffered']
    %17 = vsyncpa [#allocation5], 0
    %18 = vsyncpa [#allocation8], 0
    %19 = vsyncpa [#allocation11], 0
    %20 = vsyncpa [#allocation14], 0
    %21 = vsyncpa [#allocation6], 0
    // Predicated region
    $region2: #{tpu_custom_call.1} parent=1 // pred_check
      _
    $region3: #{tpu_custom_call.1} parent=1 // pred_check_branch
      %23 = sbr.rel (0) target = $region5
    $region4: #{tpu_custom_call.1} parent=1 // pred_region
      %25 = vsyncadd [#allocation5], 0
      %s26 = sshll.u32 %s0, 4
      %s27 = int_to_ptr.hbm [resolvable:$true] %s26
      %s28 = sshll.u32 [#allocation4], 4
      %s29 = int_to_ptr.vmem [resolvable:$true] %s28
      %34 = dma.hbm_to_vmem [thread:$0]  %s27, 256, %s29, [#allocation5], 128, 128, 8
    $region5: #{tpu_custom_call.1} parent=1 // pred_fallthru
      _
    // Predicated region
    $region6: #{tpu_custom_call.1} parent=1 // pred_check
      _
    $region7: #{tpu_custom_call.1} parent=1 // pred_check_branch
      %36 = sbr.rel (0) target = $region9
    $region8: #{tpu_custom_call.1} parent=1 // pred_region
      %38 = vsyncadd [#allocation8], 0
      %s39 = sshll.u32 %s1, 4
      %s40 = int_to_ptr.hbm [resolvable:$true] %s39
      %s41 = sshll.u32 [#allocation7], 4
      %s42 = int_to_ptr.vmem [resolvable:$true] %s41
      %47 = dma.hbm_to_vmem [thread:$0]  %s40, 128, %s42, [#allocation8], 64, 64, 4
    $region9: #{tpu_custom_call.1} parent=1 // pred_fallthru
      _
    // Predicated region
    $region10: #{tpu_custom_call.1} parent=1 // pred_check
      _
    $region11: #{tpu_custom_call.1} parent=1 // pred_check_branch
      %49 = sbr.rel (0) target = $region13
    $region12: #{tpu_custom_call.1} parent=1 // pred_region
      %51 = vsyncadd [#allocation8], 0
      %s52 = sshll.u32 %s2, 4
      %s53 = int_to_ptr.hbm [resolvable:$true] %s52
      %s54 = sshll.u32 [#allocation9], 4
      %s55 = int_to_ptr.vmem [resolvable:$true] %s54
      %60 = dma.hbm_to_vmem [thread:$0]  %s53, 40960, %s55, [#allocation8], 256, 256, 16
    $region13: #{tpu_custom_call.1} parent=1 // pred_fallthru
      _
    // Predicated region
    $region14: #{tpu_custom_call.1} parent=1 // pred_check
      _
    $region15: #{tpu_custom_call.1} parent=1 // pred_check_branch
      %62 = sbr.rel (0) target = $region17
    $region16: #{tpu_custom_call.1} parent=1 // pred_region
      %64 = vsyncadd [#allocation11], 0
      %s65 = sshll.u32 %s3, 4
      %s66 = int_to_ptr.hbm [resolvable:$true] %s65
      %s67 = sshll.u32 [#allocation10], 4
      %s68 = int_to_ptr.vmem [resolvable:$true] %s67
      %73 = dma.hbm_to_vmem [thread:$0]  %s66, 320, %s68, [#allocation11], 64, 64, 4
    $region17: #{tpu_custom_call.1} parent=1 // pred_fallthru
      _
    // Predicated region
    $region18: #{tpu_custom_call.1} parent=1 // pred_check
      _
    $region19: #{tpu_custom_call.1} parent=1 // pred_check_branch
      %75 = sbr.rel (0) target = $region21
    $region20: #{tpu_custom_call.1} parent=1 // pred_region
      _
    $region21: #{tpu_custom_call.1} parent=1 // pred_fallthru
      _
    // Predicated region
    $region22: #{tpu_custom_call.1} parent=1 // pred_check
      _
    $region23: #{tpu_custom_call.1} parent=1 // pred_check_branch
      %77 = sbr.rel (0) target = $region25
    $region24: #{tpu_custom_call.1} parent=1 // pred_region
      %79 = vsyncadd [#allocation11], 0
      %s80 = sshll.u32 %s5, 4
      %s81 = int_to_ptr.hbm [resolvable:$true] %s80
      %s82 = sshll.u32 [#allocation12], 4
      %s83 = int_to_ptr.vmem [resolvable:$true] %s82
      %88 = dma.hbm_to_vmem [thread:$0]  %s81, 2048, %s83, [#allocation11], 128, 128, 8
    $region25: #{tpu_custom_call.1} parent=1 // pred_fallthru
      _
    // Predicated region
    $region26: #{tpu_custom_call.1} parent=1 // pred_check
      _
    $region27: #{tpu_custom_call.1} parent=1 // pred_check_branch
      %90 = sbr.rel (0) target = $region29
    $region28: #{tpu_custom_call.1} parent=1 // pred_region
      %92 = vsyncadd [#allocation14], 0
      %s94 = sshll.u32 %s6, 4
      %s95 = int_to_ptr.hbm [resolvable:$true] %s94
      %s96 = sshll.u32 [#allocation13], 4
      %s97 = int_to_ptr.vmem [resolvable:$true] %s96
      %99 = dma.hbm_to_vmem [thread:$0]  %s95, 32, %s97, [#allocation14]
    $region29: #{tpu_custom_call.1} parent=1 // pred_fallthru
      _
    // Predicated region
    $region30: #{tpu_custom_call.1} parent=1 // pred_check
      _
    $region31: #{tpu_custom_call.1} parent=1 // pred_check_branch
      %101 = sbr.rel (0) target = $region33
    $region32: #{tpu_custom_call.1} parent=1 // pred_region
      %103 = vsyncadd [#allocation14], 0
      %s105 = sshll.u32 %s7, 4
      %s106 = int_to_ptr.hbm [resolvable:$true] %s105
      %s107 = sshll.u32 [#allocation15], 4
      %s108 = int_to_ptr.vmem [resolvable:$true] %s107
      %110 = dma.hbm_to_vmem [thread:$0]  %s106, 32, %s108, [#allocation14]
    $region33: #{tpu_custom_call.1} parent=1 // pred_fallthru
      _
    // Predicated region
    $region34: #{tpu_custom_call.1} parent=1 // pred_check
      _
    $region35: #{tpu_custom_call.1} parent=1 // pred_check_branch
      %112 = sbr.rel (0) target = $region37
    $region36: #{tpu_custom_call.1} parent=1 // pred_region
      _
    $region37: #{tpu_custom_call.1} parent=1 // pred_fallthru
      _
    // Predicated region
    $region38: #{tpu_custom_call.1} parent=1 // pred_check
      _
    $region39: #{tpu_custom_call.1} parent=1 // pred_check_branch
      %114 = sbr.rel (0) target = $region41
    $region40: #{tpu_custom_call.1} parent=1 // pred_region
      %116 = dma.done [#allocation5], 256
    $region41: #{tpu_custom_call.1} parent=1 // pred_fallthru
      _
    // Predicated region
    $region42: #{tpu_custom_call.1} parent=1 // pred_check
      _
    $region43: #{tpu_custom_call.1} parent=1 // pred_check_branch
      %118 = sbr.rel (0) target = $region45
    $region44: #{tpu_custom_call.1} parent=1 // pred_region
      %120 = dma.done [#allocation8], 128
    $region45: #{tpu_custom_call.1} parent=1 // pred_fallthru
      _
    // Predicated region
    $region46: #{tpu_custom_call.1} parent=1 // pred_check
      _
    $region47: #{tpu_custom_call.1} parent=1 // pred_check_branch
      %122 = sbr.rel (0) target = $region49
    $region48: #{tpu_custom_call.1} parent=1 // pred_region
      %124 = dma.done [#allocation8], 40960
    $region49: #{tpu_custom_call.1} parent=1 // pred_fallthru
      _
    // Predicated region
    $region50: #{tpu_custom_call.1} parent=1 // pred_check
      _
    $region51: #{tpu_custom_call.1} parent=1 // pred_check_branch
      %126 = sbr.rel (0) target = $region53
    $region52: #{tpu_custom_call.1} parent=1 // pred_region
      %128 = dma.done [#allocation11], 320
    $region53: #{tpu_custom_call.1} parent=1 // pred_fallthru
      _
    // Predicated region
    $region54: #{tpu_custom_call.1} parent=1 // pred_check
      _
    $region55: #{tpu_custom_call.1} parent=1 // pred_check_branch
      %130 = sbr.rel (0) target = $region57
    $region56: #{tpu_custom_call.1} parent=1 // pred_region
      %132 = dma.done [#allocation11], 2048
    $region57: #{tpu_custom_call.1} parent=1 // pred_fallthru
      _
    // Predicated region
    $region58: #{tpu_custom_call.1} parent=1 // pred_check
      _
    $region59: #{tpu_custom_call.1} parent=1 // pred_check_branch
      %134 = sbr.rel (0) target = $region61
    $region60: #{tpu_custom_call.1} parent=1 // pred_region
      %136 = dma.done [#allocation14], 32
    $region61: #{tpu_custom_call.1} parent=1 // pred_fallthru
      _
    // Predicated region
    $region62: #{tpu_custom_call.1} parent=1 // pred_check
      _
    $region63: #{tpu_custom_call.1} parent=1 // pred_check_branch
      %138 = sbr.rel (0) target = $region65
    $region64: #{tpu_custom_call.1} parent=1 // pred_region
      %140 = dma.done [#allocation14], 32
    $region65: #{tpu_custom_call.1} parent=1 // pred_fallthru
      _
    %v142 = vld [vmem:[#allocation4] sm:$0xff]
    %v143 = vld [vmem:[#allocation4 + $0x8] sm:$0xff]
    %144 = vst [vmem:[#allocation2] sm:$0xff] %v142
    %145 = vst [vmem:[#allocation2 + $0x8] sm:$0xff] %v143
    %v146 = vld [vmem:[#allocation7] sm:$0xf]
    %v147 = vld [vmem:[#allocation7 + $0x4] sm:$0xf]
    %v148 = vld [vmem:[#allocation2] sm:$0xff]
    %v149 = vld [vmem:[#allocation2 + $0x8] sm:$0xff]
    %v150 = vpack.c.bf16 %v148, %v148
    %v151 = vpack.c.bf16 %v149, %v149
    %v154 = vunpack.c.l.b16 %v146
    %v155 = vunpack.c.l.b16 %v147
    %v156 = vpack.c.b16 %v155, %v154
    %v159 = vunpack.c.l.b16 %v150
    %v160 = vunpack.c.l.b16 %v151
    %v161 = vpack.c.b16 %v160, %v159
    %vm163 = vcmask 130048
    %v165 = vsel %vm163, %v156, 0
    %167 = vmatpush.bf16.msra.mxu0 0
    %168 = vmatpush.bf16.msra.mxu0 0
    %169 = vmatpush.bf16.msra.mxu0 0
    %170 = vmatpush.bf16.msra.mxu0 0
    %171 = vmatpush.bf16.msra.mxu0 0
    %172 = vmatpush.bf16.msra.mxu0 0
    %173 = vmatpush.bf16.msra.mxu0 0
    %174 = vmatpush.bf16.msra.mxu0 %v161
    %175 = vmatmul.bf16.gmra.mxu0 %v165
    %v176 = vpop.f32.mrf.mxu0
    %v177 = vadd.f32 0.0, %v176
    %v178 = vpop.f32.mrf.mxu0
    %v179 = vadd.f32 0.0, %v178
    %180 = vdwg.mxu0
    %v181 = vpack.c.bf16 %v177, %v177
    %v182 = vpack.c.bf16 %v179, %v179
    %v185 = vunpack.c.l.b16 %v181
    %v186 = vunpack.c.l.b16 %v182
    %v187 = vpack.c.b16 %v186, %v185
    %v189 = vld [vmem:[#allocation9] sm:$0xff]
    %v190 = vld [vmem:[#allocation9 + $0x8] sm:$0xff]
    %v191 = vld [vmem:[#allocation9 + $0x10] sm:$0xff]
    %v192 = vld [vmem:[#allocation9 + $0x18] sm:$0xff]
    %v193 = vld [vmem:[#allocation9 + $0x20] sm:$0xff]
    %v194 = vld [vmem:[#allocation9 + $0x28] sm:$0xff]
    %v195 = vld [vmem:[#allocation9 + $0x30] sm:$0xff]
    %v196 = vld [vmem:[#allocation9 + $0x38] sm:$0xff]
    %v197 = vld [vmem:[#allocation9 + $0x40] sm:$0xff]
    %v198 = vld [vmem:[#allocation9 + $0x48] sm:$0xff]
    %v199 = vld [vmem:[#allocation9 + $0x50] sm:$0xff]
    %v200 = vld [vmem:[#allocation9 + $0x58] sm:$0xff]
    %v201 = vld [vmem:[#allocation9 + $0x60] sm:$0xff]
    %v202 = vld [vmem:[#allocation9 + $0x68] sm:$0xff]
    %v203 = vld [vmem:[#allocation9 + $0x70] sm:$0xff]
    %v204 = vld [vmem:[#allocation9 + $0x78] sm:$0xff]
    %v205 = vld [vmem:[#allocation9 + $0x80] sm:$0xff]
    %v206 = vld [vmem:[#allocation9 + $0x88] sm:$0xff]
    %v207 = vld [vmem:[#allocation9 + $0x90] sm:$0xff]
    %v208 = vld [vmem:[#allocation9 + $0x98] sm:$0xff]
    %v209 = vld [vmem:[#allocation9 + $0xa0] sm:$0xff]
    %v210 = vld [vmem:[#allocation9 + $0xa8] sm:$0xff]
    %v211 = vld [vmem:[#allocation9 + $0xb0] sm:$0xff]
    %v212 = vld [vmem:[#allocation9 + $0xb8] sm:$0xff]
    %v213 = vld [vmem:[#allocation9 + $0xc0] sm:$0xff]
    %v214 = vld [vmem:[#allocation9 + $0xc8] sm:$0xff]
    %v215 = vld [vmem:[#allocation9 + $0xd0] sm:$0xff]
    %v216 = vld [vmem:[#allocation9 + $0xd8] sm:$0xff]
    %v217 = vld [vmem:[#allocation9 + $0xe0] sm:$0xff]
    %v218 = vld [vmem:[#allocation9 + $0xe8] sm:$0xff]
    %v219 = vld [vmem:[#allocation9 + $0xf0] sm:$0xff]
    %v220 = vld [vmem:[#allocation9 + $0xf8] sm:$0xff]
    %v221 = vld [vmem:[#allocation9 + $0x100] sm:$0xff]
    %v222 = vld [vmem:[#allocation9 + $0x108] sm:$0xff]
    %v223 = vld [vmem:[#allocation9 + $0x110] sm:$0xff]
    %v224 = vld [vmem:[#allocation9 + $0x118] sm:$0xff]
    %v225 = vld [vmem:[#allocation9 + $0x120] sm:$0xff]
    %v226 = vld [vmem:[#allocation9 + $0x128] sm:$0xff]
    %v227 = vld [vmem:[#allocation9 + $0x130] sm:$0xff]
    %v228 = vld [vmem:[#allocation9 + $0x138] sm:$0xff]
    %v229 = vld [vmem:[#allocation9 + $0x140] sm:$0xff]
    %v230 = vld [vmem:[#allocation9 + $0x148] sm:$0xff]
    %v231 = vld [vmem:[#allocation9 + $0x150] sm:$0xff]
    %v232 = vld [vmem:[#allocation9 + $0x158] sm:$0xff]
    %v233 = vld [vmem:[#allocation9 + $0x160] sm:$0xff]
    %v234 = vld [vmem:[#allocation9 + $0x168] sm:$0xff]
    %v235 = vld [vmem:[#allocation9 + $0x170] sm:$0xff]
    %v236 = vld [vmem:[#allocation9 + $0x178] sm:$0xff]
    %v237 = vld [vmem:[#allocation9 + $0x180] sm:$0xff]
    %v238 = vld [vmem:[#allocation9 + $0x188] sm:$0xff]
    %v239 = vld [vmem:[#allocation9 + $0x190] sm:$0xff]
    %v240 = vld [vmem:[#allocation9 + $0x198] sm:$0xff]
    %v241 = vld [vmem:[#allocation9 + $0x1a0] sm:$0xff]
    %v242 = vld [vmem:[#allocation9 + $0x1a8] sm:$0xff]
    %v243 = vld [vmem:[#allocation9 + $0x1b0] sm:$0xff]
    %v244 = vld [vmem:[#allocation9 + $0x1b8] sm:$0xff]
    %v245 = vld [vmem:[#allocation9 + $0x1c0] sm:$0xff]
    %v246 = vld [vmem:[#allocation9 + $0x1c8] sm:$0xff]
    %v247 = vld [vmem:[#allocation9 + $0x1d0] sm:$0xff]
    %v248 = vld [vmem:[#allocation9 + $0x1d8] sm:$0xff]
    %v249 = vld [vmem:[#allocation9 + $0x1e0] sm:$0xff]
    %v250 = vld [vmem:[#allocation9 + $0x1e8] sm:$0xff]
    %v251 = vld [vmem:[#allocation9 + $0x1f0] sm:$0xff]
    %v252 = vld [vmem:[#allocation9 + $0x1f8] sm:$0xff]
    %v253 = vld [vmem:[#allocation10] sm:$0xf]
    %v255 = vperm.slane %v253, 0
    %v256 = vperm.slane %v253, 1
    %v257 = vperm.slane %v253, 2
    %v258 = vperm.slane %v253, 3
    %v327 = vunpack.c.l.b16 %v189
    %v328 = vunpack.c.h.b16 %v189
    %v329 = vunpack.c.l.b16 %v190
    %v330 = vunpack.c.h.b16 %v190
    %v331 = vunpack.c.l.b16 %v191
    %v332 = vunpack.c.h.b16 %v191
    %v333 = vunpack.c.l.b16 %v192
    %v334 = vunpack.c.h.b16 %v192
    %v335 = vunpack.c.l.b16 %v193
    %v336 = vunpack.c.h.b16 %v193
    %v337 = vunpack.c.l.b16 %v194
    %v338 = vunpack.c.h.b16 %v194
    %v339 = vunpack.c.l.b16 %v195
    %v340 = vunpack.c.h.b16 %v195
    %v341 = vunpack.c.l.b16 %v196
    %v342 = vunpack.c.h.b16 %v196
    %v343 = vunpack.c.l.b16 %v197
    %v344 = vunpack.c.h.b16 %v197
    %v345 = vunpack.c.l.b16 %v198
    %v346 = vunpack.c.h.b16 %v198
    %v347 = vunpack.c.l.b16 %v199
    %v348 = vunpack.c.h.b16 %v199
    %v349 = vunpack.c.l.b16 %v200
    %v350 = vunpack.c.h.b16 %v200
    %v351 = vunpack.c.l.b16 %v201
    %v352 = vunpack.c.h.b16 %v201
    %v353 = vunpack.c.l.b16 %v202
    %v354 = vunpack.c.h.b16 %v202
    %v355 = vunpack.c.l.b16 %v203
    %v356 = vunpack.c.h.b16 %v203
    %v357 = vunpack.c.l.b16 %v204
    %v358 = vunpack.c.h.b16 %v204
    %v359 = vunpack.c.l.b16 %v205
    %v360 = vunpack.c.h.b16 %v205
    %v361 = vunpack.c.l.b16 %v206
    %v362 = vunpack.c.h.b16 %v206
    %v363 = vunpack.c.l.b16 %v207
    %v364 = vunpack.c.h.b16 %v207
    %v365 = vunpack.c.l.b16 %v208
    %v366 = vunpack.c.h.b16 %v208
    %v367 = vunpack.c.l.b16 %v209
    %v368 = vunpack.c.h.b16 %v209
    %v369 = vunpack.c.l.b16 %v210
    %v370 = vunpack.c.h.b16 %v210
    %v371 = vunpack.c.l.b16 %v211
    %v372 = vunpack.c.h.b16 %v211
    %v373 = vunpack.c.l.b16 %v212
    %v374 = vunpack.c.h.b16 %v212
    %v375 = vunpack.c.l.b16 %v213
    %v376 = vunpack.c.h.b16 %v213
    %v377 = vunpack.c.l.b16 %v214
    %v378 = vunpack.c.h.b16 %v214
    %v379 = vunpack.c.l.b16 %v215
    %v380 = vunpack.c.h.b16 %v215
    %v381 = vunpack.c.l.b16 %v216
    %v382 = vunpack.c.h.b16 %v216
    %v383 = vunpack.c.l.b16 %v217
    %v384 = vunpack.c.h.b16 %v217
    %v385 = vunpack.c.l.b16 %v218
    %v386 = vunpack.c.h.b16 %v218
    %v387 = vunpack.c.l.b16 %v219
    %v388 = vunpack.c.h.b16 %v219
    %v389 = vunpack.c.l.b16 %v220
    %v390 = vunpack.c.h.b16 %v220
    %v391 = vunpack.c.l.b16 %v221
    %v392 = vunpack.c.h.b16 %v221
    %v393 = vunpack.c.l.b16 %v222
    %v394 = vunpack.c.h.b16 %v222
    %v395 = vunpack.c.l.b16 %v223
    %v396 = vunpack.c.h.b16 %v223
    %v397 = vunpack.c.l.b16 %v224
    %v398 = vunpack.c.h.b16 %v224
    %v399 = vunpack.c.l.b16 %v225
    %v400 = vunpack.c.h.b16 %v225
    %v401 = vunpack.c.l.b16 %v226
    %v402 = vunpack.c.h.b16 %v226
    %v403 = vunpack.c.l.b16 %v227
    %v404 = vunpack.c.h.b16 %v227
    %v405 = vunpack.c.l.b16 %v228
    %v406 = vunpack.c.h.b16 %v228
    %v407 = vunpack.c.l.b16 %v229
    %v408 = vunpack.c.h.b16 %v229
    %v409 = vunpack.c.l.b16 %v230
    %v410 = vunpack.c.h.b16 %v230
    %v411 = vunpack.c.l.b16 %v231
    %v412 = vunpack.c.h.b16 %v231
    %v413 = vunpack.c.l.b16 %v232
    %v414 = vunpack.c.h.b16 %v232
    %v415 = vunpack.c.l.b16 %v233
    %v416 = vunpack.c.h.b16 %v233
    %v417 = vunpack.c.l.b16 %v234
    %v418 = vunpack.c.h.b16 %v234
    %v419 = vunpack.c.l.b16 %v235
    %v420 = vunpack.c.h.b16 %v235
    %v421 = vunpack.c.l.b16 %v236
    %v422 = vunpack.c.h.b16 %v236
    %v423 = vunpack.c.l.b16 %v237
    %v424 = vunpack.c.h.b16 %v237
    %v425 = vunpack.c.l.b16 %v238
    %v426 = vunpack.c.h.b16 %v238
    %v427 = vunpack.c.l.b16 %v239
    %v428 = vunpack.c.h.b16 %v239
    %v429 = vunpack.c.l.b16 %v240
    %v430 = vunpack.c.h.b16 %v240
    %v431 = vunpack.c.l.b16 %v241
    %v432 = vunpack.c.h.b16 %v241
    %v433 = vunpack.c.l.b16 %v242
    %v434 = vunpack.c.h.b16 %v242
    %v435 = vunpack.c.l.b16 %v243
    %v436 = vunpack.c.h.b16 %v243
    %v437 = vunpack.c.l.b16 %v244
    %v438 = vunpack.c.h.b16 %v244
    %v439 = vunpack.c.l.b16 %v245
    %v440 = vunpack.c.h.b16 %v245
    %v441 = vunpack.c.l.b16 %v246
    %v442 = vunpack.c.h.b16 %v246
    %v443 = vunpack.c.l.b16 %v247
    %v444 = vunpack.c.h.b16 %v247
    %v445 = vunpack.c.l.b16 %v248
    %v446 = vunpack.c.h.b16 %v248
    %v447 = vunpack.c.l.b16 %v249
    %v448 = vunpack.c.h.b16 %v249
    %v449 = vunpack.c.l.b16 %v250
    %v450 = vunpack.c.h.b16 %v250
    %v451 = vunpack.c.l.b16 %v251
    %v452 = vunpack.c.h.b16 %v251
    %v453 = vunpack.c.l.b16 %v252
    %v454 = vunpack.c.h.b16 %v252
    %v455 = vpack.c.b16 %v331, %v327
    %v456 = vpack.c.b16 %v332, %v328
    %v457 = vpack.c.b16 %v333, %v329
    %v458 = vpack.c.b16 %v334, %v330
    %v459 = vpack.c.b16 %v339, %v335
    %v460 = vpack.c.b16 %v340, %v336
    %v461 = vpack.c.b16 %v341, %v337
    %v462 = vpack.c.b16 %v342, %v338
    %v463 = vpack.c.b16 %v347, %v343
    %v464 = vpack.c.b16 %v348, %v344
    %v465 = vpack.c.b16 %v349, %v345
    %v466 = vpack.c.b16 %v350, %v346
    %v467 = vpack.c.b16 %v355, %v351
    %v468 = vpack.c.b16 %v356, %v352
    %v469 = vpack.c.b16 %v357, %v353
    %v470 = vpack.c.b16 %v358, %v354
    %v471 = vpack.c.b16 %v363, %v359
    %v472 = vpack.c.b16 %v364, %v360
    %v473 = vpack.c.b16 %v365, %v361
    %v474 = vpack.c.b16 %v366, %v362
    %v475 = vpack.c.b16 %v371, %v367
    %v476 = vpack.c.b16 %v372, %v368
    %v477 = vpack.c.b16 %v373, %v369
    %v478 = vpack.c.b16 %v374, %v370
    %v479 = vpack.c.b16 %v379, %v375
    %v480 = vpack.c.b16 %v380, %v376
    %v481 = vpack.c.b16 %v381, %v377
    %v482 = vpack.c.b16 %v382, %v378
    %v483 = vpack.c.b16 %v387, %v383
    %v484 = vpack.c.b16 %v388, %v384
    %v485 = vpack.c.b16 %v389, %v385
    %v486 = vpack.c.b16 %v390, %v386
    %v487 = vpack.c.b16 %v395, %v391
    %v488 = vpack.c.b16 %v396, %v392
    %v489 = vpack.c.b16 %v397, %v393
    %v490 = vpack.c.b16 %v398, %v394
    %v491 = vpack.c.b16 %v403, %v399
    %v492 = vpack.c.b16 %v404, %v400
    %v493 = vpack.c.b16 %v405, %v401
    %v494 = vpack.c.b16 %v406, %v402
    %v495 = vpack.c.b16 %v411, %v407
    %v496 = vpack.c.b16 %v412, %v408
    %v497 = vpack.c.b16 %v413, %v409
    %v498 = vpack.c.b16 %v414, %v410
    %v499 = vpack.c.b16 %v419, %v415
    %v500 = vpack.c.b16 %v420, %v416
    %v501 = vpack.c.b16 %v421, %v417
    %v502 = vpack.c.b16 %v422, %v418
    %v503 = vpack.c.b16 %v427, %v423
    %v504 = vpack.c.b16 %v428, %v424
    %v505 = vpack.c.b16 %v429, %v425
    %v506 = vpack.c.b16 %v430, %v426
    %v507 = vpack.c.b16 %v435, %v431
    %v508 = vpack.c.b16 %v436, %v432
    %v509 = vpack.c.b16 %v437, %v433
    %v510 = vpack.c.b16 %v438, %v434
    %v511 = vpack.c.b16 %v443, %v439
    %v512 = vpack.c.b16 %v444, %v440
    %v513 = vpack.c.b16 %v445, %v441
    %v514 = vpack.c.b16 %v446, %v442
    %v515 = vpack.c.b16 %v451, %v447
    %v516 = vpack.c.b16 %v452, %v448
    %v517 = vpack.c.b16 %v453, %v449
    %v518 = vpack.c.b16 %v454, %v450
    %583 = vmatpush.bf16.msra.mxu0 %v483
    %584 = vmatpush.bf16.msra.mxu0 %v479
    %585 = vmatpush.bf16.msra.mxu0 %v475
    %586 = vmatpush.bf16.msra.mxu0 %v471
    %587 = vmatpush.bf16.msra.mxu0 %v467
    %588 = vmatpush.bf16.msra.mxu0 %v463
    %589 = vmatpush.bf16.msra.mxu0 %v459
    %590 = vmatpush.bf16.msra.mxu0 %v455
    %591 = vmatmul.bf16.gmra.mxu0 %v187
    %v592 = vpop.f32.mrf.mxu0
    %v593 = vadd.f32 %v255, %v592
    %v594 = vpop.f32.mrf.mxu0
    %v595 = vadd.f32 %v255, %v594
    %596 = vdwg.mxu0
    %597 = vmatpush.bf16.msra.mxu0 %v515
    %598 = vmatpush.bf16.msra.mxu0 %v511
    %599 = vmatpush.bf16.msra.mxu0 %v507
    %600 = vmatpush.bf16.msra.mxu0 %v503
    %601 = vmatpush.bf16.msra.mxu0 %v499
    %602 = vmatpush.bf16.msra.mxu0 %v495
    %603 = vmatpush.bf16.msra.mxu0 %v491
    %604 = vmatpush.bf16.msra.mxu0 %v487
    %605 = vmatmul.bf16.gmra.mxu0 %v161
    %v606 = vpop.f32.mrf.mxu0
    %v607 = vadd.f32 %v593, %v606
    %v608 = vpop.f32.mrf.mxu0
    %v609 = vadd.f32 %v595, %v608
    %610 = vdwg.mxu0
    %611 = vmatpush.bf16.msra.mxu0 %v484
    %612 = vmatpush.bf16.msra.mxu0 %v480
    %613 = vmatpush.bf16.msra.mxu0 %v476
    %614 = vmatpush.bf16.msra.mxu0 %v472
    %615 = vmatpush.bf16.msra.mxu0 %v468
    %616 = vmatpush.bf16.msra.mxu0 %v464
    %617 = vmatpush.bf16.msra.mxu0 %v460
    %618 = vmatpush.bf16.msra.mxu0 %v456
    %619 = vmatmul.bf16.gmra.mxu0 %v187
    %v620 = vpop.f32.mrf.mxu0
    %v621 = vadd.f32 %v256, %v620
    %v622 = vpop.f32.mrf.mxu0
    %v623 = vadd.f32 %v256, %v622
    %624 = vdwg.mxu0
    %625 = vmatpush.bf16.msra.mxu0 %v516
    %626 = vmatpush.bf16.msra.mxu0 %v512
    %627 = vmatpush.bf16.msra.mxu0 %v508
    %628 = vmatpush.bf16.msra.mxu0 %v504
    %629 = vmatpush.bf16.msra.mxu0 %v500
    %630 = vmatpush.bf16.msra.mxu0 %v496
    %631 = vmatpush.bf16.msra.mxu0 %v492
    %632 = vmatpush.bf16.msra.mxu0 %v488
    %633 = vmatmul.bf16.gmra.mxu0 %v161
    %v634 = vpop.f32.mrf.mxu0
    %v635 = vadd.f32 %v621, %v634
    %v636 = vpop.f32.mrf.mxu0
    %v637 = vadd.f32 %v623, %v636
    %638 = vdwg.mxu0
    %639 = vmatpush.bf16.msra.mxu0 %v485
    %640 = vmatpush.bf16.msra.mxu0 %v481
    %641 = vmatpush.bf16.msra.mxu0 %v477
    %642 = vmatpush.bf16.msra.mxu0 %v473
    %643 = vmatpush.bf16.msra.mxu0 %v469
    %644 = vmatpush.bf16.msra.mxu0 %v465
    %645 = vmatpush.bf16.msra.mxu0 %v461
    %646 = vmatpush.bf16.msra.mxu0 %v457
    %647 = vmatmul.bf16.gmra.mxu0 %v187
    %v648 = vpop.f32.mrf.mxu0
    %v649 = vadd.f32 %v257, %v648
    %v650 = vpop.f32.mrf.mxu0
    %v651 = vadd.f32 %v257, %v650
    %652 = vdwg.mxu0
    %653 = vmatpush.bf16.msra.mxu0 %v517
    %654 = vmatpush.bf16.msra.mxu0 %v513
    %655 = vmatpush.bf16.msra.mxu0 %v509
    %656 = vmatpush.bf16.msra.mxu0 %v505
    %657 = vmatpush.bf16.msra.mxu0 %v501
    %658 = vmatpush.bf16.msra.mxu0 %v497
    %659 = vmatpush.bf16.msra.mxu0 %v493
    %660 = vmatpush.bf16.msra.mxu0 %v489
    %661 = vmatmul.bf16.gmra.mxu0 %v161
    %v662 = vpop.f32.mrf.mxu0
    %v663 = vadd.f32 %v649, %v662
    %v664 = vpop.f32.mrf.mxu0
    %v665 = vadd.f32 %v651, %v664
    %666 = vdwg.mxu0
    %667 = vmatpush.bf16.msra.mxu0 %v486
    %668 = vmatpush.bf16.msra.mxu0 %v482
    %669 = vmatpush.bf16.msra.mxu0 %v478
    %670 = vmatpush.bf16.msra.mxu0 %v474
    %671 = vmatpush.bf16.msra.mxu0 %v470
    %672 = vmatpush.bf16.msra.mxu0 %v466
    %673 = vmatpush.bf16.msra.mxu0 %v462
    %674 = vmatpush.bf16.msra.mxu0 %v458
    %675 = vmatmul.bf16.gmra.mxu0 %v187
    %v676 = vpop.f32.mrf.mxu0
    %v677 = vadd.f32 %v258, %v676
    %v678 = vpop.f32.mrf.mxu0
    %v679 = vadd.f32 %v258, %v678
    %680 = vdwg.mxu0
    %681 = vmatpush.bf16.msra.mxu0 %v518
    %682 = vmatpush.bf16.msra.mxu0 %v514
    %683 = vmatpush.bf16.msra.mxu0 %v510
    %684 = vmatpush.bf16.msra.mxu0 %v506
    %685 = vmatpush.bf16.msra.mxu0 %v502
    %686 = vmatpush.bf16.msra.mxu0 %v498
    %687 = vmatpush.bf16.msra.mxu0 %v494
    %688 = vmatpush.bf16.msra.mxu0 %v490
    %689 = vmatmul.bf16.gmra.mxu0 %v161
    %v690 = vpop.f32.mrf.mxu0
    %v691 = vadd.f32 %v677, %v690
    %v692 = vpop.f32.mrf.mxu0
    %v693 = vadd.f32 %v679, %v692
    %694 = vdwg.mxu0
    %v695 = vxor.u32 %v607, 2147483648
    %v696 = vxor.u32 %v609, 2147483648
    %v697 = vmul.f32 %v695, 1.442695
    %v698 = vpow.pop %v697
    %v699 = vmul.f32 %v696, 1.442695
    %v700 = vpow.pop %v699
    %v701 = vadd.f32 %v698, 1.0
    %v702 = vadd.f32 %v700, 1.0
    %v703 = vrcp.pop %v701
    %v704 = vmul.f32 %v701, %v703
    %v705 = vsub.f32 1.0, %v704
    %v706 = vmul.f32 %v703, %v705
    %v707 = vadd.f32 %v703, %v706
    %vm708 = vweird.f32 %v701
    %vm709 = vweird.f32 %v703
    %vm710 = vmor %vm708, %vm709
    %v711 = vsel %vm710, %v703, %v707
    %v712 = vand.u32 2147483647, %v701
    %vm713 = vcmp.eq.f32.partialorder %v712, 8.507059e+37
    %v714 = vand.u32 %v701, 2147483648
    %v715 = vor.u32 1.1754944e-38, %v714
    %v716 = vsel %vm713, %v715, %v711
    %v717 = vmul.f32 1.0, %v716
    %v718 = vrcp.pop %v702
    %v719 = vmul.f32 %v702, %v718
    %v720 = vsub.f32 1.0, %v719
    %v721 = vmul.f32 %v718, %v720
    %v722 = vadd.f32 %v718, %v721
    %vm723 = vweird.f32 %v702
    %vm724 = vweird.f32 %v718
    %vm725 = vmor %vm723, %vm724
    %v726 = vsel %vm725, %v718, %v722
    %v727 = vand.u32 2147483647, %v702
    %vm728 = vcmp.eq.f32.partialorder %v727, 8.507059e+37
    %v729 = vand.u32 %v702, 2147483648
    %v730 = vor.u32 1.1754944e-38, %v729
    %v731 = vsel %vm728, %v730, %v726
    %v732 = vmul.f32 1.0, %v731
    %v733 = vxor.u32 %v635, 2147483648
    %v734 = vxor.u32 %v637, 2147483648
    %v735 = vmul.f32 %v733, 1.442695
    %v736 = vpow.pop %v735
    %v737 = vmul.f32 %v734, 1.442695
    %v738 = vpow.pop %v737
    %v739 = vadd.f32 %v736, 1.0
    %v740 = vadd.f32 %v738, 1.0
    %v741 = vrcp.pop %v739
    %v742 = vmul.f32 %v739, %v741
    %v743 = vsub.f32 1.0, %v742
    %v744 = vmul.f32 %v741, %v743
    %v745 = vadd.f32 %v741, %v744
    %vm746 = vweird.f32 %v739
    %vm747 = vweird.f32 %v741
    %vm748 = vmor %vm746, %vm747
    %v749 = vsel %vm748, %v741, %v745
    %v750 = vand.u32 2147483647, %v739
    %vm751 = vcmp.eq.f32.partialorder %v750, 8.507059e+37
    %v752 = vand.u32 %v739, 2147483648
    %v753 = vor.u32 1.1754944e-38, %v752
    %v754 = vsel %vm751, %v753, %v749
    %v755 = vmul.f32 1.0, %v754
    %v756 = vrcp.pop %v740
    %v757 = vmul.f32 %v740, %v756
    %v758 = vsub.f32 1.0, %v757
    %v759 = vmul.f32 %v756, %v758
    %v760 = vadd.f32 %v756, %v759
    %vm761 = vweird.f32 %v740
    %vm762 = vweird.f32 %v756
    %vm763 = vmor %vm761, %vm762
    %v764 = vsel %vm763, %v756, %v760
    %v765 = vand.u32 2147483647, %v740
    %vm766 = vcmp.eq.f32.partialorder %v765, 8.507059e+37
    %v767 = vand.u32 %v740, 2147483648
    %v768 = vor.u32 1.1754944e-38, %v767
    %v769 = vsel %vm766, %v768, %v764
    %v770 = vmul.f32 1.0, %v769
    %v771 = vmul.f32 %v717, %v691
    %v772 = vmul.f32 %v732, %v693
    %v773 = vadd.f32 %v663, %v771
    %v774 = vadd.f32 %v665, %v772
    %v775 = vtanh.pop %v773
    %v776 = vtanh.pop %v774
    %v777 = vsub.f32 1.0, %v755
    %v778 = vsub.f32 1.0, %v770
    %v779 = vmul.f32 %v777, %v775
    %v780 = vmul.f32 %v778, %v776
    %v781 = vmul.f32 %v755, %v148
    %v782 = vmul.f32 %v770, %v149
    %v783 = vadd.f32 %v779, %v781
    %v784 = vadd.f32 %v780, %v782
    %785 = vst [vmem:[#allocation2] sm:$0xff] %v783
    %786 = vst [vmem:[#allocation2 + $0x8] sm:$0xff] %v784
    %v787 = vld [vmem:[#allocation2] sm:$0xff]
    %v788 = vld [vmem:[#allocation2 + $0x8] sm:$0xff]
    %v789 = vpack.c.bf16 %v787, %v787
    %v790 = vpack.c.bf16 %v788, %v788
    %v793 = vunpack.c.l.b16 %v789
    %v794 = vunpack.c.l.b16 %v790
    %v795 = vpack.c.b16 %v794, %v793
    %797 = vmatpush.bf16.msra.mxu0 0
    %798 = vmatpush.bf16.msra.mxu0 0
    %799 = vmatpush.bf16.msra.mxu0 0
    %800 = vmatpush.bf16.msra.mxu0 0
    %801 = vmatpush.bf16.msra.mxu0 0
    %802 = vmatpush.bf16.msra.mxu0 0
    %803 = vmatpush.bf16.msra.mxu0 0
    %804 = vmatpush.bf16.msra.mxu0 %v795
    %805 = vmatmul.bf16.gmra.mxu0 %v165
    %v806 = vpop.f32.mrf.mxu0
    %v807 = vadd.f32 0.0, %v806
    %v808 = vpop.f32.mrf.mxu0
    %v809 = vadd.f32 0.0, %v808
    %810 = vdwg.mxu0
    %v811 = vpack.c.bf16 %v807, %v807
    %v812 = vpack.c.bf16 %v809, %v809
    %v815 = vunpack.c.l.b16 %v811
    %v816 = vunpack.c.l.b16 %v812
    %v817 = vpack.c.b16 %v816, %v815
    %s819 = scalar_lea.vmem [#allocation9], 512
    %v820 = vld [vmem:[%s819] sm:$0xff]
    %v821 = vld [vmem:[%s819 + $0x8] sm:$0xff]
    %v822 = vld [vmem:[%s819 + $0x10] sm:$0xff]
    %v823 = vld [vmem:[%s819 + $0x18] sm:$0xff]
    %v824 = vld [vmem:[%s819 + $0x20] sm:$0xff]
    %v825 = vld [vmem:[%s819 + $0x28] sm:$0xff]
    %v826 = vld [vmem:[%s819 + $0x30] sm:$0xff]
    %v827 = vld [vmem:[%s819 + $0x38] sm:$0xff]
    %v828 = vld [vmem:[%s819 + $0x40] sm:$0xff]
    %v829 = vld [vmem:[%s819 + $0x48] sm:$0xff]
    %v830 = vld [vmem:[%s819 + $0x50] sm:$0xff]
    %v831 = vld [vmem:[%s819 + $0x58] sm:$0xff]
    %v832 = vld [vmem:[%s819 + $0x60] sm:$0xff]
    %v833 = vld [vmem:[%s819 + $0x68] sm:$0xff]
    %v834 = vld [vmem:[%s819 + $0x70] sm:$0xff]
    %v835 = vld [vmem:[%s819 + $0x78] sm:$0xff]
    %v836 = vld [vmem:[%s819 + $0x80] sm:$0xff]
    %v837 = vld [vmem:[%s819 + $0x88] sm:$0xff]
    %v838 = vld [vmem:[%s819 + $0x90] sm:$0xff]
    %v839 = vld [vmem:[%s819 + $0x98] sm:$0xff]
    %v840 = vld [vmem:[%s819 + $0xa0] sm:$0xff]
    %v841 = vld [vmem:[%s819 + $0xa8] sm:$0xff]
    %v842 = vld [vmem:[%s819 + $0xb0] sm:$0xff]
    %v843 = vld [vmem:[%s819 + $0xb8] sm:$0xff]
    %v844 = vld [vmem:[%s819 + $0xc0] sm:$0xff]
    %v845 = vld [vmem:[%s819 + $0xc8] sm:$0xff]
    %v846 = vld [vmem:[%s819 + $0xd0] sm:$0xff]
    %v847 = vld [vmem:[%s819 + $0xd8] sm:$0xff]
    %v848 = vld [vmem:[%s819 + $0xe0] sm:$0xff]
    %v849 = vld [vmem:[%s819 + $0xe8] sm:$0xff]
    %v850 = vld [vmem:[%s819 + $0xf0] sm:$0xff]
    %v851 = vld [vmem:[%s819 + $0xf8] sm:$0xff]
    %v852 = vld [vmem:[%s819 + $0x100] sm:$0xff]
    %v853 = vld [vmem:[%s819 + $0x108] sm:$0xff]
    %v854 = vld [vmem:[%s819 + $0x110] sm:$0xff]
    %v855 = vld [vmem:[%s819 + $0x118] sm:$0xff]
    %v856 = vld [vmem:[%s819 + $0x120] sm:$0xff]
    %v857 = vld [vmem:[%s819 + $0x128] sm:$0xff]
    %v858 = vld [vmem:[%s819 + $0x130] sm:$0xff]
    %v859 = vld [vmem:[%s819 + $0x138] sm:$0xff]
    %v860 = vld [vmem:[%s819 + $0x140] sm:$0xff]
    %v861 = vld [vmem:[%s819 + $0x148] sm:$0xff]
    %v862 = vld [vmem:[%s819 + $0x150] sm:$0xff]
    %v863 = vld [vmem:[%s819 + $0x158] sm:$0xff]
    %v864 = vld [vmem:[%s819 + $0x160] sm:$0xff]
    %v865 = vld [vmem:[%s819 + $0x168] sm:$0xff]
    %v866 = vld [vmem:[%s819 + $0x170] sm:$0xff]
    %v867 = vld [vmem:[%s819 + $0x178] sm:$0xff]
    %v868 = vld [vmem:[%s819 + $0x180] sm:$0xff]
    %v869 = vld [vmem:[%s819 + $0x188] sm:$0xff]
    %v870 = vld [vmem:[%s819 + $0x190] sm:$0xff]
    %v871 = vld [vmem:[%s819 + $0x198] sm:$0xff]
    %v872 = vld [vmem:[%s819 + $0x1a0] sm:$0xff]
    %v873 = vld [vmem:[%s819 + $0x1a8] sm:$0xff]
    %v874 = vld [vmem:[%s819 + $0x1b0] sm:$0xff]
    %v875 = vld [vmem:[%s819 + $0x1b8] sm:$0xff]
    %v876 = vld [vmem:[%s819 + $0x1c0] sm:$0xff]
    %v877 = vld [vmem:[%s819 + $0x1c8] sm:$0xff]
    %v878 = vld [vmem:[%s819 + $0x1d0] sm:$0xff]
    %v879 = vld [vmem:[%s819 + $0x1d8] sm:$0xff]
    %v880 = vld [vmem:[%s819 + $0x1e0] sm:$0xff]
    %v881 = vld [vmem:[%s819 + $0x1e8] sm:$0xff]
    %v882 = vld [vmem:[%s819 + $0x1f0] sm:$0xff]
    %v883 = vld [vmem:[%s819 + $0x1f8] sm:$0xff]
    %s884 = scalar_lea.vmem [#allocation10], 4
    %v885 = vld [vmem:[%s884] sm:$0xf]
    %v887 = vperm.slane %v885, 0
    %v888 = vperm.slane %v885, 1
    %v889 = vperm.slane %v885, 2
    %v890 = vperm.slane %v885, 3
    %v959 = vunpack.c.l.b16 %v820
    %v960 = vunpack.c.h.b16 %v820
    %v961 = vunpack.c.l.b16 %v821
    %v962 = vunpack.c.h.b16 %v821
    %v963 = vunpack.c.l.b16 %v822
    %v964 = vunpack.c.h.b16 %v822
    %v965 = vunpack.c.l.b16 %v823
    %v966 = vunpack.c.h.b16 %v823
    %v967 = vunpack.c.l.b16 %v824
    %v968 = vunpack.c.h.b16 %v824
    %v969 = vunpack.c.l.b16 %v825
    %v970 = vunpack.c.h.b16 %v825
    %v971 = vunpack.c.l.b16 %v826
    %v972 = vunpack.c.h.b16 %v826
    %v973 = vunpack.c.l.b16 %v827
    %v974 = vunpack.c.h.b16 %v827
    %v975 = vunpack.c.l.b16 %v828
    %v976 = vunpack.c.h.b16 %v828
    %v977 = vunpack.c.l.b16 %v829
    %v978 = vunpack.c.h.b16 %v829
    %v979 = vunpack.c.l.b16 %v830
    %v980 = vunpack.c.h.b16 %v830
    %v981 = vunpack.c.l.b16 %v831
    %v982 = vunpack.c.h.b16 %v831
    %v983 = vunpack.c.l.b16 %v832
    %v984 = vunpack.c.h.b16 %v832
    %v985 = vunpack.c.l.b16 %v833
    %v986 = vunpack.c.h.b16 %v833
    %v987 = vunpack.c.l.b16 %v834
    %v988 = vunpack.c.h.b16 %v834
    %v989 = vunpack.c.l.b16 %v835
    %v990 = vunpack.c.h.b16 %v835
    %v991 = vunpack.c.l.b16 %v836
    %v992 = vunpack.c.h.b16 %v836
    %v993 = vunpack.c.l.b16 %v837
    %v994 = vunpack.c.h.b16 %v837
    %v995 = vunpack.c.l.b16 %v838
    %v996 = vunpack.c.h.b16 %v838
    %v997 = vunpack.c.l.b16 %v839
    %v998 = vunpack.c.h.b16 %v839
    %v999 = vunpack.c.l.b16 %v840
    %v1000 = vunpack.c.h.b16 %v840
    %v1001 = vunpack.c.l.b16 %v841
    %v1002 = vunpack.c.h.b16 %v841
    %v1003 = vunpack.c.l.b16 %v842
    %v1004 = vunpack.c.h.b16 %v842
    %v1005 = vunpack.c.l.b16 %v843
    %v1006 = vunpack.c.h.b16 %v843
    %v1007 = vunpack.c.l.b16 %v844
    %v1008 = vunpack.c.h.b16 %v844
    %v1009 = vunpack.c.l.b16 %v845
    %v1010 = vunpack.c.h.b16 %v845
    %v1011 = vunpack.c.l.b16 %v846
    %v1012 = vunpack.c.h.b16 %v846
    %v1013 = vunpack.c.l.b16 %v847
    %v1014 = vunpack.c.h.b16 %v847
    %v1015 = vunpack.c.l.b16 %v848
    %v1016 = vunpack.c.h.b16 %v848
    %v1017 = vunpack.c.l.b16 %v849
    %v1018 = vunpack.c.h.b16 %v849
    %v1019 = vunpack.c.l.b16 %v850
    %v1020 = vunpack.c.h.b16 %v850
    %v1021 = vunpack.c.l.b16 %v851
    %v1022 = vunpack.c.h.b16 %v851
    %v1023 = vunpack.c.l.b16 %v852
    %v1024 = vunpack.c.h.b16 %v852
    %v1025 = vunpack.c.l.b16 %v853
    %v1026 = vunpack.c.h.b16 %v853
    %v1027 = vunpack.c.l.b16 %v854
    %v1028 = vunpack.c.h.b16 %v854
    %v1029 = vunpack.c.l.b16 %v855
    %v1030 = vunpack.c.h.b16 %v855
    %v1031 = vunpack.c.l.b16 %v856
    %v1032 = vunpack.c.h.b16 %v856
    %v1033 = vunpack.c.l.b16 %v857
    %v1034 = vunpack.c.h.b16 %v857
    %v1035 = vunpack.c.l.b16 %v858
    %v1036 = vunpack.c.h.b16 %v858
    %v1037 = vunpack.c.l.b16 %v859
    %v1038 = vunpack.c.h.b16 %v859
    %v1039 = vunpack.c.l.b16 %v860
    %v1040 = vunpack.c.h.b16 %v860
    %v1041 = vunpack.c.l.b16 %v861
    %v1042 = vunpack.c.h.b16 %v861
    %v1043 = vunpack.c.l.b16 %v862
    %v1044 = vunpack.c.h.b16 %v862
    %v1045 = vunpack.c.l.b16 %v863
    %v1046 = vunpack.c.h.b16 %v863
    %v1047 = vunpack.c.l.b16 %v864
    %v1048 = vunpack.c.h.b16 %v864
    %v1049 = vunpack.c.l.b16 %v865
    %v1050 = vunpack.c.h.b16 %v865
    %v1051 = vunpack.c.l.b16 %v866
    %v1052 = vunpack.c.h.b16 %v866
    %v1053 = vunpack.c.l.b16 %v867
    %v1054 = vunpack.c.h.b16 %v867
    %v1055 = vunpack.c.l.b16 %v868
    %v1056 = vunpack.c.h.b16 %v868
    %v1057 = vunpack.c.l.b16 %v869
    %v1058 = vunpack.c.h.b16 %v869
    %v1059 = vunpack.c.l.b16 %v870
    %v1060 = vunpack.c.h.b16 %v870
    %v1061 = vunpack.c.l.b16 %v871
    %v1062 = vunpack.c.h.b16 %v871
    %v1063 = vunpack.c.l.b16 %v872
    %v1064 = vunpack.c.h.b16 %v872
    %v1065 = vunpack.c.l.b16 %v873
    %v1066 = vunpack.c.h.b16 %v873
    %v1067 = vunpack.c.l.b16 %v874
    %v1068 = vunpack.c.h.b16 %v874
    %v1069 = vunpack.c.l.b16 %v875
    %v1070 = vunpack.c.h.b16 %v875
    %v1071 = vunpack.c.l.b16 %v876
    %v1072 = vunpack.c.h.b16 %v876
    %v1073 = vunpack.c.l.b16 %v877
    %v1074 = vunpack.c.h.b16 %v877
    %v1075 = vunpack.c.l.b16 %v878
    %v1076 = vunpack.c.h.b16 %v878
    %v1077 = vunpack.c.l.b16 %v879
    %v1078 = vunpack.c.h.b16 %v879
    %v1079 = vunpack.c.l.b16 %v880
    %v1080 = vunpack.c.h.b16 %v880
    %v1081 = vunpack.c.l.b16 %v881
    %v1082 = vunpack.c.h.b16 %v881
    %v1083 = vunpack.c.l.b16 %v882
    %v1084 = vunpack.c.h.b16 %v882
    %v1085 = vunpack.c.l.b16 %v883
    %v1086 = vunpack.c.h.b16 %v883
    %v1087 = vpack.c.b16 %v963, %v959
    %v1088 = vpack.c.b16 %v964, %v960
    %v1089 = vpack.c.b16 %v965, %v961
    %v1090 = vpack.c.b16 %v966, %v962
    %v1091 = vpack.c.b16 %v971, %v967
    %v1092 = vpack.c.b16 %v972, %v968
    %v1093 = vpack.c.b16 %v973, %v969
    %v1094 = vpack.c.b16 %v974, %v970
    %v1095 = vpack.c.b16 %v979, %v975
    %v1096 = vpack.c.b16 %v980, %v976
    %v1097 = vpack.c.b16 %v981, %v977
    %v1098 = vpack.c.b16 %v982, %v978
    %v1099 = vpack.c.b16 %v987, %v983
    %v1100 = vpack.c.b16 %v988, %v984
    %v1101 = vpack.c.b16 %v989, %v985
    %v1102 = vpack.c.b16 %v990, %v986
    %v1103 = vpack.c.b16 %v995, %v991
    %v1104 = vpack.c.b16 %v996, %v992
    %v1105 = vpack.c.b16 %v997, %v993
    %v1106 = vpack.c.b16 %v998, %v994
    %v1107 = vpack.c.b16 %v1003, %v999
    %v1108 = vpack.c.b16 %v1004, %v1000
    %v1109 = vpack.c.b16 %v1005, %v1001
    %v1110 = vpack.c.b16 %v1006, %v1002
    %v1111 = vpack.c.b16 %v1011, %v1007
    %v1112 = vpack.c.b16 %v1012, %v1008
    %v1113 = vpack.c.b16 %v1013, %v1009
    %v1114 = vpack.c.b16 %v1014, %v1010
    %v1115 = vpack.c.b16 %v1019, %v1015
    %v1116 = vpack.c.b16 %v1020, %v1016
    %v1117 = vpack.c.b16 %v1021, %v1017
    %v1118 = vpack.c.b16 %v1022, %v1018
    %v1119 = vpack.c.b16 %v1027, %v1023
    %v1120 = vpack.c.b16 %v1028, %v1024
    %v1121 = vpack.c.b16 %v1029, %v1025
    %v1122 = vpack.c.b16 %v1030, %v1026
    %v1123 = vpack.c.b16 %v1035, %v1031
    %v1124 = vpack.c.b16 %v1036, %v1032
    %v1125 = vpack.c.b16 %v1037, %v1033
    %v1126 = vpack.c.b16 %v1038, %v1034
    %v1127 = vpack.c.b16 %v1043, %v1039
    %v1128 = vpack.c.b16 %v1044, %v1040
    %v1129 = vpack.c.b16 %v1045, %v1041
    %v1130 = vpack.c.b16 %v1046, %v1042
    %v1131 = vpack.c.b16 %v1051, %v1047
    %v1132 = vpack.c.b16 %v1052, %v1048
    %v1133 = vpack.c.b16 %v1053, %v1049
    %v1134 = vpack.c.b16 %v1054, %v1050
    %v1135 = vpack.c.b16 %v1059, %v1055
    %v1136 = vpack.c.b16 %v1060, %v1056
    %v1137 = vpack.c.b16 %v1061, %v1057
    %v1138 = vpack.c.b16 %v1062, %v1058
    %v1139 = vpack.c.b16 %v1067, %v1063
    %v1140 = vpack.c.b16 %v1068, %v1064
    %v1141 = vpack.c.b16 %v1069, %v1065
    %v1142 = vpack.c.b16 %v1070, %v1066
    %v1143 = vpack.c.b16 %v1075, %v1071
    %v1144 = vpack.c.b16 %v1076, %v1072
    %v1145 = vpack.c.b16 %v1077, %v1073
    %v1146 = vpack.c.b16 %v1078, %v1074
    %v1147 = vpack.c.b16 %v1083, %v1079
    %v1148 = vpack.c.b16 %v1084, %v1080
    %v1149 = vpack.c.b16 %v1085, %v1081
    %v1150 = vpack.c.b16 %v1086, %v1082
    %1215 = vmatpush.bf16.msra.mxu0 %v1115
    %1216 = vmatpush.bf16.msra.mxu0 %v1111
    %1217 = vmatpush.bf16.msra.mxu0 %v1107
    %1218 = vmatpush.bf16.msra.mxu0 %v1103
    %1219 = vmatpush.bf16.msra.mxu0 %v1099
    %1220 = vmatpush.bf16.msra.mxu0 %v1095
    %1221 = vmatpush.bf16.msra.mxu0 %v1091
    %1222 = vmatpush.bf16.msra.mxu0 %v1087
    %1223 = vmatmul.bf16.gmra.mxu0 %v817
    %v1224 = vpop.f32.mrf.mxu0
    %v1225 = vadd.f32 %v887, %v1224
    %v1226 = vpop.f32.mrf.mxu0
    %v1227 = vadd.f32 %v887, %v1226
    %1228 = vdwg.mxu0
    %1229 = vmatpush.bf16.msra.mxu0 %v1147
    %1230 = vmatpush.bf16.msra.mxu0 %v1143
    %1231 = vmatpush.bf16.msra.mxu0 %v1139
    %1232 = vmatpush.bf16.msra.mxu0 %v1135
    %1233 = vmatpush.bf16.msra.mxu0 %v1131
    %1234 = vmatpush.bf16.msra.mxu0 %v1127
    %1235 = vmatpush.bf16.msra.mxu0 %v1123
    %1236 = vmatpush.bf16.msra.mxu0 %v1119
    %1237 = vmatmul.bf16.gmra.mxu0 %v795
    %v1238 = vpop.f32.mrf.mxu0
    %v1239 = vadd.f32 %v1225, %v1238
    %v1240 = vpop.f32.mrf.mxu0
    %v1241 = vadd.f32 %v1227, %v1240
    %1242 = vdwg.mxu0
    %1243 = vmatpush.bf16.msra.mxu0 %v1116
    %1244 = vmatpush.bf16.msra.mxu0 %v1112
    %1245 = vmatpush.bf16.msra.mxu0 %v1108
    %1246 = vmatpush.bf16.msra.mxu0 %v1104
    %1247 = vmatpush.bf16.msra.mxu0 %v1100
    %1248 = vmatpush.bf16.msra.mxu0 %v1096
    %1249 = vmatpush.bf16.msra.mxu0 %v1092
    %1250 = vmatpush.bf16.msra.mxu0 %v1088
    %1251 = vmatmul.bf16.gmra.mxu0 %v817
    %v1252 = vpop.f32.mrf.mxu0
    %v1253 = vadd.f32 %v888, %v1252
    %v1254 = vpop.f32.mrf.mxu0
    %v1255 = vadd.f32 %v888, %v1254
    %1256 = vdwg.mxu0
    %1257 = vmatpush.bf16.msra.mxu0 %v1148
    %1258 = vmatpush.bf16.msra.mxu0 %v1144
    %1259 = vmatpush.bf16.msra.mxu0 %v1140
    %1260 = vmatpush.bf16.msra.mxu0 %v1136
    %1261 = vmatpush.bf16.msra.mxu0 %v1132
    %1262 = vmatpush.bf16.msra.mxu0 %v1128
    %1263 = vmatpush.bf16.msra.mxu0 %v1124
    %1264 = vmatpush.bf16.msra.mxu0 %v1120
    %1265 = vmatmul.bf16.gmra.mxu0 %v795
    %v1266 = vpop.f32.mrf.mxu0
    %v1267 = vadd.f32 %v1253, %v1266
    %v1268 = vpop.f32.mrf.mxu0
    %v1269 = vadd.f32 %v1255, %v1268
    %1270 = vdwg.mxu0
    %1271 = vmatpush.bf16.msra.mxu0 %v1117
    %1272 = vmatpush.bf16.msra.mxu0 %v1113
    %1273 = vmatpush.bf16.msra.mxu0 %v1109
    %1274 = vmatpush.bf16.msra.mxu0 %v1105
    %1275 = vmatpush.bf16.msra.mxu0 %v1101
    %1276 = vmatpush.bf16.msra.mxu0 %v1097
    %1277 = vmatpush.bf16.msra.mxu0 %v1093
    %1278 = vmatpush.bf16.msra.mxu0 %v1089
    %1279 = vmatmul.bf16.gmra.mxu0 %v817
    %v1280 = vpop.f32.mrf.mxu0
    %v1281 = vadd.f32 %v889, %v1280
    %v1282 = vpop.f32.mrf.mxu0
    %v1283 = vadd.f32 %v889, %v1282
    %1284 = vdwg.mxu0
    %1285 = vmatpush.bf16.msra.mxu0 %v1149
    %1286 = vmatpush.bf16.msra.mxu0 %v1145
    %1287 = vmatpush.bf16.msra.mxu0 %v1141
    %1288 = vmatpush.bf16.msra.mxu0 %v1137
    %1289 = vmatpush.bf16.msra.mxu0 %v1133
    %1290 = vmatpush.bf16.msra.mxu0 %v1129
    %1291 = vmatpush.bf16.msra.mxu0 %v1125
    %1292 = vmatpush.bf16.msra.mxu0 %v1121
    %1293 = vmatmul.bf16.gmra.mxu0 %v795
    %v1294 = vpop.f32.mrf.mxu0
    %v1295 = vadd.f32 %v1281, %v1294
    %v1296 = vpop.f32.mrf.mxu0
    %v1297 = vadd.f32 %v1283, %v1296
    %1298 = vdwg.mxu0
    %1299 = vmatpush.bf16.msra.mxu0 %v1118
    %1300 = vmatpush.bf16.msra.mxu0 %v1114
    %1301 = vmatpush.bf16.msra.mxu0 %v1110
    %1302 = vmatpush.bf16.msra.mxu0 %v1106
    %1303 = vmatpush.bf16.msra.mxu0 %v1102
    %1304 = vmatpush.bf16.msra.mxu0 %v1098
    %1305 = vmatpush.bf16.msra.mxu0 %v1094
    %1306 = vmatpush.bf16.msra.mxu0 %v1090
    %1307 = vmatmul.bf16.gmra.mxu0 %v817
    %v1308 = vpop.f32.mrf.mxu0
    %v1309 = vadd.f32 %v890, %v1308
    %v1310 = vpop.f32.mrf.mxu0
    %v1311 = vadd.f32 %v890, %v1310
    %1312 = vdwg.mxu0
    %1313 = vmatpush.bf16.msra.mxu0 %v1150
    %1314 = vmatpush.bf16.msra.mxu0 %v1146
    %1315 = vmatpush.bf16.msra.mxu0 %v1142
    %1316 = vmatpush.bf16.msra.mxu0 %v1138
    %1317 = vmatpush.bf16.msra.mxu0 %v1134
    %1318 = vmatpush.bf16.msra.mxu0 %v1130
    %1319 = vmatpush.bf16.msra.mxu0 %v1126
    %1320 = vmatpush.bf16.msra.mxu0 %v1122
    %1321 = vmatmul.bf16.gmra.mxu0 %v795
    %v1322 = vpop.f32.mrf.mxu0
    %v1323 = vadd.f32 %v1309, %v1322
    %v1324 = vpop.f32.mrf.mxu0
    %v1325 = vadd.f32 %v1311, %v1324
    %1326 = vdwg.mxu0
    %v1327 = vxor.u32 %v1239, 2147483648
    %v1328 = vxor.u32 %v1241, 2147483648
    %v1329 = vmul.f32 %v1327, 1.442695
    %v1330 = vpow.pop %v1329
    %v1331 = vmul.f32 %v1328, 1.442695
    %v1332 = vpow.pop %v1331
    %v1333 = vadd.f32 %v1330, 1.0
    %v1334 = vadd.f32 %v1332, 1.0
    %v1335 = vrcp.pop %v1333
    %v1336 = vmul.f32 %v1333, %v1335
    %v1337 = vsub.f32 1.0, %v1336
    %v1338 = vmul.f32 %v1335, %v1337
    %v1339 = vadd.f32 %v1335, %v1338
    %vm1340 = vweird.f32 %v1333
    %vm1341 = vweird.f32 %v1335
    %vm1342 = vmor %vm1340, %vm1341
    %v1343 = vsel %vm1342, %v1335, %v1339
    %v1344 = vand.u32 2147483647, %v1333
    %vm1345 = vcmp.eq.f32.partialorder %v1344, 8.507059e+37
    %v1346 = vand.u32 %v1333, 2147483648
    %v1347 = vor.u32 1.1754944e-38, %v1346
    %v1348 = vsel %vm1345, %v1347, %v1343
    %v1349 = vmul.f32 1.0, %v1348
    %v1350 = vrcp.pop %v1334
    %v1351 = vmul.f32 %v1334, %v1350
    %v1352 = vsub.f32 1.0, %v1351
    %v1353 = vmul.f32 %v1350, %v1352
    %v1354 = vadd.f32 %v1350, %v1353
    %vm1355 = vweird.f32 %v1334
    %vm1356 = vweird.f32 %v1350
    %vm1357 = vmor %vm1355, %vm1356
    %v1358 = vsel %vm1357, %v1350, %v1354
    %v1359 = vand.u32 2147483647, %v1334
    %vm1360 = vcmp.eq.f32.partialorder %v1359, 8.507059e+37
    %v1361 = vand.u32 %v1334, 2147483648
    %v1362 = vor.u32 1.1754944e-38, %v1361
    %v1363 = vsel %vm1360, %v1362, %v1358
    %v1364 = vmul.f32 1.0, %v1363
    %v1365 = vxor.u32 %v1267, 2147483648
    %v1366 = vxor.u32 %v1269, 2147483648
    %v1367 = vmul.f32 %v1365, 1.442695
    %v1368 = vpow.pop %v1367
    %v1369 = vmul.f32 %v1366, 1.442695
    %v1370 = vpow.pop %v1369
    %v1371 = vadd.f32 %v1368, 1.0
    %v1372 = vadd.f32 %v1370, 1.0
    %v1373 = vrcp.pop %v1371
    %v1374 = vmul.f32 %v1371, %v1373
    %v1375 = vsub.f32 1.0, %v1374
    %v1376 = vmul.f32 %v1373, %v1375
    %v1377 = vadd.f32 %v1373, %v1376
    %vm1378 = vweird.f32 %v1371
    %vm1379 = vweird.f32 %v1373
    %vm1380 = vmor %vm1378, %vm1379
    %v1381 = vsel %vm1380, %v1373, %v1377
    %v1382 = vand.u32 2147483647, %v1371
    %vm1383 = vcmp.eq.f32.partialorder %v1382, 8.507059e+37
    %v1384 = vand.u32 %v1371, 2147483648
    %v1385 = vor.u32 1.1754944e-38, %v1384
    %v1386 = vsel %vm1383, %v1385, %v1381
    %v1387 = vmul.f32 1.0, %v1386
    %v1388 = vrcp.pop %v1372
    %v1389 = vmul.f32 %v1372, %v1388
    %v1390 = vsub.f32 1.0, %v1389
    %v1391 = vmul.f32 %v1388, %v1390
    %v1392 = vadd.f32 %v1388, %v1391
    %vm1393 = vweird.f32 %v1372
    %vm1394 = vweird.f32 %v1388
    %vm1395 = vmor %vm1393, %vm1394
    %v1396 = vsel %vm1395, %v1388, %v1392
    %v1397 = vand.u32 2147483647, %v1372
    %vm1398 = vcmp.eq.f32.partialorder %v1397, 8.507059e+37
    %v1399 = vand.u32 %v1372, 2147483648
    %v1400 = vor.u32 1.1754944e-38, %v1399
    %v1401 = vsel %vm1398, %v1400, %v1396
    %v1402 = vmul.f32 1.0, %v1401
    %v1403 = vmul.f32 %v1349, %v1323
    %v1404 = vmul.f32 %v1364, %v1325
    %v1405 = vadd.f32 %v1295, %v1403
    %v1406 = vadd.f32 %v1297, %v1404
    %v1407 = vtanh.pop %v1405
    %v1408 = vtanh.pop %v1406
    %v1409 = vsub.f32 1.0, %v1387
    %v1410 = vsub.f32 1.0, %v1402
    %v1411 = vmul.f32 %v1409, %v1407
    %v1412 = vmul.f32 %v1410, %v1408
    %v1413 = vmul.f32 %v1387, %v787
    %v1414 = vmul.f32 %v1402, %v788
    %v1415 = vadd.f32 %v1411, %v1413
    %v1416 = vadd.f32 %v1412, %v1414
    %1417 = vst [vmem:[#allocation2] sm:$0xff] %v1415
    %1418 = vst [vmem:[#allocation2 + $0x8] sm:$0xff] %v1416
    %v1419 = vld [vmem:[#allocation2] sm:$0xff]
    %v1420 = vld [vmem:[#allocation2 + $0x8] sm:$0xff]
    %v1421 = vpack.c.bf16 %v1419, %v1419
    %v1422 = vpack.c.bf16 %v1420, %v1420
    %v1425 = vunpack.c.l.b16 %v1421
    %v1426 = vunpack.c.l.b16 %v1422
    %v1427 = vpack.c.b16 %v1426, %v1425
    %1429 = vmatpush.bf16.msra.mxu0 0
    %1430 = vmatpush.bf16.msra.mxu0 0
    %1431 = vmatpush.bf16.msra.mxu0 0
    %1432 = vmatpush.bf16.msra.mxu0 0
    %1433 = vmatpush.bf16.msra.mxu0 0
    %1434 = vmatpush.bf16.msra.mxu0 0
    %1435 = vmatpush.bf16.msra.mxu0 0
    %1436 = vmatpush.bf16.msra.mxu0 %v1427
    %1437 = vmatmul.bf16.gmra.mxu0 %v165
    %v1438 = vpop.f32.mrf.mxu0
    %v1439 = vadd.f32 0.0, %v1438
    %v1440 = vpop.f32.mrf.mxu0
    %v1441 = vadd.f32 0.0, %v1440
    %1442 = vdwg.mxu0
    %v1443 = vpack.c.bf16 %v1439, %v1439
    %v1444 = vpack.c.bf16 %v1441, %v1441
    %v1447 = vunpack.c.l.b16 %v1443
    %v1448 = vunpack.c.l.b16 %v1444
    %v1449 = vpack.c.b16 %v1448, %v1447
    %s1451 = scalar_lea.vmem [#allocation9], 1024
    %v1452 = vld [vmem:[%s1451] sm:$0xff]
    %v1453 = vld [vmem:[%s1451 + $0x8] sm:$0xff]
    %v1454 = vld [vmem:[%s1451 + $0x10] sm:$0xff]
    %v1455 = vld [vmem:[%s1451 + $0x18] sm:$0xff]
    %v1456 = vld [vmem:[%s1451 + $0x20] sm:$0xff]
    %v1457 = vld [vmem:[%s1451 + $0x28] sm:$0xff]
    %v1458 = vld [vmem:[%s1451 + $0x30] sm:$0xff]
    %v1459 = vld [vmem:[%s1451 + $0x38] sm:$0xff]
    %v1460 = vld [vmem:[%s1451 + $0x40] sm:$0xff]
    %v1461 = vld [vmem:[%s1451 + $0x48] sm:$0xff]
    %v1462 = vld [vmem:[%s1451 + $0x50] sm:$0xff]
    %v1463 = vld [vmem:[%s1451 + $0x58] sm:$0xff]
    %v1464 = vld [vmem:[%s1451 + $0x60] sm:$0xff]
    %v1465 = vld [vmem:[%s1451 + $0x68] sm:$0xff]
    %v1466 = vld [vmem:[%s1451 + $0x70] sm:$0xff]
    %v1467 = vld [vmem:[%s1451 + $0x78] sm:$0xff]
    %v1468 = vld [vmem:[%s1451 + $0x80] sm:$0xff]
    %v1469 = vld [vmem:[%s1451 + $0x88] sm:$0xff]
    %v1470 = vld [vmem:[%s1451 + $0x90] sm:$0xff]
    %v1471 = vld [vmem:[%s1451 + $0x98] sm:$0xff]
    %v1472 = vld [vmem:[%s1451 + $0xa0] sm:$0xff]
    %v1473 = vld [vmem:[%s1451 + $0xa8] sm:$0xff]
    %v1474 = vld [vmem:[%s1451 + $0xb0] sm:$0xff]
    %v1475 = vld [vmem:[%s1451 + $0xb8] sm:$0xff]
    %v1476 = vld [vmem:[%s1451 + $0xc0] sm:$0xff]
    %v1477 = vld [vmem:[%s1451 + $0xc8] sm:$0xff]
    %v1478 = vld [vmem:[%s1451 + $0xd0] sm:$0xff]
    %v1479 = vld [vmem:[%s1451 + $0xd8] sm:$0xff]
    %v1480 = vld [vmem:[%s1451 + $0xe0] sm:$0xff]
    %v1481 = vld [vmem:[%s1451 + $0xe8] sm:$0xff]
    %v1482 = vld [vmem:[%s1451 + $0xf0] sm:$0xff]
    %v1483 = vld [vmem:[%s1451 + $0xf8] sm:$0xff]
    %v1484 = vld [vmem:[%s1451 + $0x100] sm:$0xff]
    %v1485 = vld [vmem:[%s1451 + $0x108] sm:$0xff]
    %v1486 = vld [vmem:[%s1451 + $0x110] sm:$0xff]
    %v1487 = vld [vmem:[%s1451 + $0x118] sm:$0xff]
    %v1488 = vld [vmem:[%s1451 + $0x120] sm:$0xff]
    %v1489 = vld [vmem:[%s1451 + $0x128] sm:$0xff]
    %v1490 = vld [vmem:[%s1451 + $0x130] sm:$0xff]
    %v1491 = vld [vmem:[%s1451 + $0x138] sm:$0xff]
    %v1492 = vld [vmem:[%s1451 + $0x140] sm:$0xff]
    %v1493 = vld [vmem:[%s1451 + $0x148] sm:$0xff]
    %v1494 = vld [vmem:[%s1451 + $0x150] sm:$0xff]
    %v1495 = vld [vmem:[%s1451 + $0x158] sm:$0xff]
    %v1496 = vld [vmem:[%s1451 + $0x160] sm:$0xff]
    %v1497 = vld [vmem:[%s1451 + $0x168] sm:$0xff]
    %v1498 = vld [vmem:[%s1451 + $0x170] sm:$0xff]
    %v1499 = vld [vmem:[%s1451 + $0x178] sm:$0xff]
    %v1500 = vld [vmem:[%s1451 + $0x180] sm:$0xff]
    %v1501 = vld [vmem:[%s1451 + $0x188] sm:$0xff]
    %v1502 = vld [vmem:[%s1451 + $0x190] sm:$0xff]
    %v1503 = vld [vmem:[%s1451 + $0x198] sm:$0xff]
    %v1504 = vld [vmem:[%s1451 + $0x1a0] sm:$0xff]
    %v1505 = vld [vmem:[%s1451 + $0x1a8] sm:$0xff]
    %v1506 = vld [vmem:[%s1451 + $0x1b0] sm:$0xff]
    %v1507 = vld [vmem:[%s1451 + $0x1b8] sm:$0xff]
    %v1508 = vld [vmem:[%s1451 + $0x1c0] sm:$0xff]
    %v1509 = vld [vmem:[%s1451 + $0x1c8] sm:$0xff]
    %v1510 = vld [vmem:[%s1451 + $0x1d0] sm:$0xff]
    %v1511 = vld [vmem:[%s1451 + $0x1d8] sm:$0xff]
    %v1512 = vld [vmem:[%s1451 + $0x1e0] sm:$0xff]
    %v1513 = vld [vmem:[%s1451 + $0x1e8] sm:$0xff]
    %v1514 = vld [vmem:[%s1451 + $0x1f0] sm:$0xff]
    %v1515 = vld [vmem:[%s1451 + $0x1f8] sm:$0xff]
    %s1516 = scalar_lea.vmem [#allocation10], 8
    %v1517 = vld [vmem:[%s1516] sm:$0xf]
    %v1519 = vperm.slane %v1517, 0
    %v1520 = vperm.slane %v1517, 1
    %v1521 = vperm.slane %v1517, 2
    %v1522 = vperm.slane %v1517, 3
    %v1591 = vunpack.c.l.b16 %v1452
    %v1592 = vunpack.c.h.b16 %v1452
    %v1593 = vunpack.c.l.b16 %v1453
    %v1594 = vunpack.c.h.b16 %v1453
    %v1595 = vunpack.c.l.b16 %v1454
    %v1596 = vunpack.c.h.b16 %v1454
    %v1597 = vunpack.c.l.b16 %v1455
    %v1598 = vunpack.c.h.b16 %v1455
    %v1599 = vunpack.c.l.b16 %v1456
    %v1600 = vunpack.c.h.b16 %v1456
    %v1601 = vunpack.c.l.b16 %v1457
    %v1602 = vunpack.c.h.b16 %v1457
    %v1603 = vunpack.c.l.b16 %v1458
    %v1604 = vunpack.c.h.b16 %v1458
    %v1605 = vunpack.c.l.b16 %v1459
    %v1606 = vunpack.c.h.b16 %v1459
    %v1607 = vunpack.c.l.b16 %v1460
    %v1608 = vunpack.c.h.b16 %v1460
    %v1609 = vunpack.c.l.b16 %v1461
    %v1610 = vunpack.c.h.b16 %v1461
    %v1611 = vunpack.c.l.b16 %v1462
    %v1612 = vunpack.c.h.b16 %v1462
    %v1613 = vunpack.c.l.b16 %v1463
    %v1614 = vunpack.c.h.b16 %v1463
    %v1615 = vunpack.c.l.b16 %v1464
    %v1616 = vunpack.c.h.b16 %v1464
    %v1617 = vunpack.c.l.b16 %v1465
    %v1618 = vunpack.c.h.b16 %v1465
    %v1619 = vunpack.c.l.b16 %v1466
    %v1620 = vunpack.c.h.b16 %v1466
    %v1621 = vunpack.c.l.b16 %v1467
    %v1622 = vunpack.c.h.b16 %v1467
    %v1623 = vunpack.c.l.b16 %v1468
    %v1624 = vunpack.c.h.b16 %v1468
    %v1625 = vunpack.c.l.b16 %v1469
    %v1626 = vunpack.c.h.b16 %v1469
    %v1627 = vunpack.c.l.b16 %v1470
    %v1628 = vunpack.c.h.b16 %v1470
    %v1629 = vunpack.c.l.b16 %v1471
    %v1630 = vunpack.c.h.b16 %v1471
    %v1631 = vunpack.c.l.b16 %v1472
    %v1632 = vunpack.c.h.b16 %v1472
    %v1633 = vunpack.c.l.b16 %v1473
    %v1634 = vunpack.c.h.b16 %v1473
    %v1635 = vunpack.c.l.b16 %v1474
    %v1636 = vunpack.c.h.b16 %v1474
    %v1637 = vunpack.c.l.b16 %v1475
    %v1638 = vunpack.c.h.b16 %v1475
    %v1639 = vunpack.c.l.b16 %v1476
    %v1640 = vunpack.c.h.b16 %v1476
    %v1641 = vunpack.c.l.b16 %v1477
    %v1642 = vunpack.c.h.b16 %v1477
    %v1643 = vunpack.c.l.b16 %v1478
    %v1644 = vunpack.c.h.b16 %v1478
    %v1645 = vunpack.c.l.b16 %v1479
    %v1646 = vunpack.c.h.b16 %v1479
    %v1647 = vunpack.c.l.b16 %v1480
    %v1648 = vunpack.c.h.b16 %v1480
    %v1649 = vunpack.c.l.b16 %v1481
    %v1650 = vunpack.c.h.b16 %v1481
    %v1651 = vunpack.c.l.b16 %v1482
    %v1652 = vunpack.c.h.b16 %v1482
    %v1653 = vunpack.c.l.b16 %v1483
    %v1654 = vunpack.c.h.b16 %v1483
    %v1655 = vunpack.c.l.b16 %v1484
    %v1656 = vunpack.c.h.b16 %v1484
    %v1657 = vunpack.c.l.b16 %v1485
    %v1658 = vunpack.c.h.b16 %v1485
    %v1659 = vunpack.c.l.b16 %v1486
    %v1660 = vunpack.c.h.b16 %v1486
    %v1661 = vunpack.c.l.b16 %v1487
    %v1662 = vunpack.c.h.b16 %v1487
    %v1663 = vunpack.c.l.b16 %v1488
    %v1664 = vunpack.c.h.b16 %v1488
    %v1665 = vunpack.c.l.b16 %v1489
    %v1666 = vunpack.c.h.b16 %v1489
    %v1667 = vunpack.c.l.b16 %v1490
    %v1668 = vunpack.c.h.b16 %v1490
    %v1669 = vunpack.c.l.b16 %v1491
    %v1670 = vunpack.c.h.b16 %v1491
    %v1671 = vunpack.c.l.b16 %v1492
    %v1672 = vunpack.c.h.b16 %v1492
    %v1673 = vunpack.c.l.b16 %v1493
    %v1674 = vunpack.c.h.b16 %v1493
    %v1675 = vunpack.c.l.b16 %v1494
    %v1676 = vunpack.c.h.b16 %v1494
    %v1677 = vunpack.c.l.b16 %v1495
    %v1678 = vunpack.c.h.b16 %v1495
    %v1679 = vunpack.c.l.b16 %v1496
    %v1680 = vunpack.c.h.b16 %v1496
    %v1681 = vunpack.c.l.b16 %v1497
    %v1682 = vunpack.c.h.b16 %v1497
    %v1683 = vunpack.c.l.b16 %v1498
    %v1684 = vunpack.c.h.b16 %v1498
    %v1685 = vunpack.c.l.b16 %v1499
    %v1686 = vunpack.c.h.b16 %v1499
    %v1687 = vunpack.c.l.b16 %v1500
    %v1688 = vunpack.c.h.b16 %v1500
    %v1689 = vunpack.c.l.b16 %v1501
    %v1690 = vunpack.c.h.b16 %v1501
    %v1691 = vunpack.c.l.b16 %v1502
    %v1692 = vunpack.c.h.b16 %v1502
    %v1693 = vunpack.c.l.b16 %v1503
    %v1694 = vunpack.c.h.b16 %v1503
    %v1695 = vunpack.c.l.b16 %v1504
    %v1696 = vunpack.c.h.b16 %v1504
    %v1697 = vunpack.c.l.b16 %v1505
    %v1698 = vunpack.c.h.b16 %v1505
    %v1699 = vunpack.c.l.b16 %v1506
    %v1700 = vunpack.c.h.b16 %v1506
    %v1701 = vunpack.c.l.b16 %v1507
    %v1702 = vunpack.c.h.b16 %v1507
    %v1703 = vunpack.c.l.b16 %v1508
    %v1704 = vunpack.c.h.b16 %v1508
    %v1705 = vunpack.c.l.b16 %v1509
    %v1706 = vunpack.c.h.b16 %v1509
    %v1707 = vunpack.c.l.b16 %v1510
    %v1708 = vunpack.c.h.b16 %v1510
    %v1709 = vunpack.c.l.b16 %v1511
    %v1710 = vunpack.c.h.b16 %v1511
    %v1711 = vunpack.c.l.b16 %v1512
    %v1712 = vunpack.c.h.b16 %v1512
    %v1713 = vunpack.c.l.b16 %v1513
    %v1714 = vunpack.c.h.b16 %v1513
    %v1715 = vunpack.c.l.b16 %v1514
    %v1716 = vunpack.c.h.b16 %v1514
    %v1717 = vunpack.c.l.b16 %v1515
    %v1718 = vunpack.c.h.b16 %v1515
    %v1719 = vpack.c.b16 %v1595, %v1591
    %v1720 = vpack.c.b16 %v1596, %v1592
    %v1721 = vpack.c.b16 %v1597, %v1593
    %v1722 = vpack.c.b16 %v1598, %v1594
    %v1723 = vpack.c.b16 %v1603, %v1599
    %v1724 = vpack.c.b16 %v1604, %v1600
    %v1725 = vpack.c.b16 %v1605, %v1601
    %v1726 = vpack.c.b16 %v1606, %v1602
    %v1727 = vpack.c.b16 %v1611, %v1607
    %v1728 = vpack.c.b16 %v1612, %v1608
    %v1729 = vpack.c.b16 %v1613, %v1609
    %v1730 = vpack.c.b16 %v1614, %v1610
    %v1731 = vpack.c.b16 %v1619, %v1615
    %v1732 = vpack.c.b16 %v1620, %v1616
    %v1733 = vpack.c.b16 %v1621, %v1617
    %v1734 = vpack.c.b16 %v1622, %v1618
    %v1735 = vpack.c.b16 %v1627, %v1623
    %v1736 = vpack.c.b16 %v1628, %v1624
    %v1737 = vpack.c.b16 %v1629, %v1625
    %v1738 = vpack.c.b16 %v1630, %v1626
    %v1739 = vpack.c.b16 %v1635, %v1631
    %v1740 = vpack.c.b16 %v1636, %v1632
    %v1741 = vpack.c.b16 %v1637, %v1633
    %v1742 = vpack.c.b16 %v1638, %v1634
    %v1743 = vpack.c.b16 %v1643, %v1639
    %v1744 = vpack.c.b16 %v1644, %v1640
    %v1745 = vpack.c.b16 %v1645, %v1641
    %v1746 = vpack.c.b16 %v1646, %v1642
    %v1747 = vpack.c.b16 %v1651, %v1647
    %v1748 = vpack.c.b16 %v1652, %v1648
    %v1749 = vpack.c.b16 %v1653, %v1649
    %v1750 = vpack.c.b16 %v1654, %v1650
    %v1751 = vpack.c.b16 %v1659, %v1655
    %v1752 = vpack.c.b16 %v1660, %v1656
    %v1753 = vpack.c.b16 %v1661, %v1657
    %v1754 = vpack.c.b16 %v1662, %v1658
    %v1755 = vpack.c.b16 %v1667, %v1663
    %v1756 = vpack.c.b16 %v1668, %v1664
    %v1757 = vpack.c.b16 %v1669, %v1665
    %v1758 = vpack.c.b16 %v1670, %v1666
    %v1759 = vpack.c.b16 %v1675, %v1671
    %v1760 = vpack.c.b16 %v1676, %v1672
    %v1761 = vpack.c.b16 %v1677, %v1673
    %v1762 = vpack.c.b16 %v1678, %v1674
    %v1763 = vpack.c.b16 %v1683, %v1679
    %v1764 = vpack.c.b16 %v1684, %v1680
    %v1765 = vpack.c.b16 %v1685, %v1681
    %v1766 = vpack.c.b16 %v1686, %v1682
    %v1767 = vpack.c.b16 %v1691, %v1687
    %v1768 = vpack.c.b16 %v1692, %v1688
    %v1769 = vpack.c.b16 %v1693, %v1689
    %v1770 = vpack.c.b16 %v1694, %v1690
    %v1771 = vpack.c.b16 %v1699, %v1695
    %v1772 = vpack.c.b16 %v1700, %v1696
    %v1773 = vpack.c.b16 %v1701, %v1697
    %v1774 = vpack.c.b16 %v1702, %v1698
    %v1775 = vpack.c.b16 %v1707, %v1703
    %v1776 = vpack.c.b16 %v1708, %v1704
    %v1777 = vpack.c.b16 %v1709, %v1705
    %v1778 = vpack.c.b16 %v1710, %v1706
    %v1779 = vpack.c.b16 %v1715, %v1711
    %v1780 = vpack.c.b16 %v1716, %v1712
    %v1781 = vpack.c.b16 %v1717, %v1713
    %v1782 = vpack.c.b16 %v1718, %v1714
    %1847 = vmatpush.bf16.msra.mxu0 %v1747
    %1848 = vmatpush.bf16.msra.mxu0 %v1743
    %1849 = vmatpush.bf16.msra.mxu0 %v1739
    %1850 = vmatpush.bf16.msra.mxu0 %v1735
    %1851 = vmatpush.bf16.msra.mxu0 %v1731
    %1852 = vmatpush.bf16.msra.mxu0 %v1727
    %1853 = vmatpush.bf16.msra.mxu0 %v1723
    %1854 = vmatpush.bf16.msra.mxu0 %v1719
    %1855 = vmatmul.bf16.gmra.mxu0 %v1449
    %v1856 = vpop.f32.mrf.mxu0
    %v1857 = vadd.f32 %v1519, %v1856
    %v1858 = vpop.f32.mrf.mxu0
    %v1859 = vadd.f32 %v1519, %v1858
    %1860 = vdwg.mxu0
    %1861 = vmatpush.bf16.msra.mxu0 %v1779
    %1862 = vmatpush.bf16.msra.mxu0 %v1775
    %1863 = vmatpush.bf16.msra.mxu0 %v1771
    %1864 = vmatpush.bf16.msra.mxu0 %v1767
    %1865 = vmatpush.bf16.msra.mxu0 %v1763
    %1866 = vmatpush.bf16.msra.mxu0 %v1759
    %1867 = vmatpush.bf16.msra.mxu0 %v1755
    %1868 = vmatpush.bf16.msra.mxu0 %v1751
    %1869 = vmatmul.bf16.gmra.mxu0 %v1427
    %v1870 = vpop.f32.mrf.mxu0
    %v1871 = vadd.f32 %v1857, %v1870
    %v1872 = vpop.f32.mrf.mxu0
    %v1873 = vadd.f32 %v1859, %v1872
    %1874 = vdwg.mxu0
    %1875 = vmatpush.bf16.msra.mxu0 %v1748
    %1876 = vmatpush.bf16.msra.mxu0 %v1744
    %1877 = vmatpush.bf16.msra.mxu0 %v1740
    %1878 = vmatpush.bf16.msra.mxu0 %v1736
    %1879 = vmatpush.bf16.msra.mxu0 %v1732
    %1880 = vmatpush.bf16.msra.mxu0 %v1728
    %1881 = vmatpush.bf16.msra.mxu0 %v1724
    %1882 = vmatpush.bf16.msra.mxu0 %v1720
    %1883 = vmatmul.bf16.gmra.mxu0 %v1449
    %v1884 = vpop.f32.mrf.mxu0
    %v1885 = vadd.f32 %v1520, %v1884
    %v1886 = vpop.f32.mrf.mxu0
    %v1887 = vadd.f32 %v1520, %v1886
    %1888 = vdwg.mxu0
    %1889 = vmatpush.bf16.msra.mxu0 %v1780
    %1890 = vmatpush.bf16.msra.mxu0 %v1776
    %1891 = vmatpush.bf16.msra.mxu0 %v1772
    %1892 = vmatpush.bf16.msra.mxu0 %v1768
    %1893 = vmatpush.bf16.msra.mxu0 %v1764
    %1894 = vmatpush.bf16.msra.mxu0 %v1760
    %1895 = vmatpush.bf16.msra.mxu0 %v1756
    %1896 = vmatpush.bf16.msra.mxu0 %v1752
    %1897 = vmatmul.bf16.gmra.mxu0 %v1427
    %v1898 = vpop.f32.mrf.mxu0
    %v1899 = vadd.f32 %v1885, %v1898
    %v1900 = vpop.f32.mrf.mxu0
    %v1901 = vadd.f32 %v1887, %v1900
    %1902 = vdwg.mxu0
    %1903 = vmatpush.bf16.msra.mxu0 %v1749
    %1904 = vmatpush.bf16.msra.mxu0 %v1745
    %1905 = vmatpush.bf16.msra.mxu0 %v1741
    %1906 = vmatpush.bf16.msra.mxu0 %v1737
    %1907 = vmatpush.bf16.msra.mxu0 %v1733
    %1908 = vmatpush.bf16.msra.mxu0 %v1729
    %1909 = vmatpush.bf16.msra.mxu0 %v1725
    %1910 = vmatpush.bf16.msra.mxu0 %v1721
    %1911 = vmatmul.bf16.gmra.mxu0 %v1449
    %v1912 = vpop.f32.mrf.mxu0
    %v1913 = vadd.f32 %v1521, %v1912
    %v1914 = vpop.f32.mrf.mxu0
    %v1915 = vadd.f32 %v1521, %v1914
    %1916 = vdwg.mxu0
    %1917 = vmatpush.bf16.msra.mxu0 %v1781
    %1918 = vmatpush.bf16.msra.mxu0 %v1777
    %1919 = vmatpush.bf16.msra.mxu0 %v1773
    %1920 = vmatpush.bf16.msra.mxu0 %v1769
    %1921 = vmatpush.bf16.msra.mxu0 %v1765
    %1922 = vmatpush.bf16.msra.mxu0 %v1761
    %1923 = vmatpush.bf16.msra.mxu0 %v1757
    %1924 = vmatpush.bf16.msra.mxu0 %v1753
    %1925 = vmatmul.bf16.gmra.mxu0 %v1427
    %v1926 = vpop.f32.mrf.mxu0
    %v1927 = vadd.f32 %v1913, %v1926
    %v1928 = vpop.f32.mrf.mxu0
    %v1929 = vadd.f32 %v1915, %v1928
    %1930 = vdwg.mxu0
    %1931 = vmatpush.bf16.msra.mxu0 %v1750
    %1932 = vmatpush.bf16.msra.mxu0 %v1746
    %1933 = vmatpush.bf16.msra.mxu0 %v1742
    %1934 = vmatpush.bf16.msra.mxu0 %v1738
    %1935 = vmatpush.bf16.msra.mxu0 %v1734
    %1936 = vmatpush.bf16.msra.mxu0 %v1730
    %1937 = vmatpush.bf16.msra.mxu0 %v1726
    %1938 = vmatpush.bf16.msra.mxu0 %v1722
    %1939 = vmatmul.bf16.gmra.mxu0 %v1449
    %v1940 = vpop.f32.mrf.mxu0
    %v1941 = vadd.f32 %v1522, %v1940
    %v1942 = vpop.f32.mrf.mxu0
    %v1943 = vadd.f32 %v1522, %v1942
    %1944 = vdwg.mxu0
    %1945 = vmatpush.bf16.msra.mxu0 %v1782
    %1946 = vmatpush.bf16.msra.mxu0 %v1778
    %1947 = vmatpush.bf16.msra.mxu0 %v1774
    %1948 = vmatpush.bf16.msra.mxu0 %v1770
    %1949 = vmatpush.bf16.msra.mxu0 %v1766
    %1950 = vmatpush.bf16.msra.mxu0 %v1762
    %1951 = vmatpush.bf16.msra.mxu0 %v1758
    %1952 = vmatpush.bf16.msra.mxu0 %v1754
    %1953 = vmatmul.bf16.gmra.mxu0 %v1427
    %v1954 = vpop.f32.mrf.mxu0
    %v1955 = vadd.f32 %v1941, %v1954
    %v1956 = vpop.f32.mrf.mxu0
    %v1957 = vadd.f32 %v1943, %v1956
    %1958 = vdwg.mxu0
    %v1959 = vxor.u32 %v1871, 2147483648
    %v1960 = vxor.u32 %v1873, 2147483648
    %v1961 = vmul.f32 %v1959, 1.442695
    %v1962 = vpow.pop %v1961
    %v1963 = vmul.f32 %v1960, 1.442695
    %v1964 = vpow.pop %v1963
    %v1965 = vadd.f32 %v1962, 1.0
    %v1966 = vadd.f32 %v1964, 1.0
    %v1967 = vrcp.pop %v1965
    %v1968 = vmul.f32 %v1965, %v1967
    %v1969 = vsub.f32 1.0, %v1968
    %v1970 = vmul.f32 %v1967, %v1969
    %v1971 = vadd.f32 %v1967, %v1970
    %vm1972 = vweird.f32 %v1965
    %vm1973 = vweird.f32 %v1967
    %vm1974 = vmor %vm1972, %vm1973
    %v1975 = vsel %vm1974, %v1967, %v1971
    %v1976 = vand.u32 2147483647, %v1965
    %vm1977 = vcmp.eq.f32.partialorder %v1976, 8.507059e+37
    %v1978 = vand.u32 %v1965, 2147483648
    %v1979 = vor.u32 1.1754944e-38, %v1978
    %v1980 = vsel %vm1977, %v1979, %v1975
    %v1981 = vmul.f32 1.0, %v1980
    %v1982 = vrcp.pop %v1966
    %v1983 = vmul.f32 %v1966, %v1982
    %v1984 = vsub.f32 1.0, %v1983
    %v1985 = vmul.f32 %v1982, %v1984
    %v1986 = vadd.f32 %v1982, %v1985
    %vm1987 = vweird.f32 %v1966
    %vm1988 = vweird.f32 %v1982
    %vm1989 = vmor %vm1987, %vm1988
    %v1990 = vsel %vm1989, %v1982, %v1986
    %v1991 = vand.u32 2147483647, %v1966
    %vm1992 = vcmp.eq.f32.partialorder %v1991, 8.507059e+37
    %v1993 = vand.u32 %v1966, 2147483648
    %v1994 = vor.u32 1.1754944e-38, %v1993
    %v1995 = vsel %vm1992, %v1994, %v1990
    %v1996 = vmul.f32 1.0, %v1995
    %v1997 = vxor.u32 %v1899, 2147483648
    %v1998 = vxor.u32 %v1901, 2147483648
    %v1999 = vmul.f32 %v1997, 1.442695
    %v2000 = vpow.pop %v1999
    %v2001 = vmul.f32 %v1998, 1.442695
    %v2002 = vpow.pop %v2001
    %v2003 = vadd.f32 %v2000, 1.0
    %v2004 = vadd.f32 %v2002, 1.0
    %v2005 = vrcp.pop %v2003
    %v2006 = vmul.f32 %v2003, %v2005
    %v2007 = vsub.f32 1.0, %v2006
    %v2008 = vmul.f32 %v2005, %v2007
    %v2009 = vadd.f32 %v2005, %v2008
    %vm2010 = vweird.f32 %v2003
    %vm2011 = vweird.f32 %v2005
    %vm2012 = vmor %vm2010, %vm2011
    %v2013 = vsel %vm2012, %v2005, %v2009
    %v2014 = vand.u32 2147483647, %v2003
    %vm2015 = vcmp.eq.f32.partialorder %v2014, 8.507059e+37
    %v2016 = vand.u32 %v2003, 2147483648
    %v2017 = vor.u32 1.1754944e-38, %v2016
    %v2018 = vsel %vm2015, %v2017, %v2013
    %v2019 = vmul.f32 1.0, %v2018
    %v2020 = vrcp.pop %v2004
    %v2021 = vmul.f32 %v2004, %v2020
    %v2022 = vsub.f32 1.0, %v2021
    %v2023 = vmul.f32 %v2020, %v2022
    %v2024 = vadd.f32 %v2020, %v2023
    %vm2025 = vweird.f32 %v2004
    %vm2026 = vweird.f32 %v2020
    %vm2027 = vmor %vm2025, %vm2026
    %v2028 = vsel %vm2027, %v2020, %v2024
    %v2029 = vand.u32 2147483647, %v2004
    %vm2030 = vcmp.eq.f32.partialorder %v2029, 8.507059e+37
    %v2031 = vand.u32 %v2004, 2147483648
    %v2032 = vor.u32 1.1754944e-38, %v2031
    %v2033 = vsel %vm2030, %v2032, %v2028
    %v2034 = vmul.f32 1.0, %v2033
    %v2035 = vmul.f32 %v1981, %v1955
    %v2036 = vmul.f32 %v1996, %v1957
    %v2037 = vadd.f32 %v1927, %v2035
    %v2038 = vadd.f32 %v1929, %v2036
    %v2039 = vtanh.pop %v2037
    %v2040 = vtanh.pop %v2038
    %v2041 = vsub.f32 1.0, %v2019
    %v2042 = vsub.f32 1.0, %v2034
    %v2043 = vmul.f32 %v2041, %v2039
    %v2044 = vmul.f32 %v2042, %v2040
    %v2045 = vmul.f32 %v2019, %v1419
    %v2046 = vmul.f32 %v2034, %v1420
    %v2047 = vadd.f32 %v2043, %v2045
    %v2048 = vadd.f32 %v2044, %v2046
    %2049 = vst [vmem:[#allocation2] sm:$0xff] %v2047
    %2050 = vst [vmem:[#allocation2 + $0x8] sm:$0xff] %v2048
    %v2051 = vld [vmem:[#allocation2] sm:$0xff]
    %v2052 = vld [vmem:[#allocation2 + $0x8] sm:$0xff]
    %v2053 = vpack.c.bf16 %v2051, %v2051
    %v2054 = vpack.c.bf16 %v2052, %v2052
    %v2057 = vunpack.c.l.b16 %v2053
    %v2058 = vunpack.c.l.b16 %v2054
    %v2059 = vpack.c.b16 %v2058, %v2057
    %2061 = vmatpush.bf16.msra.mxu0 0
    %2062 = vmatpush.bf16.msra.mxu0 0
    %2063 = vmatpush.bf16.msra.mxu0 0
    %2064 = vmatpush.bf16.msra.mxu0 0
    %2065 = vmatpush.bf16.msra.mxu0 0
    %2066 = vmatpush.bf16.msra.mxu0 0
    %2067 = vmatpush.bf16.msra.mxu0 0
    %2068 = vmatpush.bf16.msra.mxu0 %v2059
    %2069 = vmatmul.bf16.gmra.mxu0 %v165
    %v2070 = vpop.f32.mrf.mxu0
    %v2071 = vadd.f32 0.0, %v2070
    %v2072 = vpop.f32.mrf.mxu0
    %v2073 = vadd.f32 0.0, %v2072
    %2074 = vdwg.mxu0
    %v2075 = vpack.c.bf16 %v2071, %v2071
    %v2076 = vpack.c.bf16 %v2073, %v2073
    %v2079 = vunpack.c.l.b16 %v2075
    %v2080 = vunpack.c.l.b16 %v2076
    %v2081 = vpack.c.b16 %v2080, %v2079
    %s2083 = scalar_lea.vmem [#allocation9], 1536
    %v2084 = vld [vmem:[%s2083] sm:$0xff]
    %v2085 = vld [vmem:[%s2083 + $0x8] sm:$0xff]
    %v2086 = vld [vmem:[%s2083 + $0x10] sm:$0xff]
    %v2087 = vld [vmem:[%s2083 + $0x18] sm:$0xff]
    %v2088 = vld [vmem:[%s2083 + $0x20] sm:$0xff]
    %v2089 = vld [vmem:[%s2083 + $0x28] sm:$0xff]
    %v2090 = vld [vmem:[%s2083 + $0x30] sm:$0xff]
    %v2091 = vld [vmem:[%s2083 + $0x38] sm:$0xff]
    %v2092 = vld [vmem:[%s2083 + $0x40] sm:$0xff]
    %v2093 = vld [vmem:[%s2083 + $0x48] sm:$0xff]
    %v2094 = vld [vmem:[%s2083 + $0x50] sm:$0xff]
    %v2095 = vld [vmem:[%s2083 + $0x58] sm:$0xff]
    %v2096 = vld [vmem:[%s2083 + $0x60] sm:$0xff]
    %v2097 = vld [vmem:[%s2083 + $0x68] sm:$0xff]
    %v2098 = vld [vmem:[%s2083 + $0x70] sm:$0xff]
    %v2099 = vld [vmem:[%s2083 + $0x78] sm:$0xff]
    %v2100 = vld [vmem:[%s2083 + $0x80] sm:$0xff]
    %v2101 = vld [vmem:[%s2083 + $0x88] sm:$0xff]
    %v2102 = vld [vmem:[%s2083 + $0x90] sm:$0xff]
    %v2103 = vld [vmem:[%s2083 + $0x98] sm:$0xff]
    %v2104 = vld [vmem:[%s2083 + $0xa0] sm:$0xff]
    %v2105 = vld [vmem:[%s2083 + $0xa8] sm:$0xff]
    %v2106 = vld [vmem:[%s2083 + $0xb0] sm:$0xff]
    %v2107 = vld [vmem:[%s2083 + $0xb8] sm:$0xff]
    %v2108 = vld [vmem:[%s2083 + $0xc0] sm:$0xff]
    %v2109 = vld [vmem:[%s2083 + $0xc8] sm:$0xff]
    %v2110 = vld [vmem:[%s2083 + $0xd0] sm:$0xff]
    %v2111 = vld [vmem:[%s2083 + $0xd8] sm:$0xff]
    %v2112 = vld [vmem:[%s2083 + $0xe0] sm:$0xff]
    %v2113 = vld [vmem:[%s2083 + $0xe8] sm:$0xff]
    %v2114 = vld [vmem:[%s2083 + $0xf0] sm:$0xff]
    %v2115 = vld [vmem:[%s2083 + $0xf8] sm:$0xff]
    %v2116 = vld [vmem:[%s2083 + $0x100] sm:$0xff]
    %v2117 = vld [vmem:[%s2083 + $0x108] sm:$0xff]
    %v2118 = vld [vmem:[%s2083 + $0x110] sm:$0xff]
    %v2119 = vld [vmem:[%s2083 + $0x118] sm:$0xff]
    %v2120 = vld [vmem:[%s2083 + $0x120] sm:$0xff]
    %v2121 = vld [vmem:[%s2083 + $0x128] sm:$0xff]
    %v2122 = vld [vmem:[%s2083 + $0x130] sm:$0xff]
    %v2123 = vld [vmem:[%s2083 + $0x138] sm:$0xff]
    %v2124 = vld [vmem:[%s2083 + $0x140] sm:$0xff]
    %v2125 = vld [vmem:[%s2083 + $0x148] sm:$0xff]
    %v2126 = vld [vmem:[%s2083 + $0x150] sm:$0xff]
    %v2127 = vld [vmem:[%s2083 + $0x158] sm:$0xff]
    %v2128 = vld [vmem:[%s2083 + $0x160] sm:$0xff]
    %v2129 = vld [vmem:[%s2083 + $0x168] sm:$0xff]
    %v2130 = vld [vmem:[%s2083 + $0x170] sm:$0xff]
    %v2131 = vld [vmem:[%s2083 + $0x178] sm:$0xff]
    %v2132 = vld [vmem:[%s2083 + $0x180] sm:$0xff]
    %v2133 = vld [vmem:[%s2083 + $0x188] sm:$0xff]
    %v2134 = vld [vmem:[%s2083 + $0x190] sm:$0xff]
    %v2135 = vld [vmem:[%s2083 + $0x198] sm:$0xff]
    %v2136 = vld [vmem:[%s2083 + $0x1a0] sm:$0xff]
    %v2137 = vld [vmem:[%s2083 + $0x1a8] sm:$0xff]
    %v2138 = vld [vmem:[%s2083 + $0x1b0] sm:$0xff]
    %v2139 = vld [vmem:[%s2083 + $0x1b8] sm:$0xff]
    %v2140 = vld [vmem:[%s2083 + $0x1c0] sm:$0xff]
    %v2141 = vld [vmem:[%s2083 + $0x1c8] sm:$0xff]
    %v2142 = vld [vmem:[%s2083 + $0x1d0] sm:$0xff]
    %v2143 = vld [vmem:[%s2083 + $0x1d8] sm:$0xff]
    %v2144 = vld [vmem:[%s2083 + $0x1e0] sm:$0xff]
    %v2145 = vld [vmem:[%s2083 + $0x1e8] sm:$0xff]
    %v2146 = vld [vmem:[%s2083 + $0x1f0] sm:$0xff]
    %v2147 = vld [vmem:[%s2083 + $0x1f8] sm:$0xff]
    %s2148 = scalar_lea.vmem [#allocation10], 12
    %v2149 = vld [vmem:[%s2148] sm:$0xf]
    %v2151 = vperm.slane %v2149, 0
    %v2152 = vperm.slane %v2149, 1
    %v2153 = vperm.slane %v2149, 2
    %v2154 = vperm.slane %v2149, 3
    %v2223 = vunpack.c.l.b16 %v2084
    %v2224 = vunpack.c.h.b16 %v2084
    %v2225 = vunpack.c.l.b16 %v2085
    %v2226 = vunpack.c.h.b16 %v2085
    %v2227 = vunpack.c.l.b16 %v2086
    %v2228 = vunpack.c.h.b16 %v2086
    %v2229 = vunpack.c.l.b16 %v2087
    %v2230 = vunpack.c.h.b16 %v2087
    %v2231 = vunpack.c.l.b16 %v2088
    %v2232 = vunpack.c.h.b16 %v2088
    %v2233 = vunpack.c.l.b16 %v2089
    %v2234 = vunpack.c.h.b16 %v2089
    %v2235 = vunpack.c.l.b16 %v2090
    %v2236 = vunpack.c.h.b16 %v2090
    %v2237 = vunpack.c.l.b16 %v2091
    %v2238 = vunpack.c.h.b16 %v2091
    %v2239 = vunpack.c.l.b16 %v2092
    %v2240 = vunpack.c.h.b16 %v2092
    %v2241 = vunpack.c.l.b16 %v2093
    %v2242 = vunpack.c.h.b16 %v2093
    %v2243 = vunpack.c.l.b16 %v2094
    %v2244 = vunpack.c.h.b16 %v2094
    %v2245 = vunpack.c.l.b16 %v2095
    %v2246 = vunpack.c.h.b16 %v2095
    %v2247 = vunpack.c.l.b16 %v2096
    %v2248 = vunpack.c.h.b16 %v2096
    %v2249 = vunpack.c.l.b16 %v2097
    %v2250 = vunpack.c.h.b16 %v2097
    %v2251 = vunpack.c.l.b16 %v2098
    %v2252 = vunpack.c.h.b16 %v2098
    %v2253 = vunpack.c.l.b16 %v2099
    %v2254 = vunpack.c.h.b16 %v2099
    %v2255 = vunpack.c.l.b16 %v2100
    %v2256 = vunpack.c.h.b16 %v2100
    %v2257 = vunpack.c.l.b16 %v2101
    %v2258 = vunpack.c.h.b16 %v2101
    %v2259 = vunpack.c.l.b16 %v2102
    %v2260 = vunpack.c.h.b16 %v2102
    %v2261 = vunpack.c.l.b16 %v2103
    %v2262 = vunpack.c.h.b16 %v2103
    %v2263 = vunpack.c.l.b16 %v2104
    %v2264 = vunpack.c.h.b16 %v2104
    %v2265 = vunpack.c.l.b16 %v2105
    %v2266 = vunpack.c.h.b16 %v2105
    %v2267 = vunpack.c.l.b16 %v2106
    %v2268 = vunpack.c.h.b16 %v2106
    %v2269 = vunpack.c.l.b16 %v2107
    %v2270 = vunpack.c.h.b16 %v2107
    %v2271 = vunpack.c.l.b16 %v2108
    %v2272 = vunpack.c.h.b16 %v2108
    %v2273 = vunpack.c.l.b16 %v2109
    %v2274 = vunpack.c.h.b16 %v2109
    %v2275 = vunpack.c.l.b16 %v2110
    %v2276 = vunpack.c.h.b16 %v2110
    %v2277 = vunpack.c.l.b16 %v2111
    %v2278 = vunpack.c.h.b16 %v2111
    %v2279 = vunpack.c.l.b16 %v2112
    %v2280 = vunpack.c.h.b16 %v2112
    %v2281 = vunpack.c.l.b16 %v2113
    %v2282 = vunpack.c.h.b16 %v2113
    %v2283 = vunpack.c.l.b16 %v2114
    %v2284 = vunpack.c.h.b16 %v2114
    %v2285 = vunpack.c.l.b16 %v2115
    %v2286 = vunpack.c.h.b16 %v2115
    %v2287 = vunpack.c.l.b16 %v2116
    %v2288 = vunpack.c.h.b16 %v2116
    %v2289 = vunpack.c.l.b16 %v2117
    %v2290 = vunpack.c.h.b16 %v2117
    %v2291 = vunpack.c.l.b16 %v2118
    %v2292 = vunpack.c.h.b16 %v2118
    %v2293 = vunpack.c.l.b16 %v2119
    %v2294 = vunpack.c.h.b16 %v2119
    %v2295 = vunpack.c.l.b16 %v2120
    %v2296 = vunpack.c.h.b16 %v2120
    %v2297 = vunpack.c.l.b16 %v2121
    %v2298 = vunpack.c.h.b16 %v2121
    %v2299 = vunpack.c.l.b16 %v2122
    %v2300 = vunpack.c.h.b16 %v2122
    %v2301 = vunpack.c.l.b16 %v2123
    %v2302 = vunpack.c.h.b16 %v2123
    %v2303 = vunpack.c.l.b16 %v2124
    %v2304 = vunpack.c.h.b16 %v2124
    %v2305 = vunpack.c.l.b16 %v2125
    %v2306 = vunpack.c.h.b16 %v2125
    %v2307 = vunpack.c.l.b16 %v2126
    %v2308 = vunpack.c.h.b16 %v2126
    %v2309 = vunpack.c.l.b16 %v2127
    %v2310 = vunpack.c.h.b16 %v2127
    %v2311 = vunpack.c.l.b16 %v2128
    %v2312 = vunpack.c.h.b16 %v2128
    %v2313 = vunpack.c.l.b16 %v2129
    %v2314 = vunpack.c.h.b16 %v2129
    %v2315 = vunpack.c.l.b16 %v2130
    %v2316 = vunpack.c.h.b16 %v2130
    %v2317 = vunpack.c.l.b16 %v2131
    %v2318 = vunpack.c.h.b16 %v2131
    %v2319 = vunpack.c.l.b16 %v2132
    %v2320 = vunpack.c.h.b16 %v2132
    %v2321 = vunpack.c.l.b16 %v2133
    %v2322 = vunpack.c.h.b16 %v2133
    %v2323 = vunpack.c.l.b16 %v2134
    %v2324 = vunpack.c.h.b16 %v2134
    %v2325 = vunpack.c.l.b16 %v2135
    %v2326 = vunpack.c.h.b16 %v2135
    %v2327 = vunpack.c.l.b16 %v2136
    %v2328 = vunpack.c.h.b16 %v2136
    %v2329 = vunpack.c.l.b16 %v2137
    %v2330 = vunpack.c.h.b16 %v2137
    %v2331 = vunpack.c.l.b16 %v2138
    %v2332 = vunpack.c.h.b16 %v2138
    %v2333 = vunpack.c.l.b16 %v2139
    %v2334 = vunpack.c.h.b16 %v2139
    %v2335 = vunpack.c.l.b16 %v2140
    %v2336 = vunpack.c.h.b16 %v2140
    %v2337 = vunpack.c.l.b16 %v2141
    %v2338 = vunpack.c.h.b16 %v2141
    %v2339 = vunpack.c.l.b16 %v2142
    %v2340 = vunpack.c.h.b16 %v2142
    %v2341 = vunpack.c.l.b16 %v2143
    %v2342 = vunpack.c.h.b16 %v2143
    %v2343 = vunpack.c.l.b16 %v2144
    %v2344 = vunpack.c.h.b16 %v2144
    %v2345 = vunpack.c.l.b16 %v2145
    %v2346 = vunpack.c.h.b16 %v2145
    %v2347 = vunpack.c.l.b16 %v2146
    %v2348 = vunpack.c.h.b16 %v2146
    %v2349 = vunpack.c.l.b16 %v2147
    %v2350 = vunpack.c.h.b16 %v2147
    %v2351 = vpack.c.b16 %v2227, %v2223
    %v2352 = vpack.c.b16 %v2228, %v2224
    %v2353 = vpack.c.b16 %v2229, %v2225
    %v2354 = vpack.c.b16 %v2230, %v2226
    %v2355 = vpack.c.b16 %v2235, %v2231
    %v2356 = vpack.c.b16 %v2236, %v2232
    %v2357 = vpack.c.b16 %v2237, %v2233
    %v2358 = vpack.c.b16 %v2238, %v2234
    %v2359 = vpack.c.b16 %v2243, %v2239
    %v2360 = vpack.c.b16 %v2244, %v2240
    %v2361 = vpack.c.b16 %v2245, %v2241
    %v2362 = vpack.c.b16 %v2246, %v2242
    %v2363 = vpack.c.b16 %v2251, %v2247
    %v2364 = vpack.c.b16 %v2252, %v2248
    %v2365 = vpack.c.b16 %v2253, %v2249
    %v2366 = vpack.c.b16 %v2254, %v2250
    %v2367 = vpack.c.b16 %v2259, %v2255
    %v2368 = vpack.c.b16 %v2260, %v2256
    %v2369 = vpack.c.b16 %v2261, %v2257
    %v2370 = vpack.c.b16 %v2262, %v2258
    %v2371 = vpack.c.b16 %v2267, %v2263
    %v2372 = vpack.c.b16 %v2268, %v2264
    %v2373 = vpack.c.b16 %v2269, %v2265
    %v2374 = vpack.c.b16 %v2270, %v2266
    %v2375 = vpack.c.b16 %v2275, %v2271
    %v2376 = vpack.c.b16 %v2276, %v2272
    %v2377 = vpack.c.b16 %v2277, %v2273
    %v2378 = vpack.c.b16 %v2278, %v2274
    %v2379 = vpack.c.b16 %v2283, %v2279
    %v2380 = vpack.c.b16 %v2284, %v2280
    %v2381 = vpack.c.b16 %v2285, %v2281
    %v2382 = vpack.c.b16 %v2286, %v2282
    %v2383 = vpack.c.b16 %v2291, %v2287
    %v2384 = vpack.c.b16 %v2292, %v2288
    %v2385 = vpack.c.b16 %v2293, %v2289
    %v2386 = vpack.c.b16 %v2294, %v2290
    %v2387 = vpack.c.b16 %v2299, %v2295
    %v2388 = vpack.c.b16 %v2300, %v2296
    %v2389 = vpack.c.b16 %v2301, %v2297
    %v2390 = vpack.c.b16 %v2302, %v2298
    %v2391 = vpack.c.b16 %v2307, %v2303
    %v2392 = vpack.c.b16 %v2308, %v2304
    %v2393 = vpack.c.b16 %v2309, %v2305
    %v2394 = vpack.c.b16 %v2310, %v2306
    %v2395 = vpack.c.b16 %v2315, %v2311
    %v2396 = vpack.c.b16 %v2316, %v2312
    %v2397 = vpack.c.b16 %v2317, %v2313
    %v2398 = vpack.c.b16 %v2318, %v2314
    %v2399 = vpack.c.b16 %v2323, %v2319
    %v2400 = vpack.c.b16 %v2324, %v2320
    %v2401 = vpack.c.b16 %v2325, %v2321
    %v2402 = vpack.c.b16 %v2326, %v2322
    %v2403 = vpack.c.b16 %v2331, %v2327
    %v2404 = vpack.c.b16 %v2332, %v2328
    %v2405 = vpack.c.b16 %v2333, %v2329
    %v2406 = vpack.c.b16 %v2334, %v2330
    %v2407 = vpack.c.b16 %v2339, %v2335
    %v2408 = vpack.c.b16 %v2340, %v2336
    %v2409 = vpack.c.b16 %v2341, %v2337
    %v2410 = vpack.c.b16 %v2342, %v2338
    %v2411 = vpack.c.b16 %v2347, %v2343
    %v2412 = vpack.c.b16 %v2348, %v2344
    %v2413 = vpack.c.b16 %v2349, %v2345
    %v2414 = vpack.c.b16 %v2350, %v2346
    %2479 = vmatpush.bf16.msra.mxu0 %v2379
    %2480 = vmatpush.bf16.msra.mxu0 %v2375
    %2481 = vmatpush.bf16.msra.mxu0 %v2371
    %2482 = vmatpush.bf16.msra.mxu0 %v2367
    %2483 = vmatpush.bf16.msra.mxu0 %v2363
    %2484 = vmatpush.bf16.msra.mxu0 %v2359
    %2485 = vmatpush.bf16.msra.mxu0 %v2355
    %2486 = vmatpush.bf16.msra.mxu0 %v2351
    %2487 = vmatmul.bf16.gmra.mxu0 %v2081
    %v2488 = vpop.f32.mrf.mxu0
    %v2489 = vadd.f32 %v2151, %v2488
    %v2490 = vpop.f32.mrf.mxu0
    %v2491 = vadd.f32 %v2151, %v2490
    %2492 = vdwg.mxu0
    %2493 = vmatpush.bf16.msra.mxu0 %v2411
    %2494 = vmatpush.bf16.msra.mxu0 %v2407
    %2495 = vmatpush.bf16.msra.mxu0 %v2403
    %2496 = vmatpush.bf16.msra.mxu0 %v2399
    %2497 = vmatpush.bf16.msra.mxu0 %v2395
    %2498 = vmatpush.bf16.msra.mxu0 %v2391
    %2499 = vmatpush.bf16.msra.mxu0 %v2387
    %2500 = vmatpush.bf16.msra.mxu0 %v2383
    %2501 = vmatmul.bf16.gmra.mxu0 %v2059
    %v2502 = vpop.f32.mrf.mxu0
    %v2503 = vadd.f32 %v2489, %v2502
    %v2504 = vpop.f32.mrf.mxu0
    %v2505 = vadd.f32 %v2491, %v2504
    %2506 = vdwg.mxu0
    %2507 = vmatpush.bf16.msra.mxu0 %v2380
    %2508 = vmatpush.bf16.msra.mxu0 %v2376
    %2509 = vmatpush.bf16.msra.mxu0 %v2372
    %2510 = vmatpush.bf16.msra.mxu0 %v2368
    %2511 = vmatpush.bf16.msra.mxu0 %v2364
    %2512 = vmatpush.bf16.msra.mxu0 %v2360
    %2513 = vmatpush.bf16.msra.mxu0 %v2356
    %2514 = vmatpush.bf16.msra.mxu0 %v2352
    %2515 = vmatmul.bf16.gmra.mxu0 %v2081
    %v2516 = vpop.f32.mrf.mxu0
    %v2517 = vadd.f32 %v2152, %v2516
    %v2518 = vpop.f32.mrf.mxu0
    %v2519 = vadd.f32 %v2152, %v2518
    %2520 = vdwg.mxu0
    %2521 = vmatpush.bf16.msra.mxu0 %v2412
    %2522 = vmatpush.bf16.msra.mxu0 %v2408
    %2523 = vmatpush.bf16.msra.mxu0 %v2404
    %2524 = vmatpush.bf16.msra.mxu0 %v2400
    %2525 = vmatpush.bf16.msra.mxu0 %v2396
    %2526 = vmatpush.bf16.msra.mxu0 %v2392
    %2527 = vmatpush.bf16.msra.mxu0 %v2388
    %2528 = vmatpush.bf16.msra.mxu0 %v2384
    %2529 = vmatmul.bf16.gmra.mxu0 %v2059
    %v2530 = vpop.f32.mrf.mxu0
    %v2531 = vadd.f32 %v2517, %v2530
    %v2532 = vpop.f32.mrf.mxu0
    %v2533 = vadd.f32 %v2519, %v2532
    %2534 = vdwg.mxu0
    %2535 = vmatpush.bf16.msra.mxu0 %v2381
    %2536 = vmatpush.bf16.msra.mxu0 %v2377
    %2537 = vmatpush.bf16.msra.mxu0 %v2373
    %2538 = vmatpush.bf16.msra.mxu0 %v2369
    %2539 = vmatpush.bf16.msra.mxu0 %v2365
    %2540 = vmatpush.bf16.msra.mxu0 %v2361
    %2541 = vmatpush.bf16.msra.mxu0 %v2357
    %2542 = vmatpush.bf16.msra.mxu0 %v2353
    %2543 = vmatmul.bf16.gmra.mxu0 %v2081
    %v2544 = vpop.f32.mrf.mxu0
    %v2545 = vadd.f32 %v2153, %v2544
    %v2546 = vpop.f32.mrf.mxu0
    %v2547 = vadd.f32 %v2153, %v2546
    %2548 = vdwg.mxu0
    %2549 = vmatpush.bf16.msra.mxu0 %v2413
    %2550 = vmatpush.bf16.msra.mxu0 %v2409
    %2551 = vmatpush.bf16.msra.mxu0 %v2405
    %2552 = vmatpush.bf16.msra.mxu0 %v2401
    %2553 = vmatpush.bf16.msra.mxu0 %v2397
    %2554 = vmatpush.bf16.msra.mxu0 %v2393
    %2555 = vmatpush.bf16.msra.mxu0 %v2389
    %2556 = vmatpush.bf16.msra.mxu0 %v2385
    %2557 = vmatmul.bf16.gmra.mxu0 %v2059
    %v2558 = vpop.f32.mrf.mxu0
    %v2559 = vadd.f32 %v2545, %v2558
    %v2560 = vpop.f32.mrf.mxu0
    %v2561 = vadd.f32 %v2547, %v2560
    %2562 = vdwg.mxu0
    %2563 = vmatpush.bf16.msra.mxu0 %v2382
    %2564 = vmatpush.bf16.msra.mxu0 %v2378
    %2565 = vmatpush.bf16.msra.mxu0 %v2374
    %2566 = vmatpush.bf16.msra.mxu0 %v2370
    %2567 = vmatpush.bf16.msra.mxu0 %v2366
    %2568 = vmatpush.bf16.msra.mxu0 %v2362
    %2569 = vmatpush.bf16.msra.mxu0 %v2358
    %2570 = vmatpush.bf16.msra.mxu0 %v2354
    %2571 = vmatmul.bf16.gmra.mxu0 %v2081
    %v2572 = vpop.f32.mrf.mxu0
    %v2573 = vadd.f32 %v2154, %v2572
    %v2574 = vpop.f32.mrf.mxu0
    %v2575 = vadd.f32 %v2154, %v2574
    %2576 = vdwg.mxu0
    %2577 = vmatpush.bf16.msra.mxu0 %v2414
    %2578 = vmatpush.bf16.msra.mxu0 %v2410
    %2579 = vmatpush.bf16.msra.mxu0 %v2406
    %2580 = vmatpush.bf16.msra.mxu0 %v2402
    %2581 = vmatpush.bf16.msra.mxu0 %v2398
    %2582 = vmatpush.bf16.msra.mxu0 %v2394
    %2583 = vmatpush.bf16.msra.mxu0 %v2390
    %2584 = vmatpush.bf16.msra.mxu0 %v2386
    %2585 = vmatmul.bf16.gmra.mxu0 %v2059
    %v2586 = vpop.f32.mrf.mxu0
    %v2587 = vadd.f32 %v2573, %v2586
    %v2588 = vpop.f32.mrf.mxu0
    %v2589 = vadd.f32 %v2575, %v2588
    %2590 = vdwg.mxu0
    %v2591 = vxor.u32 %v2503, 2147483648
    %v2592 = vxor.u32 %v2505, 2147483648
    %v2593 = vmul.f32 %v2591, 1.442695
    %v2594 = vpow.pop %v2593
    %v2595 = vmul.f32 %v2592, 1.442695
    %v2596 = vpow.pop %v2595
    %v2597 = vadd.f32 %v2594, 1.0
    %v2598 = vadd.f32 %v2596, 1.0
    %v2599 = vrcp.pop %v2597
    %v2600 = vmul.f32 %v2597, %v2599
    %v2601 = vsub.f32 1.0, %v2600
    %v2602 = vmul.f32 %v2599, %v2601
    %v2603 = vadd.f32 %v2599, %v2602
    %vm2604 = vweird.f32 %v2597
    %vm2605 = vweird.f32 %v2599
    %vm2606 = vmor %vm2604, %vm2605
    %v2607 = vsel %vm2606, %v2599, %v2603
    %v2608 = vand.u32 2147483647, %v2597
    %vm2609 = vcmp.eq.f32.partialorder %v2608, 8.507059e+37
    %v2610 = vand.u32 %v2597, 2147483648
    %v2611 = vor.u32 1.1754944e-38, %v2610
    %v2612 = vsel %vm2609, %v2611, %v2607
    %v2613 = vmul.f32 1.0, %v2612
    %v2614 = vrcp.pop %v2598
    %v2615 = vmul.f32 %v2598, %v2614
    %v2616 = vsub.f32 1.0, %v2615
    %v2617 = vmul.f32 %v2614, %v2616
    %v2618 = vadd.f32 %v2614, %v2617
    %vm2619 = vweird.f32 %v2598
    %vm2620 = vweird.f32 %v2614
    %vm2621 = vmor %vm2619, %vm2620
    %v2622 = vsel %vm2621, %v2614, %v2618
    %v2623 = vand.u32 2147483647, %v2598
    %vm2624 = vcmp.eq.f32.partialorder %v2623, 8.507059e+37
    %v2625 = vand.u32 %v2598, 2147483648
    %v2626 = vor.u32 1.1754944e-38, %v2625
    %v2627 = vsel %vm2624, %v2626, %v2622
    %v2628 = vmul.f32 1.0, %v2627
    %v2629 = vxor.u32 %v2531, 2147483648
    %v2630 = vxor.u32 %v2533, 2147483648
    %v2631 = vmul.f32 %v2629, 1.442695
    %v2632 = vpow.pop %v2631
    %v2633 = vmul.f32 %v2630, 1.442695
    %v2634 = vpow.pop %v2633
    %v2635 = vadd.f32 %v2632, 1.0
    %v2636 = vadd.f32 %v2634, 1.0
    %v2637 = vrcp.pop %v2635
    %v2638 = vmul.f32 %v2635, %v2637
    %v2639 = vsub.f32 1.0, %v2638
    %v2640 = vmul.f32 %v2637, %v2639
    %v2641 = vadd.f32 %v2637, %v2640
    %vm2642 = vweird.f32 %v2635
    %vm2643 = vweird.f32 %v2637
    %vm2644 = vmor %vm2642, %vm2643
    %v2645 = vsel %vm2644, %v2637, %v2641
    %v2646 = vand.u32 2147483647, %v2635
    %vm2647 = vcmp.eq.f32.partialorder %v2646, 8.507059e+37
    %v2648 = vand.u32 %v2635, 2147483648
    %v2649 = vor.u32 1.1754944e-38, %v2648
    %v2650 = vsel %vm2647, %v2649, %v2645
    %v2651 = vmul.f32 1.0, %v2650
    %v2652 = vrcp.pop %v2636
    %v2653 = vmul.f32 %v2636, %v2652
    %v2654 = vsub.f32 1.0, %v2653
    %v2655 = vmul.f32 %v2652, %v2654
    %v2656 = vadd.f32 %v2652, %v2655
    %vm2657 = vweird.f32 %v2636
    %vm2658 = vweird.f32 %v2652
    %vm2659 = vmor %vm2657, %vm2658
    %v2660 = vsel %vm2659, %v2652, %v2656
    %v2661 = vand.u32 2147483647, %v2636
    %vm2662 = vcmp.eq.f32.partialorder %v2661, 8.507059e+37
    %v2663 = vand.u32 %v2636, 2147483648
    %v2664 = vor.u32 1.1754944e-38, %v2663
    %v2665 = vsel %vm2662, %v2664, %v2660
    %v2666 = vmul.f32 1.0, %v2665
    %v2667 = vmul.f32 %v2613, %v2587
    %v2668 = vmul.f32 %v2628, %v2589
    %v2669 = vadd.f32 %v2559, %v2667
    %v2670 = vadd.f32 %v2561, %v2668
    %v2671 = vtanh.pop %v2669
    %v2672 = vtanh.pop %v2670
    %v2673 = vsub.f32 1.0, %v2651
    %v2674 = vsub.f32 1.0, %v2666
    %v2675 = vmul.f32 %v2673, %v2671
    %v2676 = vmul.f32 %v2674, %v2672
    %v2677 = vmul.f32 %v2651, %v2051
    %v2678 = vmul.f32 %v2666, %v2052
    %v2679 = vadd.f32 %v2675, %v2677
    %v2680 = vadd.f32 %v2676, %v2678
    %2681 = vst [vmem:[#allocation2] sm:$0xff] %v2679
    %2682 = vst [vmem:[#allocation2 + $0x8] sm:$0xff] %v2680
    %v2683 = vld [vmem:[#allocation2] sm:$0xff]
    %v2684 = vld [vmem:[#allocation2 + $0x8] sm:$0xff]
    %v2685 = vpack.c.bf16 %v2683, %v2683
    %v2686 = vpack.c.bf16 %v2684, %v2684
    %v2689 = vunpack.c.l.b16 %v2685
    %v2690 = vunpack.c.l.b16 %v2686
    %v2691 = vpack.c.b16 %v2690, %v2689
    %2693 = vmatpush.bf16.msra.mxu0 0
    %2694 = vmatpush.bf16.msra.mxu0 0
    %2695 = vmatpush.bf16.msra.mxu0 0
    %2696 = vmatpush.bf16.msra.mxu0 0
    %2697 = vmatpush.bf16.msra.mxu0 0
    %2698 = vmatpush.bf16.msra.mxu0 0
    %2699 = vmatpush.bf16.msra.mxu0 0
    %2700 = vmatpush.bf16.msra.mxu0 %v2691
    %2701 = vmatmul.bf16.gmra.mxu0 %v165
    %v2702 = vpop.f32.mrf.mxu0
    %v2703 = vadd.f32 0.0, %v2702
    %v2704 = vpop.f32.mrf.mxu0
    %v2705 = vadd.f32 0.0, %v2704
    %2706 = vdwg.mxu0
    %v2707 = vpack.c.bf16 %v2703, %v2703
    %v2708 = vpack.c.bf16 %v2705, %v2705
    %v2711 = vunpack.c.l.b16 %v2707
    %v2712 = vunpack.c.l.b16 %v2708
    %v2713 = vpack.c.b16 %v2712, %v2711
    %s2715 = scalar_lea.vmem [#allocation9], 2048
    %v2716 = vld [vmem:[%s2715] sm:$0xff]
    %v2717 = vld [vmem:[%s2715 + $0x8] sm:$0xff]
    %v2718 = vld [vmem:[%s2715 + $0x10] sm:$0xff]
    %v2719 = vld [vmem:[%s2715 + $0x18] sm:$0xff]
    %v2720 = vld [vmem:[%s2715 + $0x20] sm:$0xff]
    %v2721 = vld [vmem:[%s2715 + $0x28] sm:$0xff]
    %v2722 = vld [vmem:[%s2715 + $0x30] sm:$0xff]
    %v2723 = vld [vmem:[%s2715 + $0x38] sm:$0xff]
    %v2724 = vld [vmem:[%s2715 + $0x40] sm:$0xff]
    %v2725 = vld [vmem:[%s2715 + $0x48] sm:$0xff]
    %v2726 = vld [vmem:[%s2715 + $0x50] sm:$0xff]
    %v2727 = vld [vmem:[%s2715 + $0x58] sm:$0xff]
    %v2728 = vld [vmem:[%s2715 + $0x60] sm:$0xff]
    %v2729 = vld [vmem:[%s2715 + $0x68] sm:$0xff]
    %v2730 = vld [vmem:[%s2715 + $0x70] sm:$0xff]
    %v2731 = vld [vmem:[%s2715 + $0x78] sm:$0xff]
    %v2732 = vld [vmem:[%s2715 + $0x80] sm:$0xff]
    %v2733 = vld [vmem:[%s2715 + $0x88] sm:$0xff]
    %v2734 = vld [vmem:[%s2715 + $0x90] sm:$0xff]
    %v2735 = vld [vmem:[%s2715 + $0x98] sm:$0xff]
    %v2736 = vld [vmem:[%s2715 + $0xa0] sm:$0xff]
    %v2737 = vld [vmem:[%s2715 + $0xa8] sm:$0xff]
    %v2738 = vld [vmem:[%s2715 + $0xb0] sm:$0xff]
    %v2739 = vld [vmem:[%s2715 + $0xb8] sm:$0xff]
    %v2740 = vld [vmem:[%s2715 + $0xc0] sm:$0xff]
    %v2741 = vld [vmem:[%s2715 + $0xc8] sm:$0xff]
    %v2742 = vld [vmem:[%s2715 + $0xd0] sm:$0xff]
    %v2743 = vld [vmem:[%s2715 + $0xd8] sm:$0xff]
    %v2744 = vld [vmem:[%s2715 + $0xe0] sm:$0xff]
    %v2745 = vld [vmem:[%s2715 + $0xe8] sm:$0xff]
    %v2746 = vld [vmem:[%s2715 + $0xf0] sm:$0xff]
    %v2747 = vld [vmem:[%s2715 + $0xf8] sm:$0xff]
    %v2748 = vld [vmem:[%s2715 + $0x100] sm:$0xff]
    %v2749 = vld [vmem:[%s2715 + $0x108] sm:$0xff]
    %v2750 = vld [vmem:[%s2715 + $0x110] sm:$0xff]
    %v2751 = vld [vmem:[%s2715 + $0x118] sm:$0xff]
    %v2752 = vld [vmem:[%s2715 + $0x120] sm:$0xff]
    %v2753 = vld [vmem:[%s2715 + $0x128] sm:$0xff]
    %v2754 = vld [vmem:[%s2715 + $0x130] sm:$0xff]
    %v2755 = vld [vmem:[%s2715 + $0x138] sm:$0xff]
    %v2756 = vld [vmem:[%s2715 + $0x140] sm:$0xff]
    %v2757 = vld [vmem:[%s2715 + $0x148] sm:$0xff]
    %v2758 = vld [vmem:[%s2715 + $0x150] sm:$0xff]
    %v2759 = vld [vmem:[%s2715 + $0x158] sm:$0xff]
    %v2760 = vld [vmem:[%s2715 + $0x160] sm:$0xff]
    %v2761 = vld [vmem:[%s2715 + $0x168] sm:$0xff]
    %v2762 = vld [vmem:[%s2715 + $0x170] sm:$0xff]
    %v2763 = vld [vmem:[%s2715 + $0x178] sm:$0xff]
    %v2764 = vld [vmem:[%s2715 + $0x180] sm:$0xff]
    %v2765 = vld [vmem:[%s2715 + $0x188] sm:$0xff]
    %v2766 = vld [vmem:[%s2715 + $0x190] sm:$0xff]
    %v2767 = vld [vmem:[%s2715 + $0x198] sm:$0xff]
    %v2768 = vld [vmem:[%s2715 + $0x1a0] sm:$0xff]
    %v2769 = vld [vmem:[%s2715 + $0x1a8] sm:$0xff]
    %v2770 = vld [vmem:[%s2715 + $0x1b0] sm:$0xff]
    %v2771 = vld [vmem:[%s2715 + $0x1b8] sm:$0xff]
    %v2772 = vld [vmem:[%s2715 + $0x1c0] sm:$0xff]
    %v2773 = vld [vmem:[%s2715 + $0x1c8] sm:$0xff]
    %v2774 = vld [vmem:[%s2715 + $0x1d0] sm:$0xff]
    %v2775 = vld [vmem:[%s2715 + $0x1d8] sm:$0xff]
    %v2776 = vld [vmem:[%s2715 + $0x1e0] sm:$0xff]
    %v2777 = vld [vmem:[%s2715 + $0x1e8] sm:$0xff]
    %v2778 = vld [vmem:[%s2715 + $0x1f0] sm:$0xff]
    %v2779 = vld [vmem:[%s2715 + $0x1f8] sm:$0xff]
    %s2780 = scalar_lea.vmem [#allocation10], 16
    %v2781 = vld [vmem:[%s2780] sm:$0xf]
    %v2783 = vperm.slane %v2781, 0
    %v2784 = vperm.slane %v2781, 1
    %v2785 = vperm.slane %v2781, 2
    %v2786 = vperm.slane %v2781, 3
    %v2855 = vunpack.c.l.b16 %v2716
    %v2856 = vunpack.c.h.b16 %v2716
    %v2857 = vunpack.c.l.b16 %v2717
    %v2858 = vunpack.c.h.b16 %v2717
    %v2859 = vunpack.c.l.b16 %v2718
    %v2860 = vunpack.c.h.b16 %v2718
    %v2861 = vunpack.c.l.b16 %v2719
    %v2862 = vunpack.c.h.b16 %v2719
    %v2863 = vunpack.c.l.b16 %v2720
    %v2864 = vunpack.c.h.b16 %v2720
    %v2865 = vunpack.c.l.b16 %v2721
    %v2866 = vunpack.c.h.b16 %v2721
    %v2867 = vunpack.c.l.b16 %v2722
    %v2868 = vunpack.c.h.b16 %v2722
    %v2869 = vunpack.c.l.b16 %v2723
    %v2870 = vunpack.c.h.b16 %v2723
    %v2871 = vunpack.c.l.b16 %v2724
    %v2872 = vunpack.c.h.b16 %v2724
    %v2873 = vunpack.c.l.b16 %v2725
    %v2874 = vunpack.c.h.b16 %v2725
    %v2875 = vunpack.c.l.b16 %v2726
    %v2876 = vunpack.c.h.b16 %v2726
    %v2877 = vunpack.c.l.b16 %v2727
    %v2878 = vunpack.c.h.b16 %v2727
    %v2879 = vunpack.c.l.b16 %v2728
    %v2880 = vunpack.c.h.b16 %v2728
    %v2881 = vunpack.c.l.b16 %v2729
    %v2882 = vunpack.c.h.b16 %v2729
    %v2883 = vunpack.c.l.b16 %v2730
    %v2884 = vunpack.c.h.b16 %v2730
    %v2885 = vunpack.c.l.b16 %v2731
    %v2886 = vunpack.c.h.b16 %v2731
    %v2887 = vunpack.c.l.b16 %v2732
    %v2888 = vunpack.c.h.b16 %v2732
    %v2889 = vunpack.c.l.b16 %v2733
    %v2890 = vunpack.c.h.b16 %v2733
    %v2891 = vunpack.c.l.b16 %v2734
    %v2892 = vunpack.c.h.b16 %v2734
    %v2893 = vunpack.c.l.b16 %v2735
    %v2894 = vunpack.c.h.b16 %v2735
    %v2895 = vunpack.c.l.b16 %v2736
    %v2896 = vunpack.c.h.b16 %v2736
    %v2897 = vunpack.c.l.b16 %v2737
    %v2898 = vunpack.c.h.b16 %v2737
    %v2899 = vunpack.c.l.b16 %v2738
    %v2900 = vunpack.c.h.b16 %v2738
    %v2901 = vunpack.c.l.b16 %v2739
    %v2902 = vunpack.c.h.b16 %v2739
    %v2903 = vunpack.c.l.b16 %v2740
    %v2904 = vunpack.c.h.b16 %v2740
    %v2905 = vunpack.c.l.b16 %v2741
    %v2906 = vunpack.c.h.b16 %v2741
    %v2907 = vunpack.c.l.b16 %v2742
    %v2908 = vunpack.c.h.b16 %v2742
    %v2909 = vunpack.c.l.b16 %v2743
    %v2910 = vunpack.c.h.b16 %v2743
    %v2911 = vunpack.c.l.b16 %v2744
    %v2912 = vunpack.c.h.b16 %v2744
    %v2913 = vunpack.c.l.b16 %v2745
    %v2914 = vunpack.c.h.b16 %v2745
    %v2915 = vunpack.c.l.b16 %v2746
    %v2916 = vunpack.c.h.b16 %v2746
    %v2917 = vunpack.c.l.b16 %v2747
    %v2918 = vunpack.c.h.b16 %v2747
    %v2919 = vunpack.c.l.b16 %v2748
    %v2920 = vunpack.c.h.b16 %v2748
    %v2921 = vunpack.c.l.b16 %v2749
    %v2922 = vunpack.c.h.b16 %v2749
    %v2923 = vunpack.c.l.b16 %v2750
    %v2924 = vunpack.c.h.b16 %v2750
    %v2925 = vunpack.c.l.b16 %v2751
    %v2926 = vunpack.c.h.b16 %v2751
    %v2927 = vunpack.c.l.b16 %v2752
    %v2928 = vunpack.c.h.b16 %v2752
    %v2929 = vunpack.c.l.b16 %v2753
    %v2930 = vunpack.c.h.b16 %v2753
    %v2931 = vunpack.c.l.b16 %v2754
    %v2932 = vunpack.c.h.b16 %v2754
    %v2933 = vunpack.c.l.b16 %v2755
    %v2934 = vunpack.c.h.b16 %v2755
    %v2935 = vunpack.c.l.b16 %v2756
    %v2936 = vunpack.c.h.b16 %v2756
    %v2937 = vunpack.c.l.b16 %v2757
    %v2938 = vunpack.c.h.b16 %v2757
    %v2939 = vunpack.c.l.b16 %v2758
    %v2940 = vunpack.c.h.b16 %v2758
    %v2941 = vunpack.c.l.b16 %v2759
    %v2942 = vunpack.c.h.b16 %v2759
    %v2943 = vunpack.c.l.b16 %v2760
    %v2944 = vunpack.c.h.b16 %v2760
    %v2945 = vunpack.c.l.b16 %v2761
    %v2946 = vunpack.c.h.b16 %v2761
    %v2947 = vunpack.c.l.b16 %v2762
    %v2948 = vunpack.c.h.b16 %v2762
    %v2949 = vunpack.c.l.b16 %v2763
    %v2950 = vunpack.c.h.b16 %v2763
    %v2951 = vunpack.c.l.b16 %v2764
    %v2952 = vunpack.c.h.b16 %v2764
    %v2953 = vunpack.c.l.b16 %v2765
    %v2954 = vunpack.c.h.b16 %v2765
    %v2955 = vunpack.c.l.b16 %v2766
    %v2956 = vunpack.c.h.b16 %v2766
    %v2957 = vunpack.c.l.b16 %v2767
    %v2958 = vunpack.c.h.b16 %v2767
    %v2959 = vunpack.c.l.b16 %v2768
    %v2960 = vunpack.c.h.b16 %v2768
    %v2961 = vunpack.c.l.b16 %v2769
    %v2962 = vunpack.c.h.b16 %v2769
    %v2963 = vunpack.c.l.b16 %v2770
    %v2964 = vunpack.c.h.b16 %v2770
    %v2965 = vunpack.c.l.b16 %v2771
    %v2966 = vunpack.c.h.b16 %v2771
    %v2967 = vunpack.c.l.b16 %v2772
    %v2968 = vunpack.c.h.b16 %v2772
    %v2969 = vunpack.c.l.b16 %v2773
    %v2970 = vunpack.c.h.b16 %v2773
    %v2971 = vunpack.c.l.b16 %v2774
    %v2972 = vunpack.c.h.b16 %v2774
    %v2973 = vunpack.c.l.b16 %v2775
    %v2974 = vunpack.c.h.b16 %v2775
    %v2975 = vunpack.c.l.b16 %v2776
    %v2976 = vunpack.c.h.b16 %v2776
    %v2977 = vunpack.c.l.b16 %v2777
    %v2978 = vunpack.c.h.b16 %v2777
    %v2979 = vunpack.c.l.b16 %v2778
    %v2980 = vunpack.c.h.b16 %v2778
    %v2981 = vunpack.c.l.b16 %v2779
    %v2982 = vunpack.c.h.b16 %v2779
    %v2983 = vpack.c.b16 %v2859, %v2855
    %v2984 = vpack.c.b16 %v2860, %v2856
    %v2985 = vpack.c.b16 %v2861, %v2857
    %v2986 = vpack.c.b16 %v2862, %v2858
    %v2987 = vpack.c.b16 %v2867, %v2863
    %v2988 = vpack.c.b16 %v2868, %v2864
    %v2989 = vpack.c.b16 %v2869, %v2865
    %v2990 = vpack.c.b16 %v2870, %v2866
    %v2991 = vpack.c.b16 %v2875, %v2871
    %v2992 = vpack.c.b16 %v2876, %v2872
    %v2993 = vpack.c.b16 %v2877, %v2873
    %v2994 = vpack.c.b16 %v2878, %v2874
    %v2995 = vpack.c.b16 %v2883, %v2879
    %v2996 = vpack.c.b16 %v2884, %v2880
    %v2997 = vpack.c.b16 %v2885, %v2881
    %v2998 = vpack.c.b16 %v2886, %v2882
    %v2999 = vpack.c.b16 %v2891, %v2887
    %v3000 = vpack.c.b16 %v2892, %v2888
    %v3001 = vpack.c.b16 %v2893, %v2889
    %v3002 = vpack.c.b16 %v2894, %v2890
    %v3003 = vpack.c.b16 %v2899, %v2895
    %v3004 = vpack.c.b16 %v2900, %v2896
    %v3005 = vpack.c.b16 %v2901, %v2897
    %v3006 = vpack.c.b16 %v2902, %v2898
    %v3007 = vpack.c.b16 %v2907, %v2903
    %v3008 = vpack.c.b16 %v2908, %v2904
    %v3009 = vpack.c.b16 %v2909, %v2905
    %v3010 = vpack.c.b16 %v2910, %v2906
    %v3011 = vpack.c.b16 %v2915, %v2911
    %v3012 = vpack.c.b16 %v2916, %v2912
    %v3013 = vpack.c.b16 %v2917, %v2913
    %v3014 = vpack.c.b16 %v2918, %v2914
    %v3015 = vpack.c.b16 %v2923, %v2919
    %v3016 = vpack.c.b16 %v2924, %v2920
    %v3017 = vpack.c.b16 %v2925, %v2921
    %v3018 = vpack.c.b16 %v2926, %v2922
    %v3019 = vpack.c.b16 %v2931, %v2927
    %v3020 = vpack.c.b16 %v2932, %v2928
    %v3021 = vpack.c.b16 %v2933, %v2929
    %v3022 = vpack.c.b16 %v2934, %v2930
    %v3023 = vpack.c.b16 %v2939, %v2935
    %v3024 = vpack.c.b16 %v2940, %v2936
    %v3025 = vpack.c.b16 %v2941, %v2937
    %v3026 = vpack.c.b16 %v2942, %v2938
    %v3027 = vpack.c.b16 %v2947, %v2943
    %v3028 = vpack.c.b16 %v2948, %v2944
    %v3029 = vpack.c.b16 %v2949, %v2945
    %v3030 = vpack.c.b16 %v2950, %v2946
    %v3031 = vpack.c.b16 %v2955, %v2951
    %v3032 = vpack.c.b16 %v2956, %v2952
    %v3033 = vpack.c.b16 %v2957, %v2953
    %v3034 = vpack.c.b16 %v2958, %v2954
    %v3035 = vpack.c.b16 %v2963, %v2959
    %v3036 = vpack.c.b16 %v2964, %v2960
    %v3037 = vpack.c.b16 %v2965, %v2961
    %v3038 = vpack.c.b16 %v2966, %v2962
    %v3039 = vpack.c.b16 %v2971, %v2967
    %v3040 = vpack.c.b16 %v2972, %v2968
    %v3041 = vpack.c.b16 %v2973, %v2969
    %v3042 = vpack.c.b16 %v2974, %v2970
    %v3043 = vpack.c.b16 %v2979, %v2975
    %v3044 = vpack.c.b16 %v2980, %v2976
    %v3045 = vpack.c.b16 %v2981, %v2977
    %v3046 = vpack.c.b16 %v2982, %v2978
    %3111 = vmatpush.bf16.msra.mxu0 %v3011
    %3112 = vmatpush.bf16.msra.mxu0 %v3007
    %3113 = vmatpush.bf16.msra.mxu0 %v3003
    %3114 = vmatpush.bf16.msra.mxu0 %v2999
    %3115 = vmatpush.bf16.msra.mxu0 %v2995
    %3116 = vmatpush.bf16.msra.mxu0 %v2991
    %3117 = vmatpush.bf16.msra.mxu0 %v2987
    %3118 = vmatpush.bf16.msra.mxu0 %v2983
    %3119 = vmatmul.bf16.gmra.mxu0 %v2713
    %v3120 = vpop.f32.mrf.mxu0
    %v3121 = vadd.f32 %v2783, %v3120
    %v3122 = vpop.f32.mrf.mxu0
    %v3123 = vadd.f32 %v2783, %v3122
    %3124 = vdwg.mxu0
    %3125 = vmatpush.bf16.msra.mxu0 %v3043
    %3126 = vmatpush.bf16.msra.mxu0 %v3039
    %3127 = vmatpush.bf16.msra.mxu0 %v3035
    %3128 = vmatpush.bf16.msra.mxu0 %v3031
    %3129 = vmatpush.bf16.msra.mxu0 %v3027
    %3130 = vmatpush.bf16.msra.mxu0 %v3023
    %3131 = vmatpush.bf16.msra.mxu0 %v3019
    %3132 = vmatpush.bf16.msra.mxu0 %v3015
    %3133 = vmatmul.bf16.gmra.mxu0 %v2691
    %v3134 = vpop.f32.mrf.mxu0
    %v3135 = vadd.f32 %v3121, %v3134
    %v3136 = vpop.f32.mrf.mxu0
    %v3137 = vadd.f32 %v3123, %v3136
    %3138 = vdwg.mxu0
    %3139 = vmatpush.bf16.msra.mxu0 %v3012
    %3140 = vmatpush.bf16.msra.mxu0 %v3008
    %3141 = vmatpush.bf16.msra.mxu0 %v3004
    %3142 = vmatpush.bf16.msra.mxu0 %v3000
    %3143 = vmatpush.bf16.msra.mxu0 %v2996
    %3144 = vmatpush.bf16.msra.mxu0 %v2992
    %3145 = vmatpush.bf16.msra.mxu0 %v2988
    %3146 = vmatpush.bf16.msra.mxu0 %v2984
    %3147 = vmatmul.bf16.gmra.mxu0 %v2713
    %v3148 = vpop.f32.mrf.mxu0
    %v3149 = vadd.f32 %v2784, %v3148
    %v3150 = vpop.f32.mrf.mxu0
    %v3151 = vadd.f32 %v2784, %v3150
    %3152 = vdwg.mxu0
    %3153 = vmatpush.bf16.msra.mxu0 %v3044
    %3154 = vmatpush.bf16.msra.mxu0 %v3040
    %3155 = vmatpush.bf16.msra.mxu0 %v3036
    %3156 = vmatpush.bf16.msra.mxu0 %v3032
    %3157 = vmatpush.bf16.msra.mxu0 %v3028
    %3158 = vmatpush.bf16.msra.mxu0 %v3024
    %3159 = vmatpush.bf16.msra.mxu0 %v3020
    %3160 = vmatpush.bf16.msra.mxu0 %v3016
    %3161 = vmatmul.bf16.gmra.mxu0 %v2691
    %v3162 = vpop.f32.mrf.mxu0
    %v3163 = vadd.f32 %v3149, %v3162
    %v3164 = vpop.f32.mrf.mxu0
    %v3165 = vadd.f32 %v3151, %v3164
    %3166 = vdwg.mxu0
    %3167 = vmatpush.bf16.msra.mxu0 %v3013
    %3168 = vmatpush.bf16.msra.mxu0 %v3009
    %3169 = vmatpush.bf16.msra.mxu0 %v3005
    %3170 = vmatpush.bf16.msra.mxu0 %v3001
    %3171 = vmatpush.bf16.msra.mxu0 %v2997
    %3172 = vmatpush.bf16.msra.mxu0 %v2993
    %3173 = vmatpush.bf16.msra.mxu0 %v2989
    %3174 = vmatpush.bf16.msra.mxu0 %v2985
    %3175 = vmatmul.bf16.gmra.mxu0 %v2713
    %v3176 = vpop.f32.mrf.mxu0
    %v3177 = vadd.f32 %v2785, %v3176
    %v3178 = vpop.f32.mrf.mxu0
    %v3179 = vadd.f32 %v2785, %v3178
    %3180 = vdwg.mxu0
    %3181 = vmatpush.bf16.msra.mxu0 %v3045
    %3182 = vmatpush.bf16.msra.mxu0 %v3041
    %3183 = vmatpush.bf16.msra.mxu0 %v3037
    %3184 = vmatpush.bf16.msra.mxu0 %v3033
    %3185 = vmatpush.bf16.msra.mxu0 %v3029
    %3186 = vmatpush.bf16.msra.mxu0 %v3025
    %3187 = vmatpush.bf16.msra.mxu0 %v3021
    %3188 = vmatpush.bf16.msra.mxu0 %v3017
    %3189 = vmatmul.bf16.gmra.mxu0 %v2691
    %v3190 = vpop.f32.mrf.mxu0
    %v3191 = vadd.f32 %v3177, %v3190
    %v3192 = vpop.f32.mrf.mxu0
    %v3193 = vadd.f32 %v3179, %v3192
    %3194 = vdwg.mxu0
    %3195 = vmatpush.bf16.msra.mxu0 %v3014
    %3196 = vmatpush.bf16.msra.mxu0 %v3010
    %3197 = vmatpush.bf16.msra.mxu0 %v3006
    %3198 = vmatpush.bf16.msra.mxu0 %v3002
    %3199 = vmatpush.bf16.msra.mxu0 %v2998
    %3200 = vmatpush.bf16.msra.mxu0 %v2994
    %3201 = vmatpush.bf16.msra.mxu0 %v2990
    %3202 = vmatpush.bf16.msra.mxu0 %v2986
    %3203 = vmatmul.bf16.gmra.mxu0 %v2713
    %v3204 = vpop.f32.mrf.mxu0
    %v3205 = vadd.f32 %v2786, %v3204
    %v3206 = vpop.f32.mrf.mxu0
    %v3207 = vadd.f32 %v2786, %v3206
    %3208 = vdwg.mxu0
    %3209 = vmatpush.bf16.msra.mxu0 %v3046
    %3210 = vmatpush.bf16.msra.mxu0 %v3042
    %3211 = vmatpush.bf16.msra.mxu0 %v3038
    %3212 = vmatpush.bf16.msra.mxu0 %v3034
    %3213 = vmatpush.bf16.msra.mxu0 %v3030
    %3214 = vmatpush.bf16.msra.mxu0 %v3026
    %3215 = vmatpush.bf16.msra.mxu0 %v3022
    %3216 = vmatpush.bf16.msra.mxu0 %v3018
    %3217 = vmatmul.bf16.gmra.mxu0 %v2691
    %v3218 = vpop.f32.mrf.mxu0
    %v3219 = vadd.f32 %v3205, %v3218
    %v3220 = vpop.f32.mrf.mxu0
    %v3221 = vadd.f32 %v3207, %v3220
    %3222 = vdwg.mxu0
    %v3223 = vxor.u32 %v3135, 2147483648
    %v3224 = vxor.u32 %v3137, 2147483648
    %v3225 = vmul.f32 %v3223, 1.442695
    %v3226 = vpow.pop %v3225
    %v3227 = vmul.f32 %v3224, 1.442695
    %v3228 = vpow.pop %v3227
    %v3229 = vadd.f32 %v3226, 1.0
    %v3230 = vadd.f32 %v3228, 1.0
    %v3231 = vrcp.pop %v3229
    %v3232 = vmul.f32 %v3229, %v3231
    %v3233 = vsub.f32 1.0, %v3232
    %v3234 = vmul.f32 %v3231, %v3233
    %v3235 = vadd.f32 %v3231, %v3234
    %vm3236 = vweird.f32 %v3229
    %vm3237 = vweird.f32 %v3231
    %vm3238 = vmor %vm3236, %vm3237
    %v3239 = vsel %vm3238, %v3231, %v3235
    %v3240 = vand.u32 2147483647, %v3229
    %vm3241 = vcmp.eq.f32.partialorder %v3240, 8.507059e+37
    %v3242 = vand.u32 %v3229, 2147483648
    %v3243 = vor.u32 1.1754944e-38, %v3242
    %v3244 = vsel %vm3241, %v3243, %v3239
    %v3245 = vmul.f32 1.0, %v3244
    %v3246 = vrcp.pop %v3230
    %v3247 = vmul.f32 %v3230, %v3246
    %v3248 = vsub.f32 1.0, %v3247
    %v3249 = vmul.f32 %v3246, %v3248
    %v3250 = vadd.f32 %v3246, %v3249
    %vm3251 = vweird.f32 %v3230
    %vm3252 = vweird.f32 %v3246
    %vm3253 = vmor %vm3251, %vm3252
    %v3254 = vsel %vm3253, %v3246, %v3250
    %v3255 = vand.u32 2147483647, %v3230
    %vm3256 = vcmp.eq.f32.partialorder %v3255, 8.507059e+37
    %v3257 = vand.u32 %v3230, 2147483648
    %v3258 = vor.u32 1.1754944e-38, %v3257
    %v3259 = vsel %vm3256, %v3258, %v3254
    %v3260 = vmul.f32 1.0, %v3259
    %v3261 = vxor.u32 %v3163, 2147483648
    %v3262 = vxor.u32 %v3165, 2147483648
    %v3263 = vmul.f32 %v3261, 1.442695
    %v3264 = vpow.pop %v3263
    %v3265 = vmul.f32 %v3262, 1.442695
    %v3266 = vpow.pop %v3265
    %v3267 = vadd.f32 %v3264, 1.0
    %v3268 = vadd.f32 %v3266, 1.0
    %v3269 = vrcp.pop %v3267
    %v3270 = vmul.f32 %v3267, %v3269
    %v3271 = vsub.f32 1.0, %v3270
    %v3272 = vmul.f32 %v3269, %v3271
    %v3273 = vadd.f32 %v3269, %v3272
    %vm3274 = vweird.f32 %v3267
    %vm3275 = vweird.f32 %v3269
    %vm3276 = vmor %vm3274, %vm3275
    %v3277 = vsel %vm3276, %v3269, %v3273
    %v3278 = vand.u32 2147483647, %v3267
    %vm3279 = vcmp.eq.f32.partialorder %v3278, 8.507059e+37
    %v3280 = vand.u32 %v3267, 2147483648
    %v3281 = vor.u32 1.1754944e-38, %v3280
    %v3282 = vsel %vm3279, %v3281, %v3277
    %v3283 = vmul.f32 1.0, %v3282
    %v3284 = vrcp.pop %v3268
    %v3285 = vmul.f32 %v3268, %v3284
    %v3286 = vsub.f32 1.0, %v3285
    %v3287 = vmul.f32 %v3284, %v3286
    %v3288 = vadd.f32 %v3284, %v3287
    %vm3289 = vweird.f32 %v3268
    %vm3290 = vweird.f32 %v3284
    %vm3291 = vmor %vm3289, %vm3290
    %v3292 = vsel %vm3291, %v3284, %v3288
    %v3293 = vand.u32 2147483647, %v3268
    %vm3294 = vcmp.eq.f32.partialorder %v3293, 8.507059e+37
    %v3295 = vand.u32 %v3268, 2147483648
    %v3296 = vor.u32 1.1754944e-38, %v3295
    %v3297 = vsel %vm3294, %v3296, %v3292
    %v3298 = vmul.f32 1.0, %v3297
    %v3299 = vmul.f32 %v3245, %v3219
    %v3300 = vmul.f32 %v3260, %v3221
    %v3301 = vadd.f32 %v3191, %v3299
    %v3302 = vadd.f32 %v3193, %v3300
    %v3303 = vtanh.pop %v3301
    %v3304 = vtanh.pop %v3302
    %v3305 = vsub.f32 1.0, %v3283
    %v3306 = vsub.f32 1.0, %v3298
    %v3307 = vmul.f32 %v3305, %v3303
    %v3308 = vmul.f32 %v3306, %v3304
    %v3309 = vmul.f32 %v3283, %v2683
    %v3310 = vmul.f32 %v3298, %v2684
    %v3311 = vadd.f32 %v3307, %v3309
    %v3312 = vadd.f32 %v3308, %v3310
    %3313 = vst [vmem:[#allocation2] sm:$0xff] %v3311
    %3314 = vst [vmem:[#allocation2 + $0x8] sm:$0xff] %v3312
    %v3315 = vld [vmem:[#allocation2] sm:$0xff]
    %v3316 = vld [vmem:[#allocation2 + $0x8] sm:$0xff]
    %v3317 = vpack.c.bf16 %v3316, %v3315
    %v3318 = vld [vmem:[#allocation12] sm:$0xff]
    %v3319 = vld [vmem:[#allocation12 + $0x8] sm:$0xff]
    %v3320 = vld [vmem:[#allocation12 + $0x10] sm:$0xff]
    %v3321 = vld [vmem:[#allocation12 + $0x18] sm:$0xff]
    %v3322 = vld [vmem:[#allocation12 + $0x20] sm:$0xff]
    %v3323 = vld [vmem:[#allocation12 + $0x28] sm:$0xff]
    %v3324 = vld [vmem:[#allocation12 + $0x30] sm:$0xff]
    %v3325 = vld [vmem:[#allocation12 + $0x38] sm:$0xff]
    %v3326 = vld [vmem:[#allocation12 + $0x40] sm:$0xff]
    %v3327 = vld [vmem:[#allocation12 + $0x48] sm:$0xff]
    %v3328 = vld [vmem:[#allocation12 + $0x50] sm:$0xff]
    %v3329 = vld [vmem:[#allocation12 + $0x58] sm:$0xff]
    %v3330 = vld [vmem:[#allocation12 + $0x60] sm:$0xff]
    %v3331 = vld [vmem:[#allocation12 + $0x68] sm:$0xff]
    %v3332 = vld [vmem:[#allocation12 + $0x70] sm:$0xff]
    %v3333 = vld [vmem:[#allocation12 + $0x78] sm:$0xff]
    %v3334 = vld [vmem:[#allocation13] sm:$0x3]
    %v3336 = vperm.slane %v3334, 0
    %v3337 = vperm.slane %v3334, 1
    %v3356 = vunpack.c.l.b16 %v3318
    %v3357 = vunpack.c.h.b16 %v3318
    %v3358 = vunpack.c.l.b16 %v3319
    %v3359 = vunpack.c.h.b16 %v3319
    %v3360 = vunpack.c.l.b16 %v3320
    %v3361 = vunpack.c.h.b16 %v3320
    %v3362 = vunpack.c.l.b16 %v3321
    %v3363 = vunpack.c.h.b16 %v3321
    %v3364 = vunpack.c.l.b16 %v3322
    %v3365 = vunpack.c.h.b16 %v3322
    %v3366 = vunpack.c.l.b16 %v3323
    %v3367 = vunpack.c.h.b16 %v3323
    %v3368 = vunpack.c.l.b16 %v3324
    %v3369 = vunpack.c.h.b16 %v3324
    %v3370 = vunpack.c.l.b16 %v3325
    %v3371 = vunpack.c.h.b16 %v3325
    %v3372 = vunpack.c.l.b16 %v3326
    %v3373 = vunpack.c.h.b16 %v3326
    %v3374 = vunpack.c.l.b16 %v3327
    %v3375 = vunpack.c.h.b16 %v3327
    %v3376 = vunpack.c.l.b16 %v3328
    %v3377 = vunpack.c.h.b16 %v3328
    %v3378 = vunpack.c.l.b16 %v3329
    %v3379 = vunpack.c.h.b16 %v3329
    %v3380 = vunpack.c.l.b16 %v3330
    %v3381 = vunpack.c.h.b16 %v3330
    %v3382 = vunpack.c.l.b16 %v3331
    %v3383 = vunpack.c.h.b16 %v3331
    %v3384 = vunpack.c.l.b16 %v3332
    %v3385 = vunpack.c.h.b16 %v3332
    %v3386 = vunpack.c.l.b16 %v3333
    %v3387 = vunpack.c.h.b16 %v3333
    %v3388 = vpack.c.b16 %v3358, %v3356
    %v3389 = vpack.c.b16 %v3359, %v3357
    %v3390 = vpack.c.b16 %v3362, %v3360
    %v3391 = vpack.c.b16 %v3363, %v3361
    %v3392 = vpack.c.b16 %v3366, %v3364
    %v3393 = vpack.c.b16 %v3367, %v3365
    %v3394 = vpack.c.b16 %v3370, %v3368
    %v3395 = vpack.c.b16 %v3371, %v3369
    %v3396 = vpack.c.b16 %v3374, %v3372
    %v3397 = vpack.c.b16 %v3375, %v3373
    %v3398 = vpack.c.b16 %v3378, %v3376
    %v3399 = vpack.c.b16 %v3379, %v3377
    %v3400 = vpack.c.b16 %v3382, %v3380
    %v3401 = vpack.c.b16 %v3383, %v3381
    %v3402 = vpack.c.b16 %v3386, %v3384
    %v3403 = vpack.c.b16 %v3387, %v3385
    %3420 = vmatpush.bf16.msra.mxu0 %v3402
    %3421 = vmatpush.bf16.msra.mxu0 %v3400
    %3422 = vmatpush.bf16.msra.mxu0 %v3398
    %3423 = vmatpush.bf16.msra.mxu0 %v3396
    %3424 = vmatpush.bf16.msra.mxu0 %v3394
    %3425 = vmatpush.bf16.msra.mxu0 %v3392
    %3426 = vmatpush.bf16.msra.mxu0 %v3390
    %3427 = vmatpush.bf16.msra.mxu0 %v3388
    %3428 = vmatmul.bf16.gmra.mxu0 %v3317
    %v3429 = vpop.f32.mrf.mxu0
    %v3430 = vadd.f32 %v3336, %v3429
    %v3431 = vpop.f32.mrf.mxu0
    %v3432 = vadd.f32 %v3336, %v3431
    %3433 = vdwg.mxu0
    %3434 = vmatpush.bf16.msra.mxu0 %v3403
    %3435 = vmatpush.bf16.msra.mxu0 %v3401
    %3436 = vmatpush.bf16.msra.mxu0 %v3399
    %3437 = vmatpush.bf16.msra.mxu0 %v3397
    %3438 = vmatpush.bf16.msra.mxu0 %v3395
    %3439 = vmatpush.bf16.msra.mxu0 %v3393
    %3440 = vmatpush.bf16.msra.mxu0 %v3391
    %3441 = vmatpush.bf16.msra.mxu0 %v3389
    %3442 = vmatmul.bf16.gmra.mxu0 %v3317
    %v3443 = vpop.f32.mrf.mxu0
    %v3444 = vadd.f32 %v3337, %v3443
    %v3445 = vpop.f32.mrf.mxu0
    %v3446 = vadd.f32 %v3337, %v3445
    %3447 = vdwg.mxu0
    %v3448 = vtanh.pop %v3430
    %v3449 = vtanh.pop %v3444
    %v3450 = vtanh.pop %v3432
    %v3451 = vtanh.pop %v3446
    %v3452 = vld [vmem:[#allocation15] sm:$0x3]
    %v3454 = vperm.slane %v3452, 0
    %v3455 = vperm.slane %v3452, 1
    %v3458 = vmul.f32 %v3448, %v3454
    %v3459 = vmul.f32 %v3449, %v3455
    %v3460 = vmul.f32 %v3450, %v3454
    %v3461 = vmul.f32 %v3451, %v3455
    %v3462 = vadd.f32 %v3458, %v3459
    %3463 = vadd.xlane.f32.xlu0 %v3462
    %v3464 = vpop.xlane.xlu0 %3463
    %v3465 = vadd.f32 %v3460, %v3461
    %3466 = vadd.xlane.f32.xlu0 %v3465
    %v3467 = vpop.xlane.xlu0 %3466
    %s3468 = sld [smem:[#allocation3]]
    %v3469 = vstv %s3468
    %v3470 = vadd.f32 %v3464, %v3469
    %v3471 = vadd.f32 %v3467, %v3469
    %v3472 = vlaneseq
    %v3473 = vand.u32 %v3472, 127
    %v3474 = vld [vmem:[%s4] sm:$0xff]
    %v3475 = vld [vmem:[%s4 + $0x8] sm:$0xff]
    %3476 = vset.pattern.permute.xlu0 0
    %3477 = vperm.xlu0 %3476, %v3474
    %v3478 = vpop.permute.xlu0 %3477
    %3479 = vset.pattern.permute.xlu0 0
    %3480 = vperm.xlu0 %3479, %v3475
    %v3481 = vpop.permute.xlu0 %3480
    %vm3482 = vcmp.eq.s32.totalorder %v3478, %v3473
    %vm3483 = vcmp.eq.s32.totalorder %v3481, %v3473
    %v3484 = vsel %vm3482, 1, 0
    %v3485 = vsel %vm3483, 1, 0
    %v3486 = vcvt.s32.f32 %v3484
    %v3487 = vcvt.s32.f32 %v3485
    %vm3488 = vcmp.gt.f32.partialorder %v3486, 0.0
    %vm3489 = vcmp.gt.f32.partialorder %v3487, 0.0
    %v3490 = vsel %vm3488, %v3470, -1e+30
    %v3491 = vsel %vm3489, %v3471, -1e+30
    %v3492 = vmax.f32 %v3490, %v3491
    %v3493 = vrot.slane %v3492, 4
    %v3494 = vmax.f32 %v3492, %v3493
    %v3495 = vrot.slane %v3494, 2
    %v3496 = vmax.f32 %v3494, %v3495
    %v3497 = vrot.slane %v3496, 1
    %v3498 = vmax.f32 %v3496, %v3497
    %v3499 = vmul.f32 %v3486, %v3498
    %v3500 = vmul.f32 %v3487, %v3498
    %3501 = vadd.xlane.f32.xlu0 %v3499
    %v3502 = vpop.xlane.xlu0 %3501
    %3503 = vadd.xlane.f32.xlu0 %v3500
    %v3504 = vpop.xlane.xlu0 %3503
    %v3505 = vsub.f32 %v3470, %v3502
    %v3506 = vsub.f32 %v3471, %v3504
    %v3507 = vmul.f32 %v3505, 1.442695
    %v3508 = vpow.pop %v3507
    %v3509 = vmul.f32 %v3506, 1.442695
    %v3510 = vpow.pop %v3509
    %v3511 = vmul.f32 %v3486, %v3508
    %v3512 = vmul.f32 %v3487, %v3510
    %v3513 = vadd.f32 %v3511, %v3512
    %v3514 = vrot.slane %v3513, 4
    %v3515 = vadd.f32 %v3513, %v3514
    %v3516 = vrot.slane %v3515, 2
    %v3517 = vadd.f32 %v3515, %v3516
    %v3518 = vrot.slane %v3517, 1
    %v3519 = vadd.f32 %v3517, %v3518
    %v3520 = vmul.f32 %v3486, %v3519
    %v3521 = vmul.f32 %v3487, %v3519
    %3522 = vadd.xlane.f32.xlu0 %v3520
    %v3523 = vpop.xlane.xlu0 %3522
    %3524 = vadd.xlane.f32.xlu0 %v3521
    %v3525 = vpop.xlane.xlu0 %3524
    %v3526 = vadd.f32 %v3523, 1e-16
    %v3527 = vadd.f32 %v3525, 1e-16
    %v3528 = vrcp.pop %v3526
    %v3529 = vmul.f32 %v3526, %v3528
    %v3530 = vsub.f32 1.0, %v3529
    %v3531 = vmul.f32 %v3528, %v3530
    %v3532 = vadd.f32 %v3528, %v3531
    %vm3533 = vweird.f32 %v3526
    %vm3534 = vweird.f32 %v3528
    %vm3535 = vmor %vm3533, %vm3534
    %v3536 = vsel %vm3535, %v3528, %v3532
    %v3537 = vand.u32 2147483647, %v3526
    %vm3538 = vcmp.eq.f32.partialorder %v3537, 8.507059e+37
    %v3539 = vand.u32 %v3526, 2147483648
    %v3540 = vor.u32 1.1754944e-38, %v3539
    %v3541 = vsel %vm3538, %v3540, %v3536
    %v3542 = vmul.f32 %v3508, %v3541
    %v3543 = vrcp.pop %v3527
    %v3544 = vmul.f32 %v3527, %v3543
    %v3545 = vsub.f32 1.0, %v3544
    %v3546 = vmul.f32 %v3543, %v3545
    %v3547 = vadd.f32 %v3543, %v3546
    %vm3548 = vweird.f32 %v3527
    %vm3549 = vweird.f32 %v3543
    %vm3550 = vmor %vm3548, %vm3549
    %v3551 = vsel %vm3550, %v3543, %v3547
    %v3552 = vand.u32 2147483647, %v3527
    %vm3553 = vcmp.eq.f32.partialorder %v3552, 8.507059e+37
    %v3554 = vand.u32 %v3527, 2147483648
    %v3555 = vor.u32 1.1754944e-38, %v3554
    %v3556 = vsel %vm3553, %v3555, %v3551
    %v3557 = vmul.f32 %v3510, %v3556
    %vm3558 = vcmask 7168
    %3559 = vst.msk [vmem:[%s10] sm:$0xff] %vm3558, %v3542
    %3560 = vst.msk [vmem:[%s10 + $0x8] sm:$0xff] %vm3558, %v3557
    %v3561 = vmul.f32 %v3542, %v3315
    %v3562 = vmul.f32 %v3557, %v3316
    %v3563 = vpack.c.bf16 %v3562, %v3561
    %v3564 = vpack.c.bf16 %v3487, %v3486
    %3565 = vxpose.xlu0.c.b16.start [1/8] %v3564, 128
    %3566 = vxpose.xlu0.c.b16.cont [2/8] 0, 128
    %3567 = vxpose.xlu0.c.b16.cont [3/8] 0, 128
    %3568 = vxpose.xlu0.c.b16.cont [4/8] 0, 128
    %3569 = vxpose.xlu0.c.b16.cont [5/8] 0, 128
    %3570 = vxpose.xlu0.c.b16.cont [6/8] 0, 128
    %3571 = vxpose.xlu0.c.b16.cont [7/8] 0, 128
    %3572 = vxpose.xlu0.c.b16.end [8/8] 0, 128
    %v3573 = vpop.trf.xlu0
    %v3574 = vpop.trf.xlu0
    %v3575 = vpop.trf.xlu0
    %v3576 = vpop.trf.xlu0
    %v3577 = vpop.trf.xlu0
    %v3578 = vpop.trf.xlu0
    %v3579 = vpop.trf.xlu0
    %v3580 = vpop.trf.xlu0
    %v3582 = vsel %vm163, %v3573, 0
    %v3585 = vsel %vm163, %v3574, 0
    %v3588 = vsel %vm163, %v3575, 0
    %v3591 = vsel %vm163, %v3576, 0
    %v3594 = vsel %vm163, %v3577, 0
    %v3597 = vsel %vm163, %v3578, 0
    %v3600 = vsel %vm163, %v3579, 0
    %v3603 = vsel %vm163, %v3580, 0
    %3605 = vmatpush.bf16.msra.mxu0 0
    %3606 = vmatpush.bf16.msra.mxu0 0
    %3607 = vmatpush.bf16.msra.mxu0 0
    %3608 = vmatpush.bf16.msra.mxu0 0
    %3609 = vmatpush.bf16.msra.mxu0 0
    %3610 = vmatpush.bf16.msra.mxu0 0
    %3611 = vmatpush.bf16.msra.mxu0 0
    %3612 = vmatpush.bf16.msra.mxu0 %v3563
    %3613 = vmatmul.bf16.gmra.mxu0 %v3582
    %v3614 = vpop.f32.mrf.mxu0
    %v3615 = vadd.f32 0.0, %v3614
    %v3616 = vpop.f32.mrf.mxu0
    %3617 = vmatmul.bf16.gmra.mxu0 %v3585
    %v3618 = vpop.f32.mrf.mxu0
    %v3619 = vpop.f32.mrf.mxu0
    %3620 = vmatmul.bf16.gmra.mxu0 %v3588
    %v3621 = vpop.f32.mrf.mxu0
    %v3622 = vpop.f32.mrf.mxu0
    %3623 = vmatmul.bf16.gmra.mxu0 %v3591
    %v3624 = vpop.f32.mrf.mxu0
    %v3625 = vpop.f32.mrf.mxu0
    %3626 = vmatmul.bf16.gmra.mxu0 %v3594
    %v3627 = vpop.f32.mrf.mxu0
    %v3628 = vpop.f32.mrf.mxu0
    %3629 = vmatmul.bf16.gmra.mxu0 %v3597
    %v3630 = vpop.f32.mrf.mxu0
    %v3631 = vpop.f32.mrf.mxu0
    %3632 = vmatmul.bf16.gmra.mxu0 %v3600
    %v3633 = vpop.f32.mrf.mxu0
    %v3634 = vpop.f32.mrf.mxu0
    %3635 = vmatmul.bf16.gmra.mxu0 %v3603
    %v3636 = vpop.f32.mrf.mxu0
    %v3637 = vpop.f32.mrf.mxu0
    %3638 = vdwg.mxu0
    %3639 = vst [vmem:[#allocation16] sm:$0xff] %v3615
    // Predicated region
    $region66: #{tpu_custom_call.1} parent=1 // pred_check
      _
    $region67: #{tpu_custom_call.1} parent=1 // pred_check_branch
      %3641 = sbr.rel (0) target = $region69
    $region68: #{tpu_custom_call.1} parent=1 // pred_region
      %3643 = vsyncadd [#allocation6], 0
      %s3645 = sshll.u32 [#allocation16], 4
      %s3646 = int_to_ptr.vmem [resolvable:$true] %s3645
      %s3647 = sshll.u32 %s9, 4
      %s3648 = int_to_ptr.hbm [resolvable:$true] %s3647
      %3650 = dma.vmem_to_hbm [thread:$0]  %s3646, 128, %s3648, [#allocation6]
    $region69: #{tpu_custom_call.1} parent=1 // pred_fallthru
      _
    // Predicated region
    $region70: #{tpu_custom_call.1} parent=1 // pred_check
      _
    $region71: #{tpu_custom_call.1} parent=1 // pred_check_branch
      %3652 = sbr.rel (0) target = $region73
    $region72: #{tpu_custom_call.1} parent=1 // pred_region
      _
    $region73: #{tpu_custom_call.1} parent=1 // pred_fallthru
      _
    // Predicated region
    $region74: #{tpu_custom_call.1} parent=1 // pred_check
      _
    $region75: #{tpu_custom_call.1} parent=1 // pred_check_branch
      %3654 = sbr.rel (0) target = $region77
    $region76: #{tpu_custom_call.1} parent=1 // pred_region
      %3656 = dma.done [#allocation6], 128
    $region77: #{tpu_custom_call.1} parent=1 // pred_fallthru
      _
    // Predicated region
    $region78: #{tpu_custom_call.1} parent=1 // pred_check
      _
    $region79: #{tpu_custom_call.1} parent=1 // pred_check_branch
      %3658 = sbr.rel (0) target = $region81
    $region80: #{tpu_custom_call.1} parent=1 // pred_region
      _
    $region81: #{tpu_custom_call.1} parent=1 // pred_fallthru
      _
    %3659 = vsyncpa [#allocation5], 1
    %3660 = vsyncpa [#allocation8], 1
    %3661 = vsyncpa [#allocation11], 1
    %3662 = vsyncpa [#allocation14], 1
    %3663 = vsyncpa [#allocation6], 1

</llo_original>
